<compile_context>
chip_gen: v7x
topology: tpu7x:2x2x1
jax: 0.10.0
libtpu: 0.0.40
codegen_flags: <defaults>
</compile_context>

<pallas_src>
import jax
import jax.numpy as jnp
import numpy as np
from jax.experimental import pallas as pl
from jax.experimental.pallas import tpu as pltpu

LANE = 128


def _round_up(n, m):
    return (n + m - 1) // m * m


# ----------------------------------------------------------------------------
# Kernel
# ----------------------------------------------------------------------------
def _make_vae_kernel(num_enc_layers, num_dec_layers, vi_pad, node_pad,
                     train_mode):
    """Full VAE forward pass for one batch tile.

    Ref order:
      x,
      [enc W_i, enc b_i] * num_enc_layers,   (W pre-transposed/padded, bf16)
      W_heads, b_heads,                       (fused mu|logvar head)
      [eps]  (train mode only),
      [dec W_i, dec b_i] * num_dec_layers,
      out   (slab [input_re(node_pad) | mu(vi_pad) | logvar(vi_pad)])
    """

    def linear_relu(h, w_ref, b_ref):
        # bf16 operands, f32 accumulation on the MXU; bias + ReLU in f32.
        y = jnp.dot(h.astype(jnp.bfloat16), w_ref[...],
                    preferred_element_type=jnp.float32)
        return jnp.maximum(y + b_ref[...], 0.0)

    def kernel(*refs):
        idx = 0
        h = refs[idx][...]
        idx += 1

        # ---- encoder_net: stack of Linear + ReLU ----
        for _ in range(num_enc_layers):
            h = linear_relu(h, refs[idx], refs[idx + 1])
            idx += 2

        # ---- fused mu / logvar head: one matmul ----
        heads = linear_relu(h, refs[idx], refs[idx + 1])  # (tb, 2*vi_pad)
        idx += 2

        if train_mode:
            eps = refs[idx][...]
            idx += 1

        out_ref = refs[idx + 2 * num_dec_layers]

        # Early, 128-aligned, lane-dense store of the (mu|logvar) segment so
        # `heads` does not stay live through the decoder loop.
        out_ref[:, node_pad:] = heads

        mu = heads[:, :vi_pad]                 # aligned vreg view
        if train_mode:
            logvar = heads[:, vi_pad:]         # aligned vreg view
            # reparameterize (f32): z = mu + eps * exp(0.5 * logvar)
            d = mu + eps * jnp.exp(0.5 * logvar)
        else:
            d = mu                             # eval: decode mu directly

        # ---- decoder_net: stack of Linear + ReLU ----
        for _ in range(num_dec_layers):
            d = linear_relu(d, refs[idx], refs[idx + 1])
            idx += 2

        out_ref[:, :node_pad] = d

    return kernel


# ----------------------------------------------------------------------------
# Wrapper
# ----------------------------------------------------------------------------
def vae_forward_pallas(x, params, eps=None, mode="train", tile_b=1024):
    """params: dict with lists of (W, b) tuples (PyTorch layout) under
    'enc', 'mu', 'logvar', 'dec'. Returns (input_re, mu, logvar)."""
    enc = params["enc"]
    dec = params["dec"]
    w_mu, b_mu = params["mu"]
    w_lv, b_lv = params["logvar"]

    train_mode = mode == "train"
    if train_mode and eps is None:
        raise ValueError("train mode requires eps")

    batch, node_num = x.shape
    vi_feature = w_mu.shape[0]
    node_pad = _round_up(node_num, LANE)
    vi_pad = _round_up(vi_feature, LANE)
    out_w_pad = node_pad + 2 * vi_pad

    # ---- pack parameters: transpose, zero-pad to 128 multiples, bf16 ----
    def pack_linear(w, b):
        w = jnp.asarray(w, jnp.float32)
        b = jnp.asarray(b, jnp.float32)
        out_f, in_f = w.shape
        in_p, out_p = _round_up(in_f, LANE), _round_up(out_f, LANE)
        w_t = jnp.pad(w.T, ((0, in_p - in_f), (0, out_p - out_f)))
        b_p = jnp.pad(b, (0, out_p - out_f)).reshape(1, out_p)
        return w_t.astype(jnp.bfloat16), b_p  # bias stays f32

    enc_packed = []
    for w, b in enc:
        enc_packed += list(pack_linear(w, b))

    # fused mu|logvar head, each half padded to vi_pad (128-aligned split)
    hid = w_mu.shape[1]
    hid_p = _round_up(hid, LANE)
    wm = jnp.pad(jnp.asarray(w_mu, jnp.float32).T,
                 ((0, hid_p - hid), (0, vi_pad - vi_feature)))
    wl = jnp.pad(jnp.asarray(w_lv, jnp.float32).T,
                 ((0, hid_p - hid), (0, vi_pad - vi_feature)))
    w_heads = jnp.concatenate([wm, wl], axis=1).astype(jnp.bfloat16)
    bm = jnp.pad(jnp.asarray(b_mu, jnp.float32), (0, vi_pad - vi_feature))
    bl = jnp.pad(jnp.asarray(b_lv, jnp.float32), (0, vi_pad - vi_feature))
    b_heads = jnp.concatenate([bm, bl]).reshape(1, 2 * vi_pad)

    dec_packed = []
    for w, b in dec:
        dec_packed += list(pack_linear(w, b))

    # ---- batch tiling: grid over rows; weights resident across steps ----
    tb = min(int(tile_b), _round_up(batch, 8))
    # v7x has 2 TensorCores; make sure there are >= 2 grid tiles when possible
    if batch > 8 and pl.cdiv(batch, tb) < 2:
        tb = max(8, _round_up(-(-batch // 2), 8))
    n_tiles = pl.cdiv(batch, tb)
    padded_batch = n_tiles * tb
    row_pad = padded_batch - batch

    # x: pad rows + lanes, pre-cast to bf16 (halves the input DMA stream)
    x_p = jnp.pad(jnp.asarray(x, jnp.float32),
                  ((0, row_pad), (0, node_pad - node_num))).astype(jnp.bfloat16)
    if train_mode:
        eps_p = jnp.pad(jnp.asarray(eps, jnp.float32),
                        ((0, row_pad), (0, vi_pad - vi_feature)))

    # ---- assemble inputs (kind tags drive the BlockSpecs) ----
    arrays = [("x", x_p)]
    for a in enc_packed + [w_heads, b_heads]:
        arrays.append(("w", a))
    if train_mode:
        arrays.append(("eps", eps_p))
    for a in dec_packed:
        arrays.append(("w", a))

    kernel = _make_vae_kernel(
        num_enc_layers=len(enc),
        num_dec_layers=len(dec),
        vi_pad=vi_pad,
        node_pad=node_pad,
        train_mode=train_mode,
    )

    # ---- VMEM budget -> explicit scoped-VMEM limit (clamped for v7x) ----
    weight_bytes = sum(int(a.size) * a.dtype.itemsize
                       for k, a in arrays if k == "w")
    act_bytes = 2 * tb * (node_pad * 2
                          + (vi_pad * 4 if train_mode else 0)
                          + out_w_pad * 4)
    vmem_limit = int(min(max(2 * weight_bytes + act_bytes + (8 << 20),
                             32 << 20), 64 << 20))

    def run(single_buffer_weights):
        def spec_for(kind, arr):
            if kind == "x":
                return pl.BlockSpec((tb, node_pad), lambda i: (i, 0))
            if kind == "eps":
                return pl.BlockSpec((tb, vi_pad), lambda i: (i, 0))
            # resident weight/bias: constant index_map, never re-fetched
            if single_buffer_weights:
                return pl.BlockSpec(arr.shape, lambda i: (0, 0),
                                    pipeline_mode=pl.Buffered(1))
            return pl.BlockSpec(arr.shape, lambda i: (0, 0))

        in_specs = [spec_for(k, a) for k, a in arrays]
        return pl.pallas_call(
            kernel,
            out_shape=jax.ShapeDtypeStruct((padded_batch, out_w_pad),
                                           jnp.float32),
            grid=(n_tiles,),
            in_specs=in_specs,
            out_specs=pl.BlockSpec((tb, out_w_pad), lambda i: (i, 0)),
            compiler_params=pltpu.CompilerParams(
                dimension_semantics=("parallel",),
                vmem_limit_bytes=vmem_limit,
            ),
        )(*[a for _, a in arrays])

    try:
        out = run(True)
    except Exception:
        # pipeline_mode / Buffered(1) unsupported on this jax version:
        # fall back to default double-buffered resident weights.
        out = run(False)

    out = out[:batch]
    input_re = out[:, :node_num]
    mu = out[:, node_pad:node_pad + vi_feature]
    logvar = out[:, node_pad + vi_pad:node_pad + vi_pad + vi_feature]
    return input_re, mu, logvar


# ----------------------------------------------------------------------------
# Parameter construction + pure-JAX reference (same bf16-matmul recipe)
# ----------------------------------------------------------------------------
def _init_linear(key, out_features, in_features):
    kw, kb = jax.random.split(key)
    bound = 1.0 / np.sqrt(in_features)
    w = jax.random.uniform(kw, (out_features, in_features), jnp.float32,
                           -bound, bound)
    b = jax.random.uniform(kb, (out_features,), jnp.float32, -bound, bound)
    return w, b


def make_params(key, node_num, hidden_features, vi_feature):
    keys = jax.random.split(key, 2 * len(hidden_features) + 3)
    k_iter = iter(keys)

    enc_dims = [node_num] + list(hidden_features)
    enc = [_init_linear(next(k_iter), enc_dims[i + 1], enc_dims[i])
           for i in range(len(enc_dims) - 1)]
    mu = _init_linear(next(k_iter), vi_feature, hidden_features[-1])
    logvar = _init_linear(next(k_iter), vi_feature, hidden_features[-1])
    dec_dims = list(reversed(hidden_features)) + [node_num]
    dec = [_init_linear(next(k_iter), dec_dims[i + 1], dec_dims[i])
           for i in range(len(dec_dims) - 1)]
    return {"enc": enc, "mu": mu, "logvar": logvar, "dec": dec}


def vae_forward_ref(x, params, eps=None, mode="train"):
    """Pure-JAX reference mirroring the PyTorch forward, with the same
    bf16-operand / f32-accumulation matmul recipe as the kernel."""
    def lin_relu(h, w, b):
        y = jnp.dot(h.astype(jnp.bfloat16),
                    jnp.asarray(w, jnp.float32).T.astype(jnp.bfloat16),
                    preferred_element_type=jnp.float32)
        return jnp.maximum(y + jnp.asarray(b, jnp.float32), 0.0)

    h = x
    for w, b in params["enc"]:
        h = lin_relu(h, w, b)
    mu = lin_relu(h, *params["mu"])
    logvar = lin_relu(h, *params["logvar"])
    if mode == "train":
        d = mu + eps * jnp.exp(0.5 * logvar)
    else:
        d = mu
    for w, b in params["dec"]:
        d = lin_relu(d, w, b)
    return d, mu, logvar


# ----------------------------------------------------------------------------
# Demo / correctness check
# ----------------------------------------------------------------------------
if __name__ == "__main__":
    node_num = 16
    hidden_features = [32, 24]
    vi_feature = 24          # must equal hidden_features[-1] for the decoder
    batch = 256              # exercises the batch grid (2 tiles of 128)

    key = jax.random.PRNGKey(0)
    k_params, k_x, k_eps = jax.random.split(key, 3)

    params = make_params(k_params, node_num, hidden_features, vi_feature)
    x = jax.random.normal(k_x, (batch, node_num), jnp.float32)
    # Deterministic eps replacing torch.randn_like inside reparameterize.
    eps = jax.random.normal(k_eps, (batch, vi_feature), jnp.float32)

    # train mode (uses eps / reparameterize)
    out_re, mu, logvar = vae_forward_pallas(x, params, eps, mode="train")
    jax.block_until_ready((out_re, mu, logvar))
    ref_re, ref_mu, ref_lv = vae_forward_ref(x, params, eps, mode="train")
    np.testing.assert_allclose(np.asarray(mu), np.asarray(ref_mu),
                               rtol=2e-3, atol=2e-3)
    np.testing.assert_allclose(np.asarray(logvar), np.asarray(ref_lv),
                               rtol=2e-3, atol=2e-3)
    np.testing.assert_allclose(np.asarray(out_re), np.asarray(ref_re),
                               rtol=2e-3, atol=2e-3)

    # eval mode (no eps DMA, decodes mu)
    out_re_e, mu_e, logvar_e = vae_forward_pallas(x, params, mode="eval")
    jax.block_until_ready((out_re_e, mu_e, logvar_e))
    ref_re_e, ref_mu_e, ref_lv_e = vae_forward_ref(x, params, mode="eval")
    np.testing.assert_allclose(np.asarray(mu_e), np.asarray(ref_mu_e),
                               rtol=2e-3, atol=2e-3)
    np.testing.assert_allclose(np.asarray(logvar_e), np.asarray(ref_lv_e),
                               rtol=2e-3, atol=2e-3)
    np.testing.assert_allclose(np.asarray(out_re_e), np.asarray(ref_re_e),
                               rtol=2e-3, atol=2e-3)

    print("KERNEL_OK")
</pallas_src>

<mosaic_0001>
module attributes {stable_mosaic.version = 11 : i64} {
  func.func @kernel(%arg0: i32, %arg1: memref<128x128xbf16, #tpu.memory_space<vmem>>, %arg2: memref<128x128xbf16, #tpu.memory_space<vmem>>, %arg3: memref<1x128xf32, #tpu.memory_space<vmem>>, %arg4: memref<128x128xbf16, #tpu.memory_space<vmem>>, %arg5: memref<1x128xf32, #tpu.memory_space<vmem>>, %arg6: memref<128x256xbf16, #tpu.memory_space<vmem>>, %arg7: memref<1x256xf32, #tpu.memory_space<vmem>>, %arg8: memref<128x128xf32, #tpu.memory_space<vmem>>, %arg9: memref<128x128xbf16, #tpu.memory_space<vmem>>, %arg10: memref<1x128xf32, #tpu.memory_space<vmem>>, %arg11: memref<128x128xbf16, #tpu.memory_space<vmem>>, %arg12: memref<1x128xf32, #tpu.memory_space<vmem>>, %arg13: memref<128x384xf32, #tpu.memory_space<vmem>>) attributes {dimension_semantics = [#tpu.dimension_semantics<parallel>], iteration_bounds = array<i64: 2>, scalar_prefetch = 0 : i64, scratch_operands = 0 : i64, tpu.core_type = #tpu.core_type<tc>, window_params = [{transform_indices = @transform_0, window_bounds = array<i64: 128, 128>}, {pipeline_mode = #tpu.pipeline_mode<synchronous>, transform_indices = @transform_1, window_bounds = array<i64: 128, 128>}, {pipeline_mode = #tpu.pipeline_mode<synchronous>, transform_indices = @transform_2, window_bounds = array<i64: 1, 128>}, {pipeline_mode = #tpu.pipeline_mode<synchronous>, transform_indices = @transform_3, window_bounds = array<i64: 128, 128>}, {pipeline_mode = #tpu.pipeline_mode<synchronous>, transform_indices = @transform_4, window_bounds = array<i64: 1, 128>}, {pipeline_mode = #tpu.pipeline_mode<synchronous>, transform_indices = @transform_5, window_bounds = array<i64: 128, 256>}, {pipeline_mode = #tpu.pipeline_mode<synchronous>, transform_indices = @transform_6, window_bounds = array<i64: 1, 256>}, {transform_indices = @transform_7, window_bounds = array<i64: 128, 128>}, {pipeline_mode = #tpu.pipeline_mode<synchronous>, transform_indices = @transform_8, window_bounds = array<i64: 128, 128>}, {pipeline_mode = #tpu.pipeline_mode<synchronous>, transform_indices = @transform_9, window_bounds = array<i64: 1, 128>}, {pipeline_mode = #tpu.pipeline_mode<synchronous>, transform_indices = @transform_10, window_bounds = array<i64: 128, 128>}, {pipeline_mode = #tpu.pipeline_mode<synchronous>, transform_indices = @transform_11, window_bounds = array<i64: 1, 128>}, {transform_indices = @transform_12, window_bounds = array<i64: 128, 384>}]} {
    %c0 = arith.constant 0 : index
    %c0_0 = arith.constant 0 : index
    %0 = vector.load %arg1[%c0, %c0_0] : memref<128x128xbf16, #tpu.memory_space<vmem>>, vector<128x128xbf16>
    %c0_1 = arith.constant 0 : index
    %c0_2 = arith.constant 0 : index
    %1 = vector.load %arg2[%c0_1, %c0_2] : memref<128x128xbf16, #tpu.memory_space<vmem>>, vector<128x128xbf16>
    %cst = arith.constant dense<0.000000e+00> : vector<128x128xf32>
    %2 = tpu.matmul %0, %1, %cst {dimension_numbers = #tpu.dot_dimension_numbers<[1], [0], [0], [1], [0, 0, 1, 1], [], []>} : vector<128x128xbf16>, vector<128x128xbf16>, vector<128x128xf32> -> vector<128x128xf32>
    %c0_3 = arith.constant 0 : index
    %c0_4 = arith.constant 0 : index
    %3 = vector.load %arg3[%c0_3, %c0_4] : memref<1x128xf32, #tpu.memory_space<vmem>>, vector<1x128xf32>
    %4 = vector.broadcast %3 : vector<1x128xf32> to vector<128x128xf32>
    %5 = arith.addf %2, %4 : vector<128x128xf32>
    %cst_5 = arith.constant 0.000000e+00 : f32
    %6 = vector.broadcast %cst_5 : f32 to vector<128x128xf32>
    %7 = arith.maximumf %5, %6 : vector<128x128xf32>
    %8 = arith.truncf %7 : vector<128x128xf32> to vector<128x128xbf16>
    %c0_6 = arith.constant 0 : index
    %c0_7 = arith.constant 0 : index
    %9 = vector.load %arg4[%c0_6, %c0_7] : memref<128x128xbf16, #tpu.memory_space<vmem>>, vector<128x128xbf16>
    %cst_8 = arith.constant dense<0.000000e+00> : vector<128x128xf32>
    %10 = tpu.matmul %8, %9, %cst_8 {dimension_numbers = #tpu.dot_dimension_numbers<[1], [0], [0], [1], [0, 0, 1, 1], [], []>} : vector<128x128xbf16>, vector<128x128xbf16>, vector<128x128xf32> -> vector<128x128xf32>
    %c0_9 = arith.constant 0 : index
    %c0_10 = arith.constant 0 : index
    %11 = vector.load %arg5[%c0_9, %c0_10] : memref<1x128xf32, #tpu.memory_space<vmem>>, vector<1x128xf32>
    %12 = vector.broadcast %11 : vector<1x128xf32> to vector<128x128xf32>
    %13 = arith.addf %10, %12 : vector<128x128xf32>
    %cst_11 = arith.constant 0.000000e+00 : f32
    %14 = vector.broadcast %cst_11 : f32 to vector<128x128xf32>
    %15 = arith.maximumf %13, %14 : vector<128x128xf32>
    %16 = arith.truncf %15 : vector<128x128xf32> to vector<128x128xbf16>
    %c0_12 = arith.constant 0 : index
    %c0_13 = arith.constant 0 : index
    %17 = vector.load %arg6[%c0_12, %c0_13] : memref<128x256xbf16, #tpu.memory_space<vmem>>, vector<128x256xbf16>
    %cst_14 = arith.constant dense<0.000000e+00> : vector<128x256xf32>
    %18 = tpu.matmul %16, %17, %cst_14 {dimension_numbers = #tpu.dot_dimension_numbers<[1], [0], [0], [1], [0, 0, 1, 1], [], []>} : vector<128x128xbf16>, vector<128x256xbf16>, vector<128x256xf32> -> vector<128x256xf32>
    %c0_15 = arith.constant 0 : index
    %c0_16 = arith.constant 0 : index
    %19 = vector.load %arg7[%c0_15, %c0_16] : memref<1x256xf32, #tpu.memory_space<vmem>>, vector<1x256xf32>
    %20 = vector.broadcast %19 : vector<1x256xf32> to vector<128x256xf32>
    %21 = arith.addf %18, %20 : vector<128x256xf32>
    %cst_17 = arith.constant 0.000000e+00 : f32
    %22 = vector.broadcast %cst_17 : f32 to vector<128x256xf32>
    %23 = arith.maximumf %21, %22 : vector<128x256xf32>
    %c0_18 = arith.constant 0 : index
    %c0_19 = arith.constant 0 : index
    %24 = vector.load %arg8[%c0_18, %c0_19] : memref<128x128xf32, #tpu.memory_space<vmem>>, vector<128x128xf32>
    %c0_20 = arith.constant 0 : index
    %c128 = arith.constant 128 : index
    %25 = vector.load %arg13[%c0_20, %c128] : memref<128x384xf32, #tpu.memory_space<vmem>>, vector<128x256xf32>
    tpu.vector_store %arg13[%c0_20, %c128], %23 {strides = array<i32>} : memref<128x384xf32, #tpu.memory_space<vmem>>, vector<128x256xf32>,
    %26 = vector.extract_strided_slice %23 {offsets = [0, 0], sizes = [128, 128], strides = [1, 1]} : vector<128x256xf32> to vector<128x128xf32>
    %27 = vector.extract_strided_slice %23 {offsets = [0, 128], sizes = [128, 128], strides = [1, 1]} : vector<128x256xf32> to vector<128x128xf32>
    %cst_21 = arith.constant 5.000000e-01 : f32
    %28 = vector.broadcast %cst_21 : f32 to vector<128x128xf32>
    %29 = arith.mulf %28, %27 : vector<128x128xf32>
    %30 = math.exp %29 : vector<128x128xf32>
    %31 = arith.mulf %24, %30 : vector<128x128xf32>
    %32 = arith.addf %26, %31 : vector<128x128xf32>
    %33 = arith.truncf %32 : vector<128x128xf32> to vector<128x128xbf16>
    %c0_22 = arith.constant 0 : index
    %c0_23 = arith.constant 0 : index
    %34 = vector.load %arg9[%c0_22, %c0_23] : memref<128x128xbf16, #tpu.memory_space<vmem>>, vector<128x128xbf16>
    %cst_24 = arith.constant dense<0.000000e+00> : vector<128x128xf32>
    %35 = tpu.matmul %33, %34, %cst_24 {dimension_numbers = #tpu.dot_dimension_numbers<[1], [0], [0], [1], [0, 0, 1, 1], [], []>} : vector<128x128xbf16>, vector<128x128xbf16>, vector<128x128xf32> -> vector<128x128xf32>
    %c0_25 = arith.constant 0 : index
    %c0_26 = arith.constant 0 : index
    %36 = vector.load %arg10[%c0_25, %c0_26] : memref<1x128xf32, #tpu.memory_space<vmem>>, vector<1x128xf32>
    %37 = vector.broadcast %36 : vector<1x128xf32> to vector<128x128xf32>
    %38 = arith.addf %35, %37 : vector<128x128xf32>
    %cst_27 = arith.constant 0.000000e+00 : f32
    %39 = vector.broadcast %cst_27 : f32 to vector<128x128xf32>
    %40 = arith.maximumf %38, %39 : vector<128x128xf32>
    %41 = arith.truncf %40 : vector<128x128xf32> to vector<128x128xbf16>
    %c0_28 = arith.constant 0 : index
    %c0_29 = arith.constant 0 : index
    %42 = vector.load %arg11[%c0_28, %c0_29] : memref<128x128xbf16, #tpu.memory_space<vmem>>, vector<128x128xbf16>
    %cst_30 = arith.constant dense<0.000000e+00> : vector<128x128xf32>
    %43 = tpu.matmul %41, %42, %cst_30 {dimension_numbers = #tpu.dot_dimension_numbers<[1], [0], [0], [1], [0, 0, 1, 1], [], []>} : vector<128x128xbf16>, vector<128x128xbf16>, vector<128x128xf32> -> vector<128x128xf32>
    %c0_31 = arith.constant 0 : index
    %c0_32 = arith.constant 0 : index
    %44 = vector.load %arg12[%c0_31, %c0_32] : memref<1x128xf32, #tpu.memory_space<vmem>>, vector<1x128xf32>
    %45 = vector.broadcast %44 : vector<1x128xf32> to vector<128x128xf32>
    %46 = arith.addf %43, %45 : vector<128x128xf32>
    %cst_33 = arith.constant 0.000000e+00 : f32
    %47 = vector.broadcast %cst_33 : f32 to vector<128x128xf32>
    %48 = arith.maximumf %46, %47 : vector<128x128xf32>
    %c0_34 = arith.constant 0 : index
    %c0_35 = arith.constant 0 : index
    %49 = vector.load %arg13[%c0_34, %c0_35] : memref<128x384xf32, #tpu.memory_space<vmem>>, vector<128x128xf32>
    tpu.vector_store %arg13[%c0_34, %c0_35], %48 {strides = array<i32>} : memref<128x384xf32, #tpu.memory_space<vmem>>, vector<128x128xf32>,
    return
  }
  func.func @transform_0(%arg0: i32) -> (i32, i32) {
    %c0_i32 = arith.constant 0 : i32
    %c0_i32_0 = arith.constant 0 : i32
    return %arg0, %c0_i32 : i32, i32
  }
  func.func @transform_1(%arg0: i32) -> (i32, i32) {
    %c0_i32 = arith.constant 0 : i32
    %c0_i32_0 = arith.constant 0 : i32
    %c0_i32_1 = arith.constant 0 : i32
    return %c0_i32, %c0_i32_0 : i32, i32
  }
  func.func @transform_2(%arg0: i32) -> (i32, i32) {
    %c0_i32 = arith.constant 0 : i32
    %c0_i32_0 = arith.constant 0 : i32
    %c0_i32_1 = arith.constant 0 : i32
    return %c0_i32, %c0_i32_0 : i32, i32
  }
  func.func @transform_3(%arg0: i32) -> (i32, i32) {
    %c0_i32 = arith.constant 0 : i32
    %c0_i32_0 = arith.constant 0 : i32
    %c0_i32_1 = arith.constant 0 : i32
    return %c0_i32, %c0_i32_0 : i32, i32
  }
  func.func @transform_4(%arg0: i32) -> (i32, i32) {
    %c0_i32 = arith.constant 0 : i32
    %c0_i32_0 = arith.constant 0 : i32
    %c0_i32_1 = arith.constant 0 : i32
    return %c0_i32, %c0_i32_0 : i32, i32
  }
  func.func @transform_5(%arg0: i32) -> (i32, i32) {
    %c0_i32 = arith.constant 0 : i32
    %c0_i32_0 = arith.constant 0 : i32
    %c0_i32_1 = arith.constant 0 : i32
    return %c0_i32, %c0_i32_0 : i32, i32
  }
  func.func @transform_6(%arg0: i32) -> (i32, i32) {
    %c0_i32 = arith.constant 0 : i32
    %c0_i32_0 = arith.constant 0 : i32
    %c0_i32_1 = arith.constant 0 : i32
    return %c0_i32, %c0_i32_0 : i32, i32
  }
  func.func @transform_7(%arg0: i32) -> (i32, i32) {
    %c0_i32 = arith.constant 0 : i32
    %c0_i32_0 = arith.constant 0 : i32
    return %arg0, %c0_i32 : i32, i32
  }
  func.func @transform_8(%arg0: i32) -> (i32, i32) {
    %c0_i32 = arith.constant 0 : i32
    %c0_i32_0 = arith.constant 0 : i32
    %c0_i32_1 = arith.constant 0 : i32
    return %c0_i32, %c0_i32_0 : i32, i32
  }
  func.func @transform_9(%arg0: i32) -> (i32, i32) {
    %c0_i32 = arith.constant 0 : i32
    %c0_i32_0 = arith.constant 0 : i32
    %c0_i32_1 = arith.constant 0 : i32
    return %c0_i32, %c0_i32_0 : i32, i32
  }
  func.func @transform_10(%arg0: i32) -> (i32, i32) {
    %c0_i32 = arith.constant 0 : i32
    %c0_i32_0 = arith.constant 0 : i32
    %c0_i32_1 = arith.constant 0 : i32
    return %c0_i32, %c0_i32_0 : i32, i32
  }
  func.func @transform_11(%arg0: i32) -> (i32, i32) {
    %c0_i32 = arith.constant 0 : i32
    %c0_i32_0 = arith.constant 0 : i32
    %c0_i32_1 = arith.constant 0 : i32
    return %c0_i32, %c0_i32_0 : i32, i32
  }
  func.func @transform_12(%arg0: i32) -> (i32, i32) {
    %c0_i32 = arith.constant 0 : i32
    %c0_i32_0 = arith.constant 0 : i32
    return %arg0, %c0_i32 : i32, i32
  }
}

module attributes {stable_mosaic.version = 11 : i64} {
  func.func @kernel(%arg0: i32, %arg1: memref<128x128xbf16, #tpu.memory_space<vmem>>, %arg2: memref<128x128xbf16, #tpu.memory_space<vmem>>, %arg3: memref<1x128xf32, #tpu.memory_space<vmem>>, %arg4: memref<128x128xbf16, #tpu.memory_space<vmem>>, %arg5: memref<1x128xf32, #tpu.memory_space<vmem>>, %arg6: memref<128x256xbf16, #tpu.memory_space<vmem>>, %arg7: memref<1x256xf32, #tpu.memory_space<vmem>>, %arg8: memref<128x128xf32, #tpu.memory_space<vmem>>, %arg9: memref<128x128xbf16, #tpu.memory_space<vmem>>, %arg10: memref<1x128xf32, #tpu.memory_space<vmem>>, %arg11: memref<128x128xbf16, #tpu.memory_space<vmem>>, %arg12: memref<1x128xf32, #tpu.memory_space<vmem>>, %arg13: memref<128x384xf32, #tpu.memory_space<vmem>>) attributes {dimension_semantics = [#tpu.dimension_semantics<parallel>], iteration_bounds = array<i64: 2>, scalar_prefetch = 0 : i64, scratch_operands = 0 : i64, tpu.core_type = #tpu.core_type<tc>, window_params = [{transform_indices = @transform_0, window_bounds = array<i64: 128, 128>}, {pipeline_mode = #tpu.pipeline_mode<synchronous>, transform_indices = @transform_1, window_bounds = array<i64: 128, 128>}, {pipeline_mode = #tpu.pipeline_mode<synchronous>, transform_indices = @transform_2, window_bounds = array<i64: 1, 128>}, {pipeline_mode = #tpu.pipeline_mode<synchronous>, transform_indices = @transform_3, window_bounds = array<i64: 128, 128>}, {pipeline_mode = #tpu.pipeline_mode<synchronous>, transform_indices = @transform_4, window_bounds = array<i64: 1, 128>}, {pipeline_mode = #tpu.pipeline_mode<synchronous>, transform_indices = @transform_5, window_bounds = array<i64: 128, 256>}, {pipeline_mode = #tpu.pipeline_mode<synchronous>, transform_indices = @transform_6, window_bounds = array<i64: 1, 256>}, {transform_indices = @transform_7, window_bounds = array<i64: 128, 128>}, {pipeline_mode = #tpu.pipeline_mode<synchronous>, transform_indices = @transform_8, window_bounds = array<i64: 128, 128>}, {pipeline_mode = #tpu.pipeline_mode<synchronous>, transform_indices = @transform_9, window_bounds = array<i64: 1, 128>}, {pipeline_mode = #tpu.pipeline_mode<synchronous>, transform_indices = @transform_10, window_bounds = array<i64: 128, 128>}, {pipeline_mode = #tpu.pipeline_mode<synchronous>, transform_indices = @transform_11, window_bounds = array<i64: 1, 128>}, {transform_indices = @transform_12, window_bounds = array<i64: 128, 384>}]} {
    %c0 = arith.constant 0 : index
    %c0_0 = arith.constant 0 : index
    %0 = vector.load %arg1[%c0, %c0_0] : memref<128x128xbf16, #tpu.memory_space<vmem>>, vector<128x128xbf16>
    %c0_1 = arith.constant 0 : index
    %c0_2 = arith.constant 0 : index
    %1 = vector.load %arg2[%c0_1, %c0_2] : memref<128x128xbf16, #tpu.memory_space<vmem>>, vector<128x128xbf16>
    %cst = arith.constant dense<0.000000e+00> : vector<128x128xf32>
    %2 = tpu.matmul %0, %1, %cst {dimension_numbers = #tpu.dot_dimension_numbers<[1], [0], [0], [1], [0, 0, 1, 1], [], []>} : vector<128x128xbf16>, vector<128x128xbf16>, vector<128x128xf32> -> vector<128x128xf32>
    %c0_3 = arith.constant 0 : index
    %c0_4 = arith.constant 0 : index
    %3 = vector.load %arg3[%c0_3, %c0_4] : memref<1x128xf32, #tpu.memory_space<vmem>>, vector<1x128xf32>
    %4 = vector.broadcast %3 : vector<1x128xf32> to vector<128x128xf32>
    %5 = arith.addf %2, %4 : vector<128x128xf32>
    %cst_5 = arith.constant 0.000000e+00 : f32
    %6 = vector.broadcast %cst_5 : f32 to vector<128x128xf32>
    %7 = arith.maximumf %5, %6 : vector<128x128xf32>
    %8 = arith.truncf %7 : vector<128x128xf32> to vector<128x128xbf16>
    %c0_6 = arith.constant 0 : index
    %c0_7 = arith.constant 0 : index
    %9 = vector.load %arg4[%c0_6, %c0_7] : memref<128x128xbf16, #tpu.memory_space<vmem>>, vector<128x128xbf16>
    %cst_8 = arith.constant dense<0.000000e+00> : vector<128x128xf32>
    %10 = tpu.matmul %8, %9, %cst_8 {dimension_numbers = #tpu.dot_dimension_numbers<[1], [0], [0], [1], [0, 0, 1, 1], [], []>} : vector<128x128xbf16>, vector<128x128xbf16>, vector<128x128xf32> -> vector<128x128xf32>
    %c0_9 = arith.constant 0 : index
    %c0_10 = arith.constant 0 : index
    %11 = vector.load %arg5[%c0_9, %c0_10] : memref<1x128xf32, #tpu.memory_space<vmem>>, vector<1x128xf32>
    %12 = vector.broadcast %11 : vector<1x128xf32> to vector<128x128xf32>
    %13 = arith.addf %10, %12 : vector<128x128xf32>
    %cst_11 = arith.constant 0.000000e+00 : f32
    %14 = vector.broadcast %cst_11 : f32 to vector<128x128xf32>
    %15 = arith.maximumf %13, %14 : vector<128x128xf32>
    %16 = arith.truncf %15 : vector<128x128xf32> to vector<128x128xbf16>
    %c0_12 = arith.constant 0 : index
    %c0_13 = arith.constant 0 : index
    %17 = vector.load %arg6[%c0_12, %c0_13] : memref<128x256xbf16, #tpu.memory_space<vmem>>, vector<128x256xbf16>
    %cst_14 = arith.constant dense<0.000000e+00> : vector<128x256xf32>
    %18 = tpu.matmul %16, %17, %cst_14 {dimension_numbers = #tpu.dot_dimension_numbers<[1], [0], [0], [1], [0, 0, 1, 1], [], []>} : vector<128x128xbf16>, vector<128x256xbf16>, vector<128x256xf32> -> vector<128x256xf32>
    %c0_15 = arith.constant 0 : index
    %c0_16 = arith.constant 0 : index
    %19 = vector.load %arg7[%c0_15, %c0_16] : memref<1x256xf32, #tpu.memory_space<vmem>>, vector<1x256xf32>
    %20 = vector.broadcast %19 : vector<1x256xf32> to vector<128x256xf32>
    %21 = arith.addf %18, %20 : vector<128x256xf32>
    %cst_17 = arith.constant 0.000000e+00 : f32
    %22 = vector.broadcast %cst_17 : f32 to vector<128x256xf32>
    %23 = arith.maximumf %21, %22 : vector<128x256xf32>
    %c0_18 = arith.constant 0 : index
    %c0_19 = arith.constant 0 : index
    %24 = vector.load %arg8[%c0_18, %c0_19] : memref<128x128xf32, #tpu.memory_space<vmem>>, vector<128x128xf32>
    %c0_20 = arith.constant 0 : index
    %c128 = arith.constant 128 : index
    %25 = vector.load %arg13[%c0_20, %c128] : memref<128x384xf32, #tpu.memory_space<vmem>>, vector<128x256xf32>
    tpu.vector_store %arg13[%c0_20, %c128], %23 {strides = array<i32>} : memref<128x384xf32, #tpu.memory_space<vmem>>, vector<128x256xf32>,
    %26 = vector.extract_strided_slice %23 {offsets = [0, 0], sizes = [128, 128], strides = [1, 1]} : vector<128x256xf32> to vector<128x128xf32>
    %27 = vector.extract_strided_slice %23 {offsets = [0, 128], sizes = [128, 128], strides = [1, 1]} : vector<128x256xf32> to vector<128x128xf32>
    %cst_21 = arith.constant 5.000000e-01 : f32
    %28 = vector.broadcast %cst_21 : f32 to vector<128x128xf32>
    %29 = arith.mulf %28, %27 : vector<128x128xf32>
    %30 = math.exp %29 : vector<128x128xf32>
    %31 = arith.mulf %24, %30 : vector<128x128xf32>
    %32 = arith.addf %26, %31 : vector<128x128xf32>
    %33 = arith.truncf %32 : vector<128x128xf32> to vector<128x128xbf16>
    %c0_22 = arith.constant 0 : index
    %c0_23 = arith.constant 0 : index
    %34 = vector.load %arg9[%c0_22, %c0_23] : memref<128x128xbf16, #tpu.memory_space<vmem>>, vector<128x128xbf16>
    %cst_24 = arith.constant dense<0.000000e+00> : vector<128x128xf32>
    %35 = tpu.matmul %33, %34, %cst_24 {dimension_numbers = #tpu.dot_dimension_numbers<[1], [0], [0], [1], [0, 0, 1, 1], [], []>} : vector<128x128xbf16>, vector<128x128xbf16>, vector<128x128xf32> -> vector<128x128xf32>
    %c0_25 = arith.constant 0 : index
    %c0_26 = arith.constant 0 : index
    %36 = vector.load %arg10[%c0_25, %c0_26] : memref<1x128xf32, #tpu.memory_space<vmem>>, vector<1x128xf32>
    %37 = vector.broadcast %36 : vector<1x128xf32> to vector<128x128xf32>
    %38 = arith.addf %35, %37 : vector<128x128xf32>
    %cst_27 = arith.constant 0.000000e+00 : f32
    %39 = vector.broadcast %cst_27 : f32 to vector<128x128xf32>
    %40 = arith.maximumf %38, %39 : vector<128x128xf32>
    %41 = arith.truncf %40 : vector<128x128xf32> to vector<128x128xbf16>
    %c0_28 = arith.constant 0 : index
    %c0_29 = arith.constant 0 : index
    %42 = vector.load %arg11[%c0_28, %c0_29] : memref<128x128xbf16, #tpu.memory_space<vmem>>, vector<128x128xbf16>
    %cst_30 = arith.constant dense<0.000000e+00> : vector<128x128xf32>
    %43 = tpu.matmul %41, %42, %cst_30 {dimension_numbers = #tpu.dot_dimension_numbers<[1], [0], [0], [1], [0, 0, 1, 1], [], []>} : vector<128x128xbf16>, vector<128x128xbf16>, vector<128x128xf32> -> vector<128x128xf32>
    %c0_31 = arith.constant 0 : index
    %c0_32 = arith.constant 0 : index
    %44 = vector.load %arg12[%c0_31, %c0_32] : memref<1x128xf32, #tpu.memory_space<vmem>>, vector<1x128xf32>
    %45 = vector.broadcast %44 : vector<1x128xf32> to vector<128x128xf32>
    %46 = arith.addf %43, %45 : vector<128x128xf32>
    %cst_33 = arith.constant 0.000000e+00 : f32
    %47 = vector.broadcast %cst_33 : f32 to vector<128x128xf32>
    %48 = arith.maximumf %46, %47 : vector<128x128xf32>
    %c0_34 = arith.constant 0 : index
    %c0_35 = arith.constant 0 : index
    %49 = vector.load %arg13[%c0_34, %c0_35] : memref<128x384xf32, #tpu.memory_space<vmem>>, vector<128x128xf32>
    tpu.vector_store %arg13[%c0_34, %c0_35], %48 {strides = array<i32>} : memref<128x384xf32, #tpu.memory_space<vmem>>, vector<128x128xf32>,
    return
  }
  func.func @transform_0(%arg0: i32) -> (i32, i32) {
    %c0_i32 = arith.constant 0 : i32
    %c0_i32_0 = arith.constant 0 : i32
    return %arg0, %c0_i32 : i32, i32
  }
  func.func @transform_1(%arg0: i32) -> (i32, i32) {
    %c0_i32 = arith.constant 0 : i32
    %c0_i32_0 = arith.constant 0 : i32
    %c0_i32_1 = arith.constant 0 : i32
    return %c0_i32, %c0_i32_0 : i32, i32
  }
  func.func @transform_2(%arg0: i32) -> (i32, i32) {
    %c0_i32 = arith.constant 0 : i32
    %c0_i32_0 = arith.constant 0 : i32
    %c0_i32_1 = arith.constant 0 : i32
    return %c0_i32, %c0_i32_0 : i32, i32
  }
  func.func @transform_3(%arg0: i32) -> (i32, i32) {
    %c0_i32 = arith.constant 0 : i32
    %c0_i32_0 = arith.constant 0 : i32
    %c0_i32_1 = arith.constant 0 : i32
    return %c0_i32, %c0_i32_0 : i32, i32
  }
  func.func @transform_4(%arg0: i32) -> (i32, i32) {
    %c0_i32 = arith.constant 0 : i32
    %c0_i32_0 = arith.constant 0 : i32
    %c0_i32_1 = arith.constant 0 : i32
    return %c0_i32, %c0_i32_0 : i32, i32
  }
  func.func @transform_5(%arg0: i32) -> (i32, i32) {
    %c0_i32 = arith.constant 0 : i32
    %c0_i32_0 = arith.constant 0 : i32
    %c0_i32_1 = arith.constant 0 : i32
    return %c0_i32, %c0_i32_0 : i32, i32
  }
  func.func @transform_6(%arg0: i32) -> (i32, i32) {
    %c0_i32 = arith.constant 0 : i32
    %c0_i32_0 = arith.constant 0 : i32
    %c0_i32_1 = arith.constant 0 : i32
    return %c0_i32, %c0_i32_0 : i32, i32
  }
  func.func @transform_7(%arg0: i32) -> (i32, i32) {
    %c0_i32 = arith.constant 0 : i32
    %c0_i32_0 = arith.constant 0 : i32
    return %arg0, %c0_i32 : i32, i32
  }
  func.func @transform_8(%arg0: i32) -> (i32, i32) {
    %c0_i32 = arith.constant 0 : i32
    %c0_i32_0 = arith.constant 0 : i32
    %c0_i32_1 = arith.constant 0 : i32
    return %c0_i32, %c0_i32_0 : i32, i32
  }
  func.func @transform_9(%arg0: i32) -> (i32, i32) {
    %c0_i32 = arith.constant 0 : i32
    %c0_i32_0 = arith.constant 0 : i32
    %c0_i32_1 = arith.constant 0 : i32
    return %c0_i32, %c0_i32_0 : i32, i32
  }
  func.func @transform_10(%arg0: i32) -> (i32, i32) {
    %c0_i32 = arith.constant 0 : i32
    %c0_i32_0 = arith.constant 0 : i32
    %c0_i32_1 = arith.constant 0 : i32
    return %c0_i32, %c0_i32_0 : i32, i32
  }
  func.func @transform_11(%arg0: i32) -> (i32, i32) {
    %c0_i32 = arith.constant 0 : i32
    %c0_i32_0 = arith.constant 0 : i32
    %c0_i32_1 = arith.constant 0 : i32
    return %c0_i32, %c0_i32_0 : i32, i32
  }
  func.func @transform_12(%arg0: i32) -> (i32, i32) {
    %c0_i32 = arith.constant 0 : i32
    %c0_i32_0 = arith.constant 0 : i32
    return %arg0, %c0_i32 : i32, i32
  }
}

</mosaic_0001>

<llo_original>
// kernel: tpu_custom_call.1
$region0: #{tpu_custom_call.1}
  #allocation0 [shape = 'u32[]', space=smem, size = 0x4, offset = 0x4, fixed_abs, tag = 'smem constant byte address 0x4 - core index']
  #allocation1 [shape = 'u32[144,128]{1,0:T(1,128)}', space=vmem, size = 0x12000, scoped, tag = 'internal scratch']
  %s0 = inlined_call_operand.hbm [shape: bf16[256,128], index: 0, kind: input, shape index: {}]
  %s1 = inlined_call_operand.hbm [shape: bf16[128,128], index: 1, kind: input, shape index: {}]
  %s2 = inlined_call_operand.vmem [shape: f32[1,128], index: 2, kind: input, shape index: {}]
  %s3 = inlined_call_operand.hbm [shape: bf16[128,128], index: 3, kind: input, shape index: {}]
  %s4 = inlined_call_operand.vmem [shape: f32[1,128], index: 4, kind: input, shape index: {}]
  %s5 = inlined_call_operand.hbm [shape: bf16[128,256], index: 5, kind: input, shape index: {}]
  %s6 = inlined_call_operand.vmem [shape: f32[1,256], index: 6, kind: input, shape index: {}]
  %s7 = inlined_call_operand.hbm [shape: f32[256,128], index: 7, kind: input, shape index: {}]
  %s8 = inlined_call_operand.hbm [shape: bf16[128,128], index: 8, kind: input, shape index: {}]
  %s9 = inlined_call_operand.vmem [shape: f32[1,128], index: 9, kind: input, shape index: {}]
  %s10 = inlined_call_operand.hbm [shape: bf16[128,128], index: 10, kind: input, shape index: {}]
  %s11 = inlined_call_operand.vmem [shape: f32[1,128], index: 11, kind: input, shape index: {}]
  %s12 = inlined_call_operand.hbm [shape: f32[256,384], index: 12, kind: output, shape index: {}]
  %s13 = sld [smem:[#allocation0]]
  $region109: #{tpu_custom_call.1} parent=0
    _
  %s15 = ssub.s32 1, %s13
  %s16 = scalar_select 0, %s15, %s13
  $region1: #{tpu_custom_call.1} parent=0
    #allocation2 [shape = 'u8[65536]{0}', space=vmem, size = 0x10000, scoped, tag = 'input window, operand 0']
    #allocation3 [shape = 's32[2]{0}', space=sflag, size = 0x8, scoped, tag = 'scoped memory for tpu_custom_call.1']
    #allocation4 [shape = 's32[2]{0}', space=sflag, size = 0x8, scoped, tag = 'scoped memory for tpu_custom_call.1']
    #allocation5 [shape = 'u8[32768]{0}', space=vmem, size = 0x8000, scoped, tag = 'input window, operand 1, single buffered']
    #allocation6 [shape = 's32[1]{0}', space=sflag, size = 0x4, scoped, tag = 'scoped memory for tpu_custom_call.1']
    #allocation7 [shape = 'u8[32768]{0}', space=vmem, size = 0x8000, scoped, tag = 'input window, operand 3, single buffered']
    #allocation8 [shape = 'u8[65536]{0}', space=vmem, size = 0x10000, scoped, tag = 'input window, operand 5, single buffered']
    #allocation9 [shape = 's32[1]{0}', space=sflag, size = 0x4, scoped, tag = 'scoped memory for tpu_custom_call.1']
    #allocation10 [shape = 'u8[131072]{0}', space=vmem, size = 0x20000, scoped, tag = 'input window, operand 7']
    #allocation11 [shape = 'u8[32768]{0}', space=vmem, size = 0x8000, scoped, tag = 'input window, operand 8, single buffered']
    #allocation12 [shape = 'u8[32768]{0}', space=vmem, size = 0x8000, scoped, tag = 'input window, operand 10, single buffered']
    #allocation13 [shape = 'u8[393216]{0}', space=vmem, size = 0x60000, scoped, tag = 'output window, operand 0']
    %17 = vsyncpa [#allocation3], 0
    %s18 = scalar_lea.sflag [#allocation3], 1
    %19 = vsyncpa %s18, 0
    %20 = vsyncpa [#allocation6], 0
    %21 = vsyncpa [#allocation9], 0
    %22 = vsyncpa [#allocation4], 0
    %s23 = scalar_lea.sflag [#allocation4], 1
    %24 = vsyncpa %s23, 0
    loop: start=0, step=1, limit=4
    $region2: #{tpu_custom_call.1} parent=1 // loop_pre_header
      _
    $region3: #{tpu_custom_call.1} parent=1 // loop_header
      %s26 = sphi 0, %s30
      %p27 = scmp.ge.s32.totalorder %s26, 4
      %s36 = sphi 0, %s38
      %s39 = sphi 0, %s36
      %s40 = sphi 0, %s39
      %s56 = sphi 0, %s40
      %s60 = sphi 0, %s60
      %s62 = sphi 0, %s60
      %s63 = sphi 0, %s62
      %s77 = sphi 0, %s63
      %s81 = sphi 0, %s81
      %s83 = sphi 0, %s81
      %s84 = sphi 0, %s83
      %s98 = sphi 0, %s84
      %s102 = sphi 0, %s102
      %s104 = sphi 0, %s102
      %s105 = sphi 0, %s104
      %s119 = sphi 0, %s105
      %s123 = sphi 0, %s123
      %s125 = sphi 0, %s123
      %s126 = sphi 0, %s125
      %s140 = sphi 0, %s126
      %s144 = sphi 0, %s144
      %s146 = sphi 0, %s144
      %s147 = sphi 0, %s146
      %s161 = sphi 0, %s147
      %s165 = sphi 0, %s165
      %s167 = sphi 0, %s165
      %s168 = sphi 0, %s167
      %s182 = sphi 0, %s168
      %s188 = sphi 0, %s190
      %s191 = sphi 0, %s188
      %s192 = sphi 0, %s191
      %s208 = sphi 0, %s192
      %s212 = sphi 0, %s212
      %s214 = sphi 0, %s212
      %s215 = sphi 0, %s214
      %s229 = sphi 0, %s215
      %s233 = sphi 0, %s233
      %s235 = sphi 0, %s233
      %s236 = sphi 0, %s235
      %s250 = sphi 0, %s236
      %s254 = sphi 0, %s254
      %s256 = sphi 0, %s254
      %s257 = sphi 0, %s256
      %s271 = sphi 0, %s257
      %s275 = sphi 0, %s275
      %s277 = sphi 0, %s275
      %s278 = sphi 0, %s277
      %s292 = sphi 0, %s278
      %s298 = sphi 0, %s300
      %s301 = sphi 0, %s298
      %s302 = sphi 0, %s301
      %s318 = sphi 0, %s302
    $region4: #{tpu_custom_call.1} parent=1 // loop_header_branch
      %29 = sbr.rel (%p27) target = $region8
    $region5: #{tpu_custom_call.1} parent=1 // loop_body
      %s31 = ssub.s32 %s26, 1
      %s32 = ssub.s32 %s26, 2
      %s33 = sadd.s32 %s26, 1
      %s34 = ssub.s32 %s26, %s33
      %p35 = scmp.eq.s32.totalorder %s34, 0
      %s37 = sadd.s32 %s36, 1
      %s38 = scalar_select %p35, %s36, %s37
      %p41 = pneg %p35
      %p42 = scmp.eq.s32.totalorder %s26, 1
      %p43 = por %p41, %p42
      %p44 = scmp.ne.s32.totalorder %s36, %s39
      %p45 = scmp.eq.s32.totalorder %s26, 0
      %p46 = por %p44, %p45
      %p47 = scmp.ne.s32.totalorder %s36, %s39
      %p48 = scmp.eq.s32.totalorder %s31, 1
      %p49 = por %p47, %p48
      %p50 = scmp.ne.s32.totalorder %s39, %s40
      %p51 = scmp.eq.s32.totalorder %s31, 0
      %p52 = por %p50, %p51
      %p53 = scmp.ne.s32.totalorder %s39, %s40
      %p54 = scmp.eq.s32.totalorder %s32, 1
      %p55 = por %p53, %p54
      %p57 = scmp.ne.s32.totalorder %s40, %s56
      %p58 = scmp.eq.s32.totalorder %s32, 0
      %p59 = por %p57, %p58
      %s61 = sadd.s32 %s60, 1
      %p64 = scmp.eq.s32.totalorder %s26, 1
      %p65 = scmp.ne.s32.totalorder %s60, %s62
      %p66 = scmp.eq.s32.totalorder %s26, 0
      %p67 = por %p65, %p66
      %p68 = scmp.ne.s32.totalorder %s60, %s62
      %p69 = scmp.eq.s32.totalorder %s31, 1
      %p70 = por %p68, %p69
      %p71 = scmp.ne.s32.totalorder %s62, %s63
      %p72 = scmp.eq.s32.totalorder %s31, 0
      %p73 = por %p71, %p72
      %p74 = scmp.ne.s32.totalorder %s62, %s63
      %p75 = scmp.eq.s32.totalorder %s32, 1
      %p76 = por %p74, %p75
      %p78 = scmp.ne.s32.totalorder %s63, %s77
      %p79 = scmp.eq.s32.totalorder %s32, 0
      %p80 = por %p78, %p79
      %s82 = sadd.s32 %s81, 1
      %p85 = scmp.eq.s32.totalorder %s26, 1
      %p86 = scmp.ne.s32.totalorder %s81, %s83
      %p87 = scmp.eq.s32.totalorder %s26, 0
      %p88 = por %p86, %p87
      %p89 = scmp.ne.s32.totalorder %s81, %s83
      %p90 = scmp.eq.s32.totalorder %s31, 1
      %p91 = por %p89, %p90
      %p92 = scmp.ne.s32.totalorder %s83, %s84
      %p93 = scmp.eq.s32.totalorder %s31, 0
      %p94 = por %p92, %p93
      %p95 = scmp.ne.s32.totalorder %s83, %s84
      %p96 = scmp.eq.s32.totalorder %s32, 1
      %p97 = por %p95, %p96
      %p99 = scmp.ne.s32.totalorder %s84, %s98
      %p100 = scmp.eq.s32.totalorder %s32, 0
      %p101 = por %p99, %p100
      %s103 = sadd.s32 %s102, 1
      %p106 = scmp.eq.s32.totalorder %s26, 1
      %p107 = scmp.ne.s32.totalorder %s102, %s104
      %p108 = scmp.eq.s32.totalorder %s26, 0
      %p109 = por %p107, %p108
      %p110 = scmp.ne.s32.totalorder %s102, %s104
      %p111 = scmp.eq.s32.totalorder %s31, 1
      %p112 = por %p110, %p111
      %p113 = scmp.ne.s32.totalorder %s104, %s105
      %p114 = scmp.eq.s32.totalorder %s31, 0
      %p115 = por %p113, %p114
      %p116 = scmp.ne.s32.totalorder %s104, %s105
      %p117 = scmp.eq.s32.totalorder %s32, 1
      %p118 = por %p116, %p117
      %p120 = scmp.ne.s32.totalorder %s105, %s119
      %p121 = scmp.eq.s32.totalorder %s32, 0
      %p122 = por %p120, %p121
      %s124 = sadd.s32 %s123, 1
      %p127 = scmp.eq.s32.totalorder %s26, 1
      %p128 = scmp.ne.s32.totalorder %s123, %s125
      %p129 = scmp.eq.s32.totalorder %s26, 0
      %p130 = por %p128, %p129
      %p131 = scmp.ne.s32.totalorder %s123, %s125
      %p132 = scmp.eq.s32.totalorder %s31, 1
      %p133 = por %p131, %p132
      %p134 = scmp.ne.s32.totalorder %s125, %s126
      %p135 = scmp.eq.s32.totalorder %s31, 0
      %p136 = por %p134, %p135
      %p137 = scmp.ne.s32.totalorder %s125, %s126
      %p138 = scmp.eq.s32.totalorder %s32, 1
      %p139 = por %p137, %p138
      %p141 = scmp.ne.s32.totalorder %s126, %s140
      %p142 = scmp.eq.s32.totalorder %s32, 0
      %p143 = por %p141, %p142
      %s145 = sadd.s32 %s144, 1
      %p148 = scmp.eq.s32.totalorder %s26, 1
      %p149 = scmp.ne.s32.totalorder %s144, %s146
      %p150 = scmp.eq.s32.totalorder %s26, 0
      %p151 = por %p149, %p150
      %p152 = scmp.ne.s32.totalorder %s144, %s146
      %p153 = scmp.eq.s32.totalorder %s31, 1
      %p154 = por %p152, %p153
      %p155 = scmp.ne.s32.totalorder %s146, %s147
      %p156 = scmp.eq.s32.totalorder %s31, 0
      %p157 = por %p155, %p156
      %p158 = scmp.ne.s32.totalorder %s146, %s147
      %p159 = scmp.eq.s32.totalorder %s32, 1
      %p160 = por %p158, %p159
      %p162 = scmp.ne.s32.totalorder %s147, %s161
      %p163 = scmp.eq.s32.totalorder %s32, 0
      %p164 = por %p162, %p163
      %s166 = sadd.s32 %s165, 1
      %p169 = scmp.eq.s32.totalorder %s26, 1
      %p170 = scmp.ne.s32.totalorder %s165, %s167
      %p171 = scmp.eq.s32.totalorder %s26, 0
      %p172 = por %p170, %p171
      %p173 = scmp.ne.s32.totalorder %s165, %s167
      %p174 = scmp.eq.s32.totalorder %s31, 1
      %p175 = por %p173, %p174
      %p176 = scmp.ne.s32.totalorder %s167, %s168
      %p177 = scmp.eq.s32.totalorder %s31, 0
      %p178 = por %p176, %p177
      %p179 = scmp.ne.s32.totalorder %s167, %s168
      %p180 = scmp.eq.s32.totalorder %s32, 1
      %p181 = por %p179, %p180
      %p183 = scmp.ne.s32.totalorder %s168, %s182
      %p184 = scmp.eq.s32.totalorder %s32, 0
      %p185 = por %p183, %p184
      %s186 = ssub.s32 %s26, %s33
      %p187 = scmp.eq.s32.totalorder %s186, 0
      %s189 = sadd.s32 %s188, 1
      %s190 = scalar_select %p187, %s188, %s189
      %p193 = pneg %p187
      %p194 = scmp.eq.s32.totalorder %s26, 1
      %p195 = por %p193, %p194
      %p196 = scmp.ne.s32.totalorder %s188, %s191
      %p197 = scmp.eq.s32.totalorder %s26, 0
      %p198 = por %p196, %p197
      %p199 = scmp.ne.s32.totalorder %s188, %s191
      %p200 = scmp.eq.s32.totalorder %s31, 1
      %p201 = por %p199, %p200
      %p202 = scmp.ne.s32.totalorder %s191, %s192
      %p203 = scmp.eq.s32.totalorder %s31, 0
      %p204 = por %p202, %p203
      %p205 = scmp.ne.s32.totalorder %s191, %s192
      %p206 = scmp.eq.s32.totalorder %s32, 1
      %p207 = por %p205, %p206
      %p209 = scmp.ne.s32.totalorder %s192, %s208
      %p210 = scmp.eq.s32.totalorder %s32, 0
      %p211 = por %p209, %p210
      %s213 = sadd.s32 %s212, 1
      %p216 = scmp.eq.s32.totalorder %s26, 1
      %p217 = scmp.ne.s32.totalorder %s212, %s214
      %p218 = scmp.eq.s32.totalorder %s26, 0
      %p219 = por %p217, %p218
      %p220 = scmp.ne.s32.totalorder %s212, %s214
      %p221 = scmp.eq.s32.totalorder %s31, 1
      %p222 = por %p220, %p221
      %p223 = scmp.ne.s32.totalorder %s214, %s215
      %p224 = scmp.eq.s32.totalorder %s31, 0
      %p225 = por %p223, %p224
      %p226 = scmp.ne.s32.totalorder %s214, %s215
      %p227 = scmp.eq.s32.totalorder %s32, 1
      %p228 = por %p226, %p227
      %p230 = scmp.ne.s32.totalorder %s215, %s229
      %p231 = scmp.eq.s32.totalorder %s32, 0
      %p232 = por %p230, %p231
      %s234 = sadd.s32 %s233, 1
      %p237 = scmp.eq.s32.totalorder %s26, 1
      %p238 = scmp.ne.s32.totalorder %s233, %s235
      %p239 = scmp.eq.s32.totalorder %s26, 0
      %p240 = por %p238, %p239
      %p241 = scmp.ne.s32.totalorder %s233, %s235
      %p242 = scmp.eq.s32.totalorder %s31, 1
      %p243 = por %p241, %p242
      %p244 = scmp.ne.s32.totalorder %s235, %s236
      %p245 = scmp.eq.s32.totalorder %s31, 0
      %p246 = por %p244, %p245
      %p247 = scmp.ne.s32.totalorder %s235, %s236
      %p248 = scmp.eq.s32.totalorder %s32, 1
      %p249 = por %p247, %p248
      %p251 = scmp.ne.s32.totalorder %s236, %s250
      %p252 = scmp.eq.s32.totalorder %s32, 0
      %p253 = por %p251, %p252
      %s255 = sadd.s32 %s254, 1
      %p258 = scmp.eq.s32.totalorder %s26, 1
      %p259 = scmp.ne.s32.totalorder %s254, %s256
      %p260 = scmp.eq.s32.totalorder %s26, 0
      %p261 = por %p259, %p260
      %p262 = scmp.ne.s32.totalorder %s254, %s256
      %p263 = scmp.eq.s32.totalorder %s31, 1
      %p264 = por %p262, %p263
      %p265 = scmp.ne.s32.totalorder %s256, %s257
      %p266 = scmp.eq.s32.totalorder %s31, 0
      %p267 = por %p265, %p266
      %p268 = scmp.ne.s32.totalorder %s256, %s257
      %p269 = scmp.eq.s32.totalorder %s32, 1
      %p270 = por %p268, %p269
      %p272 = scmp.ne.s32.totalorder %s257, %s271
      %p273 = scmp.eq.s32.totalorder %s32, 0
      %p274 = por %p272, %p273
      %s276 = sadd.s32 %s275, 1
      %p279 = scmp.eq.s32.totalorder %s26, 1
      %p280 = scmp.ne.s32.totalorder %s275, %s277
      %p281 = scmp.eq.s32.totalorder %s26, 0
      %p282 = por %p280, %p281
      %p283 = scmp.ne.s32.totalorder %s275, %s277
      %p284 = scmp.eq.s32.totalorder %s31, 1
      %p285 = por %p283, %p284
      %p286 = scmp.ne.s32.totalorder %s277, %s278
      %p287 = scmp.eq.s32.totalorder %s31, 0
      %p288 = por %p286, %p287
      %p289 = scmp.ne.s32.totalorder %s277, %s278
      %p290 = scmp.eq.s32.totalorder %s32, 1
      %p291 = por %p289, %p290
      %p293 = scmp.ne.s32.totalorder %s278, %s292
      %p294 = scmp.eq.s32.totalorder %s32, 0
      %p295 = por %p293, %p294
      %s296 = ssub.s32 %s26, %s33
      %p297 = scmp.eq.s32.totalorder %s296, 0
      %s299 = sadd.s32 %s298, 1
      %s300 = scalar_select %p297, %s298, %s299
      %p303 = pneg %p297
      %p304 = scmp.eq.s32.totalorder %s26, 1
      %p305 = por %p303, %p304
      %p306 = scmp.ne.s32.totalorder %s298, %s301
      %p307 = scmp.eq.s32.totalorder %s26, 0
      %p308 = por %p306, %p307
      %p309 = scmp.ne.s32.totalorder %s298, %s301
      %p310 = scmp.eq.s32.totalorder %s31, 1
      %p311 = por %p309, %p310
      %p312 = scmp.ne.s32.totalorder %s301, %s302
      %p313 = scmp.eq.s32.totalorder %s31, 0
      %p314 = por %p312, %p313
      %p315 = scmp.ne.s32.totalorder %s301, %s302
      %p316 = scmp.eq.s32.totalorder %s32, 1
      %p317 = por %p315, %p316
      %p319 = scmp.ne.s32.totalorder %s302, %s318
      %p320 = scmp.eq.s32.totalorder %s32, 0
      %p321 = por %p319, %p320
      %p322 = scmp.le.s32.totalorder 1, %s26
      %p323 = scmp.lt.s32.totalorder %s26, 3
      %p324 = pnand %p322, %p323
      %p325 = pneg %p324
      // Predicated region
      $region9: #{tpu_custom_call.1} parent=5 // pred_check
        _
      $region10: #{tpu_custom_call.1} parent=5 // pred_check_branch
        %327 = sbr.rel (%p324) target = $region12
      $region11: #{tpu_custom_call.1} parent=5 // pred_region
        %s328 = ssub.s32 %s26, 1
        // Predicated region
        $region13: #{tpu_custom_call.1} parent=11 // pred_check
          %p329 = pneg %p73
        $region14: #{tpu_custom_call.1} parent=11 // pred_check_branch
          %331 = sbr.rel (%p329) target = $region16
        $region15: #{tpu_custom_call.1} parent=11 // pred_region
          %s333 = ssub.s32 1024, 1024
          %334 = vsyncadd [#allocation6], %s333
          %s335 = sshll.u32 [#allocation5], 4
          %s336 = int_to_ptr.vmem [resolvable:$true] %s335
          %341 = dma.hbm_to_vmem [thread:$0]  %s1, 1024, %s336, [#allocation6], 64, 64, 4
        $region16: #{tpu_custom_call.1} parent=11 // pred_fallthru
          _
        // Predicated region
        $region17: #{tpu_custom_call.1} parent=11 // pred_check
          %p342 = pneg %p94
        $region18: #{tpu_custom_call.1} parent=11 // pred_check_branch
          %344 = sbr.rel (%p342) target = $region20
        $region19: #{tpu_custom_call.1} parent=11 // pred_region
          _
        $region20: #{tpu_custom_call.1} parent=11 // pred_fallthru
          _
        // Predicated region
        $region21: #{tpu_custom_call.1} parent=11 // pred_check
          %p345 = pneg %p115
        $region22: #{tpu_custom_call.1} parent=11 // pred_check_branch
          %347 = sbr.rel (%p345) target = $region24
        $region23: #{tpu_custom_call.1} parent=11 // pred_region
          %s349 = ssub.s32 1024, 1024
          %350 = vsyncadd [#allocation6], %s349
          %s351 = sshll.u32 [#allocation7], 4
          %s352 = int_to_ptr.vmem [resolvable:$true] %s351
          %357 = dma.hbm_to_vmem [thread:$0]  %s3, 1024, %s352, [#allocation6], 64, 64, 4
        $region24: #{tpu_custom_call.1} parent=11 // pred_fallthru
          _
        // Predicated region
        $region25: #{tpu_custom_call.1} parent=11 // pred_check
          %p358 = pneg %p136
        $region26: #{tpu_custom_call.1} parent=11 // pred_check_branch
          %360 = sbr.rel (%p358) target = $region28
        $region27: #{tpu_custom_call.1} parent=11 // pred_region
          _
        $region28: #{tpu_custom_call.1} parent=11 // pred_fallthru
          _
        // Predicated region
        $region29: #{tpu_custom_call.1} parent=11 // pred_check
          %p361 = pneg %p157
        $region30: #{tpu_custom_call.1} parent=11 // pred_check_branch
          %363 = sbr.rel (%p361) target = $region32
        $region31: #{tpu_custom_call.1} parent=11 // pred_region
          %s365 = ssub.s32 2048, 2048
          %366 = vsyncadd [#allocation9], %s365
          %s367 = sshll.u32 [#allocation8], 4
          %s368 = int_to_ptr.vmem [resolvable:$true] %s367
          %373 = dma.hbm_to_vmem [thread:$0]  %s5, 2048, %s368, [#allocation9], 128, 128, 8
        $region32: #{tpu_custom_call.1} parent=11 // pred_fallthru
          _
        // Predicated region
        $region33: #{tpu_custom_call.1} parent=11 // pred_check
          %p374 = pneg %p178
        $region34: #{tpu_custom_call.1} parent=11 // pred_check_branch
          %376 = sbr.rel (%p374) target = $region36
        $region35: #{tpu_custom_call.1} parent=11 // pred_region
          _
        $region36: #{tpu_custom_call.1} parent=11 // pred_fallthru
          _
        // Predicated region
        $region37: #{tpu_custom_call.1} parent=11 // pred_check
          %p377 = pneg %p225
        $region38: #{tpu_custom_call.1} parent=11 // pred_check_branch
          %379 = sbr.rel (%p377) target = $region40
        $region39: #{tpu_custom_call.1} parent=11 // pred_region
          %s381 = ssub.s32 1024, 1024
          %382 = vsyncadd [#allocation6], %s381
          %s383 = sshll.u32 [#allocation11], 4
          %s384 = int_to_ptr.vmem [resolvable:$true] %s383
          %389 = dma.hbm_to_vmem [thread:$0]  %s8, 1024, %s384, [#allocation6], 64, 64, 4
        $region40: #{tpu_custom_call.1} parent=11 // pred_fallthru
          _
        // Predicated region
        $region41: #{tpu_custom_call.1} parent=11 // pred_check
          %p390 = pneg %p246
        $region42: #{tpu_custom_call.1} parent=11 // pred_check_branch
          %392 = sbr.rel (%p390) target = $region44
        $region43: #{tpu_custom_call.1} parent=11 // pred_region
          _
        $region44: #{tpu_custom_call.1} parent=11 // pred_fallthru
          _
        // Predicated region
        $region45: #{tpu_custom_call.1} parent=11 // pred_check
          %p393 = pneg %p267
        $region46: #{tpu_custom_call.1} parent=11 // pred_check_branch
          %395 = sbr.rel (%p393) target = $region48
        $region47: #{tpu_custom_call.1} parent=11 // pred_region
          %s397 = ssub.s32 1024, 1024
          %398 = vsyncadd [#allocation9], %s397
          %s399 = sshll.u32 [#allocation12], 4
          %s400 = int_to_ptr.vmem [resolvable:$true] %s399
          %405 = dma.hbm_to_vmem [thread:$0]  %s10, 1024, %s400, [#allocation9], 64, 64, 4
        $region48: #{tpu_custom_call.1} parent=11 // pred_fallthru
          _
        // Predicated region
        $region49: #{tpu_custom_call.1} parent=11 // pred_check
          %p406 = pneg %p288
        $region50: #{tpu_custom_call.1} parent=11 // pred_check_branch
          %408 = sbr.rel (%p406) target = $region52
        $region51: #{tpu_custom_call.1} parent=11 // pred_region
          _
        $region52: #{tpu_custom_call.1} parent=11 // pred_fallthru
          _
      $region12: #{tpu_custom_call.1} parent=5 // pred_fallthru
        _
      %p409 = scmp.lt.s32.totalorder %s26, 2
      // Predicated region
      $region53: #{tpu_custom_call.1} parent=5 // pred_check
        %p410 = pneg %p409
      $region54: #{tpu_custom_call.1} parent=5 // pred_check_branch
        %412 = sbr.rel (%p410) target = $region56
      $region55: #{tpu_custom_call.1} parent=5 // pred_region
        // Predicated region
        $region57: #{tpu_custom_call.1} parent=55 // pred_check
          %p413 = pneg %p46
        $region58: #{tpu_custom_call.1} parent=55 // pred_check_branch
          %415 = sbr.rel (%p413) target = $region60
        $region59: #{tpu_custom_call.1} parent=55 // pred_region
          %s416 = sand.u32 %s26, 1
          %s417 = scalar_lea.sflag [#allocation3], %s416
          %s418 = sand.u32 %s36, 1
          %s419 = smul.addr %s418, 64
          %s420 = scalar_lea.vmem [#allocation2], %s419
          %s421 = smul.u32 16, %s26
          %s423 = ssub.s32 1024, 1024
          %424 = vsyncadd %s417, %s423
          %s425 = smul.addr %s421, 64
          %s426 = scalar_lea.hbm %s0, %s425
          %s427 = sshll.u32 %s420, 4
          %s428 = int_to_ptr.vmem [resolvable:$true] %s427
          %433 = dma.hbm_to_vmem [thread:$0]  %s426, 1024, %s428, %s417, 64, 64, 4
        $region60: #{tpu_custom_call.1} parent=55 // pred_fallthru
          _
        // Predicated region
        $region61: #{tpu_custom_call.1} parent=55 // pred_check
          %p434 = pneg %p198
        $region62: #{tpu_custom_call.1} parent=55 // pred_check_branch
          %436 = sbr.rel (%p434) target = $region64
        $region63: #{tpu_custom_call.1} parent=55 // pred_region
          %s437 = sand.u32 %s26, 1
          %s438 = scalar_lea.sflag [#allocation3], %s437
          %s439 = sand.u32 %s188, 1
          %s440 = smul.addr %s439, 128
          %s441 = scalar_lea.vmem [#allocation10], %s440
          %s442 = smul.u32 16, %s26
          %s444 = ssub.s32 2048, 2048
          %445 = vsyncadd %s438, %s444
          %s446 = smul.addr %s442, 128
          %s447 = scalar_lea.hbm %s7, %s446
          %s448 = sshll.u32 %s441, 4
          %s449 = int_to_ptr.vmem [resolvable:$true] %s448
          %454 = dma.hbm_to_vmem [thread:$0]  %s447, 2048, %s449, %s438, 128, 128, 8
        $region64: #{tpu_custom_call.1} parent=55 // pred_fallthru
          _
      $region56: #{tpu_custom_call.1} parent=5 // pred_fallthru
        _
      %p455 = scmp.le.s32.totalorder 1, %s26
      %p456 = scmp.lt.s32.totalorder %s26, 3
      %p457 = pnand %p455, %p456
      %p458 = pneg %p457
      // Predicated region
      $region65: #{tpu_custom_call.1} parent=5 // pred_check
        _
      $region66: #{tpu_custom_call.1} parent=5 // pred_check_branch
        %460 = sbr.rel (%p457) target = $region68
      $region67: #{tpu_custom_call.1} parent=5 // pred_region
        %s461 = ssub.s32 %s26, 1
        %s462 = sand.u32 %s31, 1
        %s463 = scalar_lea.sflag [#allocation3], %s462
        %s464 = sand.u32 %s39, 1
        %s465 = smul.addr %s464, 64
        %s466 = scalar_lea.vmem [#allocation2], %s465
        // Predicated region
        $region69: #{tpu_custom_call.1} parent=67 // pred_check
          %p467 = pneg %p52
        $region70: #{tpu_custom_call.1} parent=67 // pred_check_branch
          %469 = sbr.rel (%p467) target = $region72
        $region71: #{tpu_custom_call.1} parent=67 // pred_region
          %470 = dma.done %s463, 1024
        $region72: #{tpu_custom_call.1} parent=67 // pred_fallthru
          _
        // Predicated region
        $region73: #{tpu_custom_call.1} parent=67 // pred_check
          %p471 = pneg %p73
        $region74: #{tpu_custom_call.1} parent=67 // pred_check_branch
          %473 = sbr.rel (%p471) target = $region76
        $region75: #{tpu_custom_call.1} parent=67 // pred_region
          %474 = dma.done [#allocation6], 1024
        $region76: #{tpu_custom_call.1} parent=67 // pred_fallthru
          _
        // Predicated region
        $region77: #{tpu_custom_call.1} parent=67 // pred_check
          %p475 = pneg %p115
        $region78: #{tpu_custom_call.1} parent=67 // pred_check_branch
          %477 = sbr.rel (%p475) target = $region80
        $region79: #{tpu_custom_call.1} parent=67 // pred_region
          %478 = dma.done [#allocation6], 1024
        $region80: #{tpu_custom_call.1} parent=67 // pred_fallthru
          _
        // Predicated region
        $region81: #{tpu_custom_call.1} parent=67 // pred_check
          %p479 = pneg %p157
        $region82: #{tpu_custom_call.1} parent=67 // pred_check_branch
          %481 = sbr.rel (%p479) target = $region84
        $region83: #{tpu_custom_call.1} parent=67 // pred_region
          %482 = dma.done [#allocation9], 2048
        $region84: #{tpu_custom_call.1} parent=67 // pred_fallthru
          _
        %s483 = sand.u32 %s31, 1
        %s484 = scalar_lea.sflag [#allocation3], %s483
        %s485 = sand.u32 %s191, 1
        %s486 = smul.addr %s485, 128
        %s487 = scalar_lea.vmem [#allocation10], %s486
        // Predicated region
        $region85: #{tpu_custom_call.1} parent=67 // pred_check
          %p488 = pneg %p204
        $region86: #{tpu_custom_call.1} parent=67 // pred_check_branch
          %490 = sbr.rel (%p488) target = $region88
        $region87: #{tpu_custom_call.1} parent=67 // pred_region
          %491 = dma.done %s484, 2048
        $region88: #{tpu_custom_call.1} parent=67 // pred_fallthru
          _
        // Predicated region
        $region89: #{tpu_custom_call.1} parent=67 // pred_check
          %p492 = pneg %p225
        $region90: #{tpu_custom_call.1} parent=67 // pred_check_branch
          %494 = sbr.rel (%p492) target = $region92
        $region91: #{tpu_custom_call.1} parent=67 // pred_region
          %495 = dma.done [#allocation6], 1024
        $region92: #{tpu_custom_call.1} parent=67 // pred_fallthru
          _
        // Predicated region
        $region93: #{tpu_custom_call.1} parent=67 // pred_check
          %p496 = pneg %p267
        $region94: #{tpu_custom_call.1} parent=67 // pred_check_branch
          %498 = sbr.rel (%p496) target = $region96
        $region95: #{tpu_custom_call.1} parent=67 // pred_region
          %499 = dma.done [#allocation9], 1024
        $region96: #{tpu_custom_call.1} parent=67 // pred_fallthru
          _
        %s500 = sand.u32 %s31, 1
        %s501 = scalar_lea.sflag [#allocation3], %s500
        %s502 = sand.u32 %s39, 1
        %s503 = smul.addr %s502, 64
        %s504 = scalar_lea.vmem [#allocation2], %s503
        %p505 = pneg %p52
        %p506 = pneg %p49
        %p507 = pneg %p73
        %p508 = pneg %p70
        %p509 = pneg %p94
        %p510 = pneg %p91
        %p511 = pneg %p115
        %p512 = pneg %p112
        %p513 = pneg %p136
        %p514 = pneg %p133
        %p515 = pneg %p157
        %p516 = pneg %p154
        %p517 = pneg %p178
        %p518 = pneg %p175
        %s519 = sand.u32 %s31, 1
        %s520 = scalar_lea.sflag [#allocation3], %s519
        %s521 = sand.u32 %s191, 1
        %s522 = smul.addr %s521, 128
        %s523 = scalar_lea.vmem [#allocation10], %s522
        %p524 = pneg %p204
        %p525 = pneg %p201
        %p526 = pneg %p225
        %p527 = pneg %p222
        %p528 = pneg %p246
        %p529 = pneg %p243
        %p530 = pneg %p267
        %p531 = pneg %p264
        %p532 = pneg %p288
        %p533 = pneg %p285
        %p534 = pneg %p314
        %p535 = pneg %p311
        %s536 = sand.u32 %s301, 1
        %s537 = scalar_lea.sflag [#allocation4], %s536
        %s538 = sand.u32 %s301, 1
        %s539 = smul.addr %s538, 384
        %s540 = scalar_lea.vmem [#allocation13], %s539
        %s541 = smul.u32 16, %s31
        %s542 = smul.u32 16, %s31
        %s543 = smul.u32 16, %s31
        %v545 = vld [vmem:[%s466] sm:$0xf]
        %v546 = vld [vmem:[%s466 + $0x4] sm:$0xf]
        %v547 = vld [vmem:[%s466 + $0x8] sm:$0xf]
        %v548 = vld [vmem:[%s466 + $0xc] sm:$0xf]
        %v549 = vld [vmem:[%s466 + $0x10] sm:$0xf]
        %v550 = vld [vmem:[%s466 + $0x14] sm:$0xf]
        %v551 = vld [vmem:[%s466 + $0x18] sm:$0xf]
        %v552 = vld [vmem:[%s466 + $0x1c] sm:$0xf]
        %v553 = vld [vmem:[%s466 + $0x20] sm:$0xf]
        %v554 = vld [vmem:[%s466 + $0x24] sm:$0xf]
        %v555 = vld [vmem:[%s466 + $0x28] sm:$0xf]
        %v556 = vld [vmem:[%s466 + $0x2c] sm:$0xf]
        %v557 = vld [vmem:[%s466 + $0x30] sm:$0xf]
        %v558 = vld [vmem:[%s466 + $0x34] sm:$0xf]
        %v559 = vld [vmem:[%s466 + $0x38] sm:$0xf]
        %v560 = vld [vmem:[%s466 + $0x3c] sm:$0xf]
        %v561 = vld [vmem:[#allocation5] sm:$0xf]
        %v562 = vld [vmem:[#allocation5 + $0x4] sm:$0xf]
        %v563 = vld [vmem:[#allocation5 + $0x8] sm:$0xf]
        %v564 = vld [vmem:[#allocation5 + $0xc] sm:$0xf]
        %v565 = vld [vmem:[#allocation5 + $0x10] sm:$0xf]
        %v566 = vld [vmem:[#allocation5 + $0x14] sm:$0xf]
        %v567 = vld [vmem:[#allocation5 + $0x18] sm:$0xf]
        %v568 = vld [vmem:[#allocation5 + $0x1c] sm:$0xf]
        %v569 = vld [vmem:[#allocation5 + $0x20] sm:$0xf]
        %v570 = vld [vmem:[#allocation5 + $0x24] sm:$0xf]
        %v571 = vld [vmem:[#allocation5 + $0x28] sm:$0xf]
        %v572 = vld [vmem:[#allocation5 + $0x2c] sm:$0xf]
        %v573 = vld [vmem:[#allocation5 + $0x30] sm:$0xf]
        %v574 = vld [vmem:[#allocation5 + $0x34] sm:$0xf]
        %v575 = vld [vmem:[#allocation5 + $0x38] sm:$0xf]
        %v576 = vld [vmem:[#allocation5 + $0x3c] sm:$0xf]
        %v577 = vld [vmem:[%s2] sm:$0x1]
        %v579 = vlaneseq
        %v580 = vshrl.u32 %v579, 7
        %v581 = vsub.s32 0, %v580
        %v582 = vrot.slane %v577, %v581
        %v600 = vunpack.c.l.b16 %v545
        %v601 = vunpack.c.l.b16 %v546
        %v602 = vunpack.c.l.b16 %v547
        %v603 = vunpack.c.l.b16 %v548
        %v604 = vunpack.c.l.b16 %v549
        %v605 = vunpack.c.l.b16 %v550
        %v606 = vunpack.c.l.b16 %v551
        %v607 = vunpack.c.l.b16 %v552
        %v608 = vunpack.c.l.b16 %v553
        %v609 = vunpack.c.l.b16 %v554
        %v610 = vunpack.c.l.b16 %v555
        %v611 = vunpack.c.l.b16 %v556
        %v612 = vunpack.c.l.b16 %v557
        %v613 = vunpack.c.l.b16 %v558
        %v614 = vunpack.c.l.b16 %v559
        %v615 = vunpack.c.l.b16 %v560
        %v616 = vpack.c.b16 %v601, %v600
        %v617 = vpack.c.b16 %v603, %v602
        %v618 = vpack.c.b16 %v605, %v604
        %v619 = vpack.c.b16 %v607, %v606
        %v620 = vpack.c.b16 %v609, %v608
        %v621 = vpack.c.b16 %v611, %v610
        %v622 = vpack.c.b16 %v613, %v612
        %v623 = vpack.c.b16 %v615, %v614
        %v648 = vunpack.c.l.b16 %v561
        %v649 = vunpack.c.l.b16 %v562
        %v650 = vunpack.c.l.b16 %v563
        %v651 = vunpack.c.l.b16 %v564
        %v652 = vunpack.c.l.b16 %v565
        %v653 = vunpack.c.l.b16 %v566
        %v654 = vunpack.c.l.b16 %v567
        %v655 = vunpack.c.l.b16 %v568
        %v656 = vunpack.c.l.b16 %v569
        %v657 = vunpack.c.l.b16 %v570
        %v658 = vunpack.c.l.b16 %v571
        %v659 = vunpack.c.l.b16 %v572
        %v660 = vunpack.c.l.b16 %v573
        %v661 = vunpack.c.l.b16 %v574
        %v662 = vunpack.c.l.b16 %v575
        %v663 = vunpack.c.l.b16 %v576
        %v664 = vpack.c.b16 %v649, %v648
        %v665 = vpack.c.b16 %v651, %v650
        %v666 = vpack.c.b16 %v653, %v652
        %v667 = vpack.c.b16 %v655, %v654
        %v668 = vpack.c.b16 %v657, %v656
        %v669 = vpack.c.b16 %v659, %v658
        %v670 = vpack.c.b16 %v661, %v660
        %v671 = vpack.c.b16 %v663, %v662
        %680 = vmatprep.subr.bf16.mxu0 0
        %681 = vmatpush1.bf16.msra.mxu0 %v664
        %682 = vmatprep.subr.bf16.mxu0 0
        %683 = vmatpush1.bf16.msra.mxu0 %v665
        %684 = vmatprep.subr.bf16.mxu0 0
        %685 = vmatpush1.bf16.msra.mxu0 %v666
        %686 = vmatprep.subr.bf16.mxu0 0
        %687 = vmatpush1.bf16.msra.mxu0 %v667
        %688 = vmatprep.subr.bf16.mxu0 0
        %689 = vmatpush1.bf16.msra.mxu0 %v668
        %690 = vmatprep.subr.bf16.mxu0 0
        %691 = vmatpush1.bf16.msra.mxu0 %v669
        %692 = vmatprep.subr.bf16.mxu0 0
        %693 = vmatpush1.bf16.msra.mxu0 %v670
        %694 = vmatprep.subr.bf16.mxu0 0
        %695 = vmatpush1.bf16.msra.mxu0 %v671
        %696 = vmatprep.subr.bf16.mxu0 0
        %697 = vmatpush1.bf16.msra.mxu0 0
        %698 = vmatprep.subr.bf16.mxu0 0
        %699 = vmatpush1.bf16.msra.mxu0 0
        %700 = vmatprep.subr.bf16.mxu0 0
        %701 = vmatpush1.bf16.msra.mxu0 0
        %702 = vmatprep.subr.bf16.mxu0 0
        %703 = vmatpush1.bf16.msra.mxu0 0
        %704 = vmatprep.subr.bf16.mxu0 0
        %705 = vmatpush1.bf16.msra.mxu0 0
        %706 = vmatprep.subr.bf16.mxu0 0
        %707 = vmatpush1.bf16.msra.mxu0 0
        %708 = vmatprep.subr.bf16.mxu0 0
        %709 = vmatpush1.bf16.msra.mxu0 0
        %710 = vmatprep.subr.bf16.mxu0 0
        %711 = vmatpush1.bf16.msra.mxu0 0
        %712 = vmatprep.mubr.bf16.mxu0 0
        %713 = vmatmul.mubr.bf16.gmra.mrb[0].mxu0 %v616
        %v714 = vpop.f32.mrb[0].mxu0
        %v715 = vadd.f32 %v582, %v714
        %v716 = vpop.f32.mrb[0].mxu0
        %v717 = vpop.f32.mrb[0].mxu0
        %v718 = vadd.f32 %v582, %v717
        %v719 = vpop.f32.mrb[0].mxu0
        %720 = vmatprep.mubr.bf16.mxu0 0
        %721 = vmatmul.mubr.bf16.gmra.mrb[0].mxu0 %v617
        %v722 = vpop.f32.mrb[0].mxu0
        %v723 = vadd.f32 %v582, %v722
        %v724 = vpop.f32.mrb[0].mxu0
        %v725 = vpop.f32.mrb[0].mxu0
        %v726 = vadd.f32 %v582, %v725
        %v727 = vpop.f32.mrb[0].mxu0
        %728 = vmatprep.mubr.bf16.mxu0 0
        %729 = vmatmul.mubr.bf16.gmra.mrb[0].mxu0 %v618
        %v730 = vpop.f32.mrb[0].mxu0
        %v731 = vadd.f32 %v582, %v730
        %v732 = vpop.f32.mrb[0].mxu0
        %v733 = vpop.f32.mrb[0].mxu0
        %v734 = vadd.f32 %v582, %v733
        %v735 = vpop.f32.mrb[0].mxu0
        %736 = vmatprep.mubr.bf16.mxu0 0
        %737 = vmatmul.mubr.bf16.gmra.mrb[0].mxu0 %v619
        %v738 = vpop.f32.mrb[0].mxu0
        %v739 = vadd.f32 %v582, %v738
        %v740 = vpop.f32.mrb[0].mxu0
        %v741 = vpop.f32.mrb[0].mxu0
        %v742 = vadd.f32 %v582, %v741
        %v743 = vpop.f32.mrb[0].mxu0
        %744 = vmatprep.mubr.bf16.mxu0 0
        %745 = vmatmul.mubr.bf16.gmra.mrb[0].mxu0 %v620
        %v746 = vpop.f32.mrb[0].mxu0
        %v747 = vadd.f32 %v582, %v746
        %v748 = vpop.f32.mrb[0].mxu0
        %v749 = vpop.f32.mrb[0].mxu0
        %v750 = vadd.f32 %v582, %v749
        %v751 = vpop.f32.mrb[0].mxu0
        %752 = vmatprep.mubr.bf16.mxu0 0
        %753 = vmatmul.mubr.bf16.gmra.mrb[0].mxu0 %v621
        %v754 = vpop.f32.mrb[0].mxu0
        %v755 = vadd.f32 %v582, %v754
        %v756 = vpop.f32.mrb[0].mxu0
        %v757 = vpop.f32.mrb[0].mxu0
        %v758 = vadd.f32 %v582, %v757
        %v759 = vpop.f32.mrb[0].mxu0
        %760 = vmatprep.mubr.bf16.mxu0 0
        %761 = vmatmul.mubr.bf16.gmra.mrb[0].mxu0 %v622
        %v762 = vpop.f32.mrb[0].mxu0
        %v763 = vadd.f32 %v582, %v762
        %v764 = vpop.f32.mrb[0].mxu0
        %v765 = vpop.f32.mrb[0].mxu0
        %v766 = vadd.f32 %v582, %v765
        %v767 = vpop.f32.mrb[0].mxu0
        %768 = vmatprep.mubr.bf16.mxu0 0
        %769 = vmatmul.mubr.bf16.gmra.mrb[0].mxu0 %v623
        %v770 = vpop.f32.mrb[0].mxu0
        %v771 = vadd.f32 %v582, %v770
        %v772 = vpop.f32.mrb[0].mxu0
        %v773 = vpop.f32.mrb[0].mxu0
        %v774 = vadd.f32 %v582, %v773
        %v775 = vpop.f32.mrb[0].mxu0
        %776 = vdwg.mxu0
        %v777 = vmax.f32 %v715, 0.0
        %v778 = vmax.f32 %v718, 0.0
        %v779 = vmax.f32 %v723, 0.0
        %v780 = vmax.f32 %v726, 0.0
        %v781 = vmax.f32 %v731, 0.0
        %v782 = vmax.f32 %v734, 0.0
        %v783 = vmax.f32 %v739, 0.0
        %v784 = vmax.f32 %v742, 0.0
        %v785 = vmax.f32 %v747, 0.0
        %v786 = vmax.f32 %v750, 0.0
        %v787 = vmax.f32 %v755, 0.0
        %v788 = vmax.f32 %v758, 0.0
        %v789 = vmax.f32 %v763, 0.0
        %v790 = vmax.f32 %v766, 0.0
        %v791 = vmax.f32 %v771, 0.0
        %v792 = vmax.f32 %v774, 0.0
        %v793 = vpack.c.bf16 %v778, %v777
        %v794 = vpack.c.bf16 %v780, %v779
        %v795 = vpack.c.bf16 %v782, %v781
        %v796 = vpack.c.bf16 %v784, %v783
        %v797 = vpack.c.bf16 %v786, %v785
        %v798 = vpack.c.bf16 %v788, %v787
        %v799 = vpack.c.bf16 %v790, %v789
        %v800 = vpack.c.bf16 %v792, %v791
        %v801 = vld [vmem:[#allocation7] sm:$0xf]
        %v802 = vld [vmem:[#allocation7 + $0x4] sm:$0xf]
        %v803 = vld [vmem:[#allocation7 + $0x8] sm:$0xf]
        %v804 = vld [vmem:[#allocation7 + $0xc] sm:$0xf]
        %v805 = vld [vmem:[#allocation7 + $0x10] sm:$0xf]
        %v806 = vld [vmem:[#allocation7 + $0x14] sm:$0xf]
        %v807 = vld [vmem:[#allocation7 + $0x18] sm:$0xf]
        %v808 = vld [vmem:[#allocation7 + $0x1c] sm:$0xf]
        %v809 = vld [vmem:[#allocation7 + $0x20] sm:$0xf]
        %v810 = vld [vmem:[#allocation7 + $0x24] sm:$0xf]
        %v811 = vld [vmem:[#allocation7 + $0x28] sm:$0xf]
        %v812 = vld [vmem:[#allocation7 + $0x2c] sm:$0xf]
        %v813 = vld [vmem:[#allocation7 + $0x30] sm:$0xf]
        %v814 = vld [vmem:[#allocation7 + $0x34] sm:$0xf]
        %v815 = vld [vmem:[#allocation7 + $0x38] sm:$0xf]
        %v816 = vld [vmem:[#allocation7 + $0x3c] sm:$0xf]
        %v817 = vld [vmem:[%s4] sm:$0x1]
        %v819 = vlaneseq
        %v820 = vshrl.u32 %v819, 7
        %v821 = vsub.s32 0, %v820
        %v822 = vrot.slane %v817, %v821
        %v840 = vunpack.c.l.b16 %v801
        %v841 = vunpack.c.l.b16 %v802
        %v842 = vunpack.c.l.b16 %v803
        %v843 = vunpack.c.l.b16 %v804
        %v844 = vunpack.c.l.b16 %v805
        %v845 = vunpack.c.l.b16 %v806
        %v846 = vunpack.c.l.b16 %v807
        %v847 = vunpack.c.l.b16 %v808
        %v848 = vunpack.c.l.b16 %v809
        %v849 = vunpack.c.l.b16 %v810
        %v850 = vunpack.c.l.b16 %v811
        %v851 = vunpack.c.l.b16 %v812
        %v852 = vunpack.c.l.b16 %v813
        %v853 = vunpack.c.l.b16 %v814
        %v854 = vunpack.c.l.b16 %v815
        %v855 = vunpack.c.l.b16 %v816
        %v856 = vpack.c.b16 %v841, %v840
        %v857 = vpack.c.b16 %v843, %v842
        %v858 = vpack.c.b16 %v845, %v844
        %v859 = vpack.c.b16 %v847, %v846
        %v860 = vpack.c.b16 %v849, %v848
        %v861 = vpack.c.b16 %v851, %v850
        %v862 = vpack.c.b16 %v853, %v852
        %v863 = vpack.c.b16 %v855, %v854
        %872 = vmatprep.subr.bf16.mxu0 0
        %873 = vmatpush1.bf16.msra.mxu0 %v856
        %874 = vmatprep.subr.bf16.mxu0 0
        %875 = vmatpush1.bf16.msra.mxu0 %v857
        %876 = vmatprep.subr.bf16.mxu0 0
        %877 = vmatpush1.bf16.msra.mxu0 %v858
        %878 = vmatprep.subr.bf16.mxu0 0
        %879 = vmatpush1.bf16.msra.mxu0 %v859
        %880 = vmatprep.subr.bf16.mxu0 0
        %881 = vmatpush1.bf16.msra.mxu0 %v860
        %882 = vmatprep.subr.bf16.mxu0 0
        %883 = vmatpush1.bf16.msra.mxu0 %v861
        %884 = vmatprep.subr.bf16.mxu0 0
        %885 = vmatpush1.bf16.msra.mxu0 %v862
        %886 = vmatprep.subr.bf16.mxu0 0
        %887 = vmatpush1.bf16.msra.mxu0 %v863
        %888 = vmatprep.subr.bf16.mxu0 0
        %889 = vmatpush1.bf16.msra.mxu0 0
        %890 = vmatprep.subr.bf16.mxu0 0
        %891 = vmatpush1.bf16.msra.mxu0 0
        %892 = vmatprep.subr.bf16.mxu0 0
        %893 = vmatpush1.bf16.msra.mxu0 0
        %894 = vmatprep.subr.bf16.mxu0 0
        %895 = vmatpush1.bf16.msra.mxu0 0
        %896 = vmatprep.subr.bf16.mxu0 0
        %897 = vmatpush1.bf16.msra.mxu0 0
        %898 = vmatprep.subr.bf16.mxu0 0
        %899 = vmatpush1.bf16.msra.mxu0 0
        %900 = vmatprep.subr.bf16.mxu0 0
        %901 = vmatpush1.bf16.msra.mxu0 0
        %902 = vmatprep.subr.bf16.mxu0 0
        %903 = vmatpush1.bf16.msra.mxu0 0
        %904 = vmatprep.mubr.bf16.mxu0 0
        %905 = vmatmul.mubr.bf16.gmra.mrb[0].mxu0 %v793
        %v906 = vpop.f32.mrb[0].mxu0
        %v907 = vadd.f32 %v822, %v906
        %v908 = vpop.f32.mrb[0].mxu0
        %v909 = vpop.f32.mrb[0].mxu0
        %v910 = vadd.f32 %v822, %v909
        %v911 = vpop.f32.mrb[0].mxu0
        %912 = vmatprep.mubr.bf16.mxu0 0
        %913 = vmatmul.mubr.bf16.gmra.mrb[0].mxu0 %v794
        %v914 = vpop.f32.mrb[0].mxu0
        %v915 = vadd.f32 %v822, %v914
        %v916 = vpop.f32.mrb[0].mxu0
        %v917 = vpop.f32.mrb[0].mxu0
        %v918 = vadd.f32 %v822, %v917
        %v919 = vpop.f32.mrb[0].mxu0
        %920 = vmatprep.mubr.bf16.mxu0 0
        %921 = vmatmul.mubr.bf16.gmra.mrb[0].mxu0 %v795
        %v922 = vpop.f32.mrb[0].mxu0
        %v923 = vadd.f32 %v822, %v922
        %v924 = vpop.f32.mrb[0].mxu0
        %v925 = vpop.f32.mrb[0].mxu0
        %v926 = vadd.f32 %v822, %v925
        %v927 = vpop.f32.mrb[0].mxu0
        %928 = vmatprep.mubr.bf16.mxu0 0
        %929 = vmatmul.mubr.bf16.gmra.mrb[0].mxu0 %v796
        %v930 = vpop.f32.mrb[0].mxu0
        %v931 = vadd.f32 %v822, %v930
        %v932 = vpop.f32.mrb[0].mxu0
        %v933 = vpop.f32.mrb[0].mxu0
        %v934 = vadd.f32 %v822, %v933
        %v935 = vpop.f32.mrb[0].mxu0
        %936 = vmatprep.mubr.bf16.mxu0 0
        %937 = vmatmul.mubr.bf16.gmra.mrb[0].mxu0 %v797
        %v938 = vpop.f32.mrb[0].mxu0
        %v939 = vadd.f32 %v822, %v938
        %v940 = vpop.f32.mrb[0].mxu0
        %v941 = vpop.f32.mrb[0].mxu0
        %v942 = vadd.f32 %v822, %v941
        %v943 = vpop.f32.mrb[0].mxu0
        %944 = vmatprep.mubr.bf16.mxu0 0
        %945 = vmatmul.mubr.bf16.gmra.mrb[0].mxu0 %v798
        %v946 = vpop.f32.mrb[0].mxu0
        %v947 = vadd.f32 %v822, %v946
        %v948 = vpop.f32.mrb[0].mxu0
        %v949 = vpop.f32.mrb[0].mxu0
        %v950 = vadd.f32 %v822, %v949
        %v951 = vpop.f32.mrb[0].mxu0
        %952 = vmatprep.mubr.bf16.mxu0 0
        %953 = vmatmul.mubr.bf16.gmra.mrb[0].mxu0 %v799
        %v954 = vpop.f32.mrb[0].mxu0
        %v955 = vadd.f32 %v822, %v954
        %v956 = vpop.f32.mrb[0].mxu0
        %v957 = vpop.f32.mrb[0].mxu0
        %v958 = vadd.f32 %v822, %v957
        %v959 = vpop.f32.mrb[0].mxu0
        %960 = vmatprep.mubr.bf16.mxu0 0
        %961 = vmatmul.mubr.bf16.gmra.mrb[0].mxu0 %v800
        %v962 = vpop.f32.mrb[0].mxu0
        %v963 = vadd.f32 %v822, %v962
        %v964 = vpop.f32.mrb[0].mxu0
        %v965 = vpop.f32.mrb[0].mxu0
        %v966 = vadd.f32 %v822, %v965
        %v967 = vpop.f32.mrb[0].mxu0
        %968 = vdwg.mxu0
        %v969 = vmax.f32 %v907, 0.0
        %v970 = vmax.f32 %v910, 0.0
        %v971 = vmax.f32 %v915, 0.0
        %v972 = vmax.f32 %v918, 0.0
        %v973 = vmax.f32 %v923, 0.0
        %v974 = vmax.f32 %v926, 0.0
        %v975 = vmax.f32 %v931, 0.0
        %v976 = vmax.f32 %v934, 0.0
        %v977 = vmax.f32 %v939, 0.0
        %v978 = vmax.f32 %v942, 0.0
        %v979 = vmax.f32 %v947, 0.0
        %v980 = vmax.f32 %v950, 0.0
        %v981 = vmax.f32 %v955, 0.0
        %v982 = vmax.f32 %v958, 0.0
        %v983 = vmax.f32 %v963, 0.0
        %v984 = vmax.f32 %v966, 0.0
        %v985 = vpack.c.bf16 %v970, %v969
        %v986 = vpack.c.bf16 %v972, %v971
        %v987 = vpack.c.bf16 %v974, %v973
        %v988 = vpack.c.bf16 %v976, %v975
        %v989 = vpack.c.bf16 %v978, %v977
        %v990 = vpack.c.bf16 %v980, %v979
        %v991 = vpack.c.bf16 %v982, %v981
        %v992 = vpack.c.bf16 %v984, %v983
        %v993 = vld [vmem:[#allocation8] sm:$0xff]
        %v994 = vld [vmem:[#allocation8 + $0x8] sm:$0xff]
        %v995 = vld [vmem:[#allocation8 + $0x10] sm:$0xff]
        %v996 = vld [vmem:[#allocation8 + $0x18] sm:$0xff]
        %v997 = vld [vmem:[#allocation8 + $0x20] sm:$0xff]
        %v998 = vld [vmem:[#allocation8 + $0x28] sm:$0xff]
        %v999 = vld [vmem:[#allocation8 + $0x30] sm:$0xff]
        %v1000 = vld [vmem:[#allocation8 + $0x38] sm:$0xff]
        %v1001 = vld [vmem:[#allocation8 + $0x40] sm:$0xff]
        %v1002 = vld [vmem:[#allocation8 + $0x48] sm:$0xff]
        %v1003 = vld [vmem:[#allocation8 + $0x50] sm:$0xff]
        %v1004 = vld [vmem:[#allocation8 + $0x58] sm:$0xff]
        %v1005 = vld [vmem:[#allocation8 + $0x60] sm:$0xff]
        %v1006 = vld [vmem:[#allocation8 + $0x68] sm:$0xff]
        %v1007 = vld [vmem:[#allocation8 + $0x70] sm:$0xff]
        %v1008 = vld [vmem:[#allocation8 + $0x78] sm:$0xff]
        %v1009 = vld [vmem:[%s6] sm:$0x3]
        %v1011 = vlaneseq
        %v1012 = vshrl.u32 %v1011, 7
        %v1013 = vsub.s32 0, %v1012
        %v1014 = vrot.slane %v1009, %v1013
        %v1015 = vlaneseq
        %v1016 = vshrl.u32 %v1015, 7
        %v1017 = vsub.s32 1, %v1016
        %v1018 = vrot.slane %v1009, %v1017
        %v1037 = vunpack.c.l.b16 %v993
        %v1038 = vunpack.c.h.b16 %v993
        %v1039 = vunpack.c.l.b16 %v994
        %v1040 = vunpack.c.h.b16 %v994
        %v1041 = vunpack.c.l.b16 %v995
        %v1042 = vunpack.c.h.b16 %v995
        %v1043 = vunpack.c.l.b16 %v996
        %v1044 = vunpack.c.h.b16 %v996
        %v1045 = vunpack.c.l.b16 %v997
        %v1046 = vunpack.c.h.b16 %v997
        %v1047 = vunpack.c.l.b16 %v998
        %v1048 = vunpack.c.h.b16 %v998
        %v1049 = vunpack.c.l.b16 %v999
        %v1050 = vunpack.c.h.b16 %v999
        %v1051 = vunpack.c.l.b16 %v1000
        %v1052 = vunpack.c.h.b16 %v1000
        %v1053 = vunpack.c.l.b16 %v1001
        %v1054 = vunpack.c.h.b16 %v1001
        %v1055 = vunpack.c.l.b16 %v1002
        %v1056 = vunpack.c.h.b16 %v1002
        %v1057 = vunpack.c.l.b16 %v1003
        %v1058 = vunpack.c.h.b16 %v1003
        %v1059 = vunpack.c.l.b16 %v1004
        %v1060 = vunpack.c.h.b16 %v1004
        %v1061 = vunpack.c.l.b16 %v1005
        %v1062 = vunpack.c.h.b16 %v1005
        %v1063 = vunpack.c.l.b16 %v1006
        %v1064 = vunpack.c.h.b16 %v1006
        %v1065 = vunpack.c.l.b16 %v1007
        %v1066 = vunpack.c.h.b16 %v1007
        %v1067 = vunpack.c.l.b16 %v1008
        %v1068 = vunpack.c.h.b16 %v1008
        %v1069 = vpack.c.b16 %v1039, %v1037
        %v1070 = vpack.c.b16 %v1040, %v1038
        %v1071 = vpack.c.b16 %v1043, %v1041
        %v1072 = vpack.c.b16 %v1044, %v1042
        %v1073 = vpack.c.b16 %v1047, %v1045
        %v1074 = vpack.c.b16 %v1048, %v1046
        %v1075 = vpack.c.b16 %v1051, %v1049
        %v1076 = vpack.c.b16 %v1052, %v1050
        %v1077 = vpack.c.b16 %v1055, %v1053
        %v1078 = vpack.c.b16 %v1056, %v1054
        %v1079 = vpack.c.b16 %v1059, %v1057
        %v1080 = vpack.c.b16 %v1060, %v1058
        %v1081 = vpack.c.b16 %v1063, %v1061
        %v1082 = vpack.c.b16 %v1064, %v1062
        %v1083 = vpack.c.b16 %v1067, %v1065
        %v1084 = vpack.c.b16 %v1068, %v1066
        %1101 = vmatprep.subr.bf16.mxu0 %v1070
        %1102 = vmatpush1.bf16.msra.mxu0 %v1069
        %1103 = vmatprep.subr.bf16.mxu0 %v1072
        %1104 = vmatpush1.bf16.msra.mxu0 %v1071
        %1105 = vmatprep.subr.bf16.mxu0 %v1074
        %1106 = vmatpush1.bf16.msra.mxu0 %v1073
        %1107 = vmatprep.subr.bf16.mxu0 %v1076
        %1108 = vmatpush1.bf16.msra.mxu0 %v1075
        %1109 = vmatprep.subr.bf16.mxu0 %v1078
        %1110 = vmatpush1.bf16.msra.mxu0 %v1077
        %1111 = vmatprep.subr.bf16.mxu0 %v1080
        %1112 = vmatpush1.bf16.msra.mxu0 %v1079
        %1113 = vmatprep.subr.bf16.mxu0 %v1082
        %1114 = vmatpush1.bf16.msra.mxu0 %v1081
        %1115 = vmatprep.subr.bf16.mxu0 %v1084
        %1116 = vmatpush1.bf16.msra.mxu0 %v1083
        %1117 = vmatprep.subr.bf16.mxu0 0
        %1118 = vmatpush1.bf16.msra.mxu0 0
        %1119 = vmatprep.subr.bf16.mxu0 0
        %1120 = vmatpush1.bf16.msra.mxu0 0
        %1121 = vmatprep.subr.bf16.mxu0 0
        %1122 = vmatpush1.bf16.msra.mxu0 0
        %1123 = vmatprep.subr.bf16.mxu0 0
        %1124 = vmatpush1.bf16.msra.mxu0 0
        %1125 = vmatprep.subr.bf16.mxu0 0
        %1126 = vmatpush1.bf16.msra.mxu0 0
        %1127 = vmatprep.subr.bf16.mxu0 0
        %1128 = vmatpush1.bf16.msra.mxu0 0
        %1129 = vmatprep.subr.bf16.mxu0 0
        %1130 = vmatpush1.bf16.msra.mxu0 0
        %1131 = vmatprep.subr.bf16.mxu0 0
        %1132 = vmatpush1.bf16.msra.mxu0 0
        %1133 = vmatprep.mubr.bf16.mxu0 0
        %1134 = vmatmul.mubr.bf16.gmra.mrb[0].mxu0 %v985
        %v1135 = vpop.f32.mrb[0].mxu0
        %v1136 = vadd.f32 %v1014, %v1135
        %v1137 = vpop.f32.mrb[0].mxu0
        %v1138 = vadd.f32 %v1018, %v1137
        %v1139 = vpop.f32.mrb[0].mxu0
        %v1140 = vadd.f32 %v1014, %v1139
        %v1141 = vpop.f32.mrb[0].mxu0
        %v1142 = vadd.f32 %v1018, %v1141
        %1143 = vmatprep.mubr.bf16.mxu0 0
        %1144 = vmatmul.mubr.bf16.gmra.mrb[0].mxu0 %v986
        %v1145 = vpop.f32.mrb[0].mxu0
        %v1146 = vadd.f32 %v1014, %v1145
        %v1147 = vpop.f32.mrb[0].mxu0
        %v1148 = vadd.f32 %v1018, %v1147
        %v1149 = vpop.f32.mrb[0].mxu0
        %v1150 = vadd.f32 %v1014, %v1149
        %v1151 = vpop.f32.mrb[0].mxu0
        %v1152 = vadd.f32 %v1018, %v1151
        %1153 = vmatprep.mubr.bf16.mxu0 0
        %1154 = vmatmul.mubr.bf16.gmra.mrb[0].mxu0 %v987
        %v1155 = vpop.f32.mrb[0].mxu0
        %v1156 = vadd.f32 %v1014, %v1155
        %v1157 = vpop.f32.mrb[0].mxu0
        %v1158 = vadd.f32 %v1018, %v1157
        %v1159 = vpop.f32.mrb[0].mxu0
        %v1160 = vadd.f32 %v1014, %v1159
        %v1161 = vpop.f32.mrb[0].mxu0
        %v1162 = vadd.f32 %v1018, %v1161
        %1163 = vmatprep.mubr.bf16.mxu0 0
        %1164 = vmatmul.mubr.bf16.gmra.mrb[0].mxu0 %v988
        %v1165 = vpop.f32.mrb[0].mxu0
        %v1166 = vadd.f32 %v1014, %v1165
        %v1167 = vpop.f32.mrb[0].mxu0
        %v1168 = vadd.f32 %v1018, %v1167
        %v1169 = vpop.f32.mrb[0].mxu0
        %v1170 = vadd.f32 %v1014, %v1169
        %v1171 = vpop.f32.mrb[0].mxu0
        %v1172 = vadd.f32 %v1018, %v1171
        %1173 = vmatprep.mubr.bf16.mxu0 0
        %1174 = vmatmul.mubr.bf16.gmra.mrb[0].mxu0 %v989
        %v1175 = vpop.f32.mrb[0].mxu0
        %v1176 = vadd.f32 %v1014, %v1175
        %v1177 = vpop.f32.mrb[0].mxu0
        %v1178 = vadd.f32 %v1018, %v1177
        %v1179 = vpop.f32.mrb[0].mxu0
        %v1180 = vadd.f32 %v1014, %v1179
        %v1181 = vpop.f32.mrb[0].mxu0
        %v1182 = vadd.f32 %v1018, %v1181
        %1183 = vmatprep.mubr.bf16.mxu0 0
        %1184 = vmatmul.mubr.bf16.gmra.mrb[0].mxu0 %v990
        %v1185 = vpop.f32.mrb[0].mxu0
        %v1186 = vadd.f32 %v1014, %v1185
        %v1187 = vpop.f32.mrb[0].mxu0
        %v1188 = vadd.f32 %v1018, %v1187
        %v1189 = vpop.f32.mrb[0].mxu0
        %v1190 = vadd.f32 %v1014, %v1189
        %v1191 = vpop.f32.mrb[0].mxu0
        %v1192 = vadd.f32 %v1018, %v1191
        %1193 = vmatprep.mubr.bf16.mxu0 0
        %1194 = vmatmul.mubr.bf16.gmra.mrb[0].mxu0 %v991
        %v1195 = vpop.f32.mrb[0].mxu0
        %v1196 = vadd.f32 %v1014, %v1195
        %v1197 = vpop.f32.mrb[0].mxu0
        %v1198 = vadd.f32 %v1018, %v1197
        %v1199 = vpop.f32.mrb[0].mxu0
        %v1200 = vadd.f32 %v1014, %v1199
        %v1201 = vpop.f32.mrb[0].mxu0
        %v1202 = vadd.f32 %v1018, %v1201
        %1203 = vmatprep.mubr.bf16.mxu0 0
        %1204 = vmatmul.mubr.bf16.gmra.mrb[0].mxu0 %v992
        %v1205 = vpop.f32.mrb[0].mxu0
        %v1206 = vadd.f32 %v1014, %v1205
        %v1207 = vpop.f32.mrb[0].mxu0
        %v1208 = vadd.f32 %v1018, %v1207
        %v1209 = vpop.f32.mrb[0].mxu0
        %v1210 = vadd.f32 %v1014, %v1209
        %v1211 = vpop.f32.mrb[0].mxu0
        %v1212 = vadd.f32 %v1018, %v1211
        %1213 = vdwg.mxu0
        %v1214 = vmax.f32 %v1136, 0.0
        %v1215 = vmax.f32 %v1138, 0.0
        %v1216 = vmax.f32 %v1140, 0.0
        %v1217 = vmax.f32 %v1142, 0.0
        %v1218 = vmax.f32 %v1146, 0.0
        %v1219 = vmax.f32 %v1148, 0.0
        %v1220 = vmax.f32 %v1150, 0.0
        %v1221 = vmax.f32 %v1152, 0.0
        %v1222 = vmax.f32 %v1156, 0.0
        %v1223 = vmax.f32 %v1158, 0.0
        %v1224 = vmax.f32 %v1160, 0.0
        %v1225 = vmax.f32 %v1162, 0.0
        %v1226 = vmax.f32 %v1166, 0.0
        %v1227 = vmax.f32 %v1168, 0.0
        %v1228 = vmax.f32 %v1170, 0.0
        %v1229 = vmax.f32 %v1172, 0.0
        %v1230 = vmax.f32 %v1176, 0.0
        %v1231 = vmax.f32 %v1178, 0.0
        %v1232 = vmax.f32 %v1180, 0.0
        %v1233 = vmax.f32 %v1182, 0.0
        %v1234 = vmax.f32 %v1186, 0.0
        %v1235 = vmax.f32 %v1188, 0.0
        %v1236 = vmax.f32 %v1190, 0.0
        %v1237 = vmax.f32 %v1192, 0.0
        %v1238 = vmax.f32 %v1196, 0.0
        %v1239 = vmax.f32 %v1198, 0.0
        %v1240 = vmax.f32 %v1200, 0.0
        %v1241 = vmax.f32 %v1202, 0.0
        %v1242 = vmax.f32 %v1206, 0.0
        %v1243 = vmax.f32 %v1208, 0.0
        %v1244 = vmax.f32 %v1210, 0.0
        %v1245 = vmax.f32 %v1212, 0.0
        %v1246 = vld [vmem:[%s487] sm:$0xff]
        %v1247 = vld [vmem:[%s487 + $0x8] sm:$0xff]
        %v1248 = vld [vmem:[%s487 + $0x10] sm:$0xff]
        %v1249 = vld [vmem:[%s487 + $0x18] sm:$0xff]
        %v1250 = vld [vmem:[%s487 + $0x20] sm:$0xff]
        %v1251 = vld [vmem:[%s487 + $0x28] sm:$0xff]
        %v1252 = vld [vmem:[%s487 + $0x30] sm:$0xff]
        %v1253 = vld [vmem:[%s487 + $0x38] sm:$0xff]
        %v1254 = vld [vmem:[%s487 + $0x40] sm:$0xff]
        %v1255 = vld [vmem:[%s487 + $0x48] sm:$0xff]
        %v1256 = vld [vmem:[%s487 + $0x50] sm:$0xff]
        %v1257 = vld [vmem:[%s487 + $0x58] sm:$0xff]
        %v1258 = vld [vmem:[%s487 + $0x60] sm:$0xff]
        %v1259 = vld [vmem:[%s487 + $0x68] sm:$0xff]
        %v1260 = vld [vmem:[%s487 + $0x70] sm:$0xff]
        %v1261 = vld [vmem:[%s487 + $0x78] sm:$0xff]
        %1262 = vst [vmem:[%s540 + $0x8] sm:$0xff] %v1214
        %1263 = vst [vmem:[%s540 + $0x10] sm:$0xff] %v1215
        %1264 = vst [vmem:[%s540 + $0x20] sm:$0xff] %v1216
        %1265 = vst [vmem:[%s540 + $0x28] sm:$0xff] %v1217
        %1266 = vst [vmem:[%s540 + $0x38] sm:$0xff] %v1218
        %1267 = vst [vmem:[%s540 + $0x40] sm:$0xff] %v1219
        %1268 = vst [vmem:[%s540 + $0x50] sm:$0xff] %v1220
        %1269 = vst [vmem:[%s540 + $0x58] sm:$0xff] %v1221
        %1270 = vst [vmem:[%s540 + $0x68] sm:$0xff] %v1222
        %1271 = vst [vmem:[%s540 + $0x70] sm:$0xff] %v1223
        %1272 = vst [vmem:[%s540 + $0x80] sm:$0xff] %v1224
        %1273 = vst [vmem:[%s540 + $0x88] sm:$0xff] %v1225
        %1274 = vst [vmem:[%s540 + $0x98] sm:$0xff] %v1226
        %1275 = vst [vmem:[%s540 + $0xa0] sm:$0xff] %v1227
        %1276 = vst [vmem:[%s540 + $0xb0] sm:$0xff] %v1228
        %1277 = vst [vmem:[%s540 + $0xb8] sm:$0xff] %v1229
        %1278 = vst [vmem:[%s540 + $0xc8] sm:$0xff] %v1230
        %1279 = vst [vmem:[%s540 + $0xd0] sm:$0xff] %v1231
        %1280 = vst [vmem:[%s540 + $0xe0] sm:$0xff] %v1232
        %1281 = vst [vmem:[%s540 + $0xe8] sm:$0xff] %v1233
        %1282 = vst [vmem:[%s540 + $0xf8] sm:$0xff] %v1234
        %1283 = vst [vmem:[%s540 + $0x100] sm:$0xff] %v1235
        %1284 = vst [vmem:[%s540 + $0x110] sm:$0xff] %v1236
        %1285 = vst [vmem:[%s540 + $0x118] sm:$0xff] %v1237
        %1286 = vst [vmem:[%s540 + $0x128] sm:$0xff] %v1238
        %1287 = vst [vmem:[%s540 + $0x130] sm:$0xff] %v1239
        %1288 = vst [vmem:[%s540 + $0x140] sm:$0xff] %v1240
        %1289 = vst [vmem:[%s540 + $0x148] sm:$0xff] %v1241
        %1290 = vst [vmem:[%s540 + $0x158] sm:$0xff] %v1242
        %1291 = vst [vmem:[%s540 + $0x160] sm:$0xff] %v1243
        %1292 = vst [vmem:[%s540 + $0x170] sm:$0xff] %v1244
        %1293 = vst [vmem:[%s540 + $0x178] sm:$0xff] %v1245
        %v1294 = vmul.f32 %v1215, 0.5
        %v1295 = vmul.f32 %v1217, 0.5
        %v1296 = vmul.f32 %v1219, 0.5
        %v1297 = vmul.f32 %v1221, 0.5
        %v1298 = vmul.f32 %v1223, 0.5
        %v1299 = vmul.f32 %v1225, 0.5
        %v1300 = vmul.f32 %v1227, 0.5
        %v1301 = vmul.f32 %v1229, 0.5
        %v1302 = vmul.f32 %v1231, 0.5
        %v1303 = vmul.f32 %v1233, 0.5
        %v1304 = vmul.f32 %v1235, 0.5
        %v1305 = vmul.f32 %v1237, 0.5
        %v1306 = vmul.f32 %v1239, 0.5
        %v1307 = vmul.f32 %v1241, 0.5
        %v1308 = vmul.f32 %v1243, 0.5
        %v1309 = vmul.f32 %v1245, 0.5
        %v1310 = vmul.f32 %v1294, 1.442695
        %v1311 = vpow.pop %v1310
        %v1312 = vmul.f32 %v1295, 1.442695
        %v1313 = vpow.pop %v1312
        %v1314 = vmul.f32 %v1296, 1.442695
        %v1315 = vpow.pop %v1314
        %v1316 = vmul.f32 %v1297, 1.442695
        %v1317 = vpow.pop %v1316
        %v1318 = vmul.f32 %v1298, 1.442695
        %v1319 = vpow.pop %v1318
        %v1320 = vmul.f32 %v1299, 1.442695
        %v1321 = vpow.pop %v1320
        %v1322 = vmul.f32 %v1300, 1.442695
        %v1323 = vpow.pop %v1322
        %v1324 = vmul.f32 %v1301, 1.442695
        %v1325 = vpow.pop %v1324
        %v1326 = vmul.f32 %v1302, 1.442695
        %v1327 = vpow.pop %v1326
        %v1328 = vmul.f32 %v1303, 1.442695
        %v1329 = vpow.pop %v1328
        %v1330 = vmul.f32 %v1304, 1.442695
        %v1331 = vpow.pop %v1330
        %v1332 = vmul.f32 %v1305, 1.442695
        %v1333 = vpow.pop %v1332
        %v1334 = vmul.f32 %v1306, 1.442695
        %v1335 = vpow.pop %v1334
        %v1336 = vmul.f32 %v1307, 1.442695
        %v1337 = vpow.pop %v1336
        %v1338 = vmul.f32 %v1308, 1.442695
        %v1339 = vpow.pop %v1338
        %v1340 = vmul.f32 %v1309, 1.442695
        %v1341 = vpow.pop %v1340
        %v1342 = vmul.f32 %v1246, %v1311
        %v1343 = vmul.f32 %v1247, %v1313
        %v1344 = vmul.f32 %v1248, %v1315
        %v1345 = vmul.f32 %v1249, %v1317
        %v1346 = vmul.f32 %v1250, %v1319
        %v1347 = vmul.f32 %v1251, %v1321
        %v1348 = vmul.f32 %v1252, %v1323
        %v1349 = vmul.f32 %v1253, %v1325
        %v1350 = vmul.f32 %v1254, %v1327
        %v1351 = vmul.f32 %v1255, %v1329
        %v1352 = vmul.f32 %v1256, %v1331
        %v1353 = vmul.f32 %v1257, %v1333
        %v1354 = vmul.f32 %v1258, %v1335
        %v1355 = vmul.f32 %v1259, %v1337
        %v1356 = vmul.f32 %v1260, %v1339
        %v1357 = vmul.f32 %v1261, %v1341
        %v1358 = vadd.f32 %v1214, %v1342
        %v1359 = vadd.f32 %v1216, %v1343
        %v1360 = vadd.f32 %v1218, %v1344
        %v1361 = vadd.f32 %v1220, %v1345
        %v1362 = vadd.f32 %v1222, %v1346
        %v1363 = vadd.f32 %v1224, %v1347
        %v1364 = vadd.f32 %v1226, %v1348
        %v1365 = vadd.f32 %v1228, %v1349
        %v1366 = vadd.f32 %v1230, %v1350
        %v1367 = vadd.f32 %v1232, %v1351
        %v1368 = vadd.f32 %v1234, %v1352
        %v1369 = vadd.f32 %v1236, %v1353
        %v1370 = vadd.f32 %v1238, %v1354
        %v1371 = vadd.f32 %v1240, %v1355
        %v1372 = vadd.f32 %v1242, %v1356
        %v1373 = vadd.f32 %v1244, %v1357
        %v1374 = vpack.c.bf16 %v1359, %v1358
        %v1375 = vpack.c.bf16 %v1361, %v1360
        %v1376 = vpack.c.bf16 %v1363, %v1362
        %v1377 = vpack.c.bf16 %v1365, %v1364
        %v1378 = vpack.c.bf16 %v1367, %v1366
        %v1379 = vpack.c.bf16 %v1369, %v1368
        %v1380 = vpack.c.bf16 %v1371, %v1370
        %v1381 = vpack.c.bf16 %v1373, %v1372
        %v1382 = vld [vmem:[#allocation11] sm:$0xf]
        %v1383 = vld [vmem:[#allocation11 + $0x4] sm:$0xf]
        %v1384 = vld [vmem:[#allocation11 + $0x8] sm:$0xf]
        %v1385 = vld [vmem:[#allocation11 + $0xc] sm:$0xf]
        %v1386 = vld [vmem:[#allocation11 + $0x10] sm:$0xf]
        %v1387 = vld [vmem:[#allocation11 + $0x14] sm:$0xf]
        %v1388 = vld [vmem:[#allocation11 + $0x18] sm:$0xf]
        %v1389 = vld [vmem:[#allocation11 + $0x1c] sm:$0xf]
        %v1390 = vld [vmem:[#allocation11 + $0x20] sm:$0xf]
        %v1391 = vld [vmem:[#allocation11 + $0x24] sm:$0xf]
        %v1392 = vld [vmem:[#allocation11 + $0x28] sm:$0xf]
        %v1393 = vld [vmem:[#allocation11 + $0x2c] sm:$0xf]
        %v1394 = vld [vmem:[#allocation11 + $0x30] sm:$0xf]
        %v1395 = vld [vmem:[#allocation11 + $0x34] sm:$0xf]
        %v1396 = vld [vmem:[#allocation11 + $0x38] sm:$0xf]
        %v1397 = vld [vmem:[#allocation11 + $0x3c] sm:$0xf]
        %v1398 = vld [vmem:[%s9] sm:$0x1]
        %v1400 = vlaneseq
        %v1401 = vshrl.u32 %v1400, 7
        %v1402 = vsub.s32 0, %v1401
        %v1403 = vrot.slane %v1398, %v1402
        %v1421 = vunpack.c.l.b16 %v1382
        %v1422 = vunpack.c.l.b16 %v1383
        %v1423 = vunpack.c.l.b16 %v1384
        %v1424 = vunpack.c.l.b16 %v1385
        %v1425 = vunpack.c.l.b16 %v1386
        %v1426 = vunpack.c.l.b16 %v1387
        %v1427 = vunpack.c.l.b16 %v1388
        %v1428 = vunpack.c.l.b16 %v1389
        %v1429 = vunpack.c.l.b16 %v1390
        %v1430 = vunpack.c.l.b16 %v1391
        %v1431 = vunpack.c.l.b16 %v1392
        %v1432 = vunpack.c.l.b16 %v1393
        %v1433 = vunpack.c.l.b16 %v1394
        %v1434 = vunpack.c.l.b16 %v1395
        %v1435 = vunpack.c.l.b16 %v1396
        %v1436 = vunpack.c.l.b16 %v1397
        %v1437 = vpack.c.b16 %v1422, %v1421
        %v1438 = vpack.c.b16 %v1424, %v1423
        %v1439 = vpack.c.b16 %v1426, %v1425
        %v1440 = vpack.c.b16 %v1428, %v1427
        %v1441 = vpack.c.b16 %v1430, %v1429
        %v1442 = vpack.c.b16 %v1432, %v1431
        %v1443 = vpack.c.b16 %v1434, %v1433
        %v1444 = vpack.c.b16 %v1436, %v1435
        %1453 = vmatprep.subr.bf16.mxu0 0
        %1454 = vmatpush1.bf16.msra.mxu0 %v1437
        %1455 = vmatprep.subr.bf16.mxu0 0
        %1456 = vmatpush1.bf16.msra.mxu0 %v1438
        %1457 = vmatprep.subr.bf16.mxu0 0
        %1458 = vmatpush1.bf16.msra.mxu0 %v1439
        %1459 = vmatprep.subr.bf16.mxu0 0
        %1460 = vmatpush1.bf16.msra.mxu0 %v1440
        %1461 = vmatprep.subr.bf16.mxu0 0
        %1462 = vmatpush1.bf16.msra.mxu0 %v1441
        %1463 = vmatprep.subr.bf16.mxu0 0
        %1464 = vmatpush1.bf16.msra.mxu0 %v1442
        %1465 = vmatprep.subr.bf16.mxu0 0
        %1466 = vmatpush1.bf16.msra.mxu0 %v1443
        %1467 = vmatprep.subr.bf16.mxu0 0
        %1468 = vmatpush1.bf16.msra.mxu0 %v1444
        %1469 = vmatprep.subr.bf16.mxu0 0
        %1470 = vmatpush1.bf16.msra.mxu0 0
        %1471 = vmatprep.subr.bf16.mxu0 0
        %1472 = vmatpush1.bf16.msra.mxu0 0
        %1473 = vmatprep.subr.bf16.mxu0 0
        %1474 = vmatpush1.bf16.msra.mxu0 0
        %1475 = vmatprep.subr.bf16.mxu0 0
        %1476 = vmatpush1.bf16.msra.mxu0 0
        %1477 = vmatprep.subr.bf16.mxu0 0
        %1478 = vmatpush1.bf16.msra.mxu0 0
        %1479 = vmatprep.subr.bf16.mxu0 0
        %1480 = vmatpush1.bf16.msra.mxu0 0
        %1481 = vmatprep.subr.bf16.mxu0 0
        %1482 = vmatpush1.bf16.msra.mxu0 0
        %1483 = vmatprep.subr.bf16.mxu0 0
        %1484 = vmatpush1.bf16.msra.mxu0 0
        %1485 = vmatprep.mubr.bf16.mxu0 0
        %1486 = vmatmul.mubr.bf16.gmra.mrb[0].mxu0 %v1374
        %v1487 = vpop.f32.mrb[0].mxu0
        %v1488 = vadd.f32 %v1403, %v1487
        %v1489 = vpop.f32.mrb[0].mxu0
        %v1490 = vpop.f32.mrb[0].mxu0
        %v1491 = vadd.f32 %v1403, %v1490
        %v1492 = vpop.f32.mrb[0].mxu0
        %1493 = vmatprep.mubr.bf16.mxu0 0
        %1494 = vmatmul.mubr.bf16.gmra.mrb[0].mxu0 %v1375
        %v1495 = vpop.f32.mrb[0].mxu0
        %v1496 = vadd.f32 %v1403, %v1495
        %v1497 = vpop.f32.mrb[0].mxu0
        %v1498 = vpop.f32.mrb[0].mxu0
        %v1499 = vadd.f32 %v1403, %v1498
        %v1500 = vpop.f32.mrb[0].mxu0
        %1501 = vmatprep.mubr.bf16.mxu0 0
        %1502 = vmatmul.mubr.bf16.gmra.mrb[0].mxu0 %v1376
        %v1503 = vpop.f32.mrb[0].mxu0
        %v1504 = vadd.f32 %v1403, %v1503
        %v1505 = vpop.f32.mrb[0].mxu0
        %v1506 = vpop.f32.mrb[0].mxu0
        %v1507 = vadd.f32 %v1403, %v1506
        %v1508 = vpop.f32.mrb[0].mxu0
        %1509 = vmatprep.mubr.bf16.mxu0 0
        %1510 = vmatmul.mubr.bf16.gmra.mrb[0].mxu0 %v1377
        %v1511 = vpop.f32.mrb[0].mxu0
        %v1512 = vadd.f32 %v1403, %v1511
        %v1513 = vpop.f32.mrb[0].mxu0
        %v1514 = vpop.f32.mrb[0].mxu0
        %v1515 = vadd.f32 %v1403, %v1514
        %v1516 = vpop.f32.mrb[0].mxu0
        %1517 = vmatprep.mubr.bf16.mxu0 0
        %1518 = vmatmul.mubr.bf16.gmra.mrb[0].mxu0 %v1378
        %v1519 = vpop.f32.mrb[0].mxu0
        %v1520 = vadd.f32 %v1403, %v1519
        %v1521 = vpop.f32.mrb[0].mxu0
        %v1522 = vpop.f32.mrb[0].mxu0
        %v1523 = vadd.f32 %v1403, %v1522
        %v1524 = vpop.f32.mrb[0].mxu0
        %1525 = vmatprep.mubr.bf16.mxu0 0
        %1526 = vmatmul.mubr.bf16.gmra.mrb[0].mxu0 %v1379
        %v1527 = vpop.f32.mrb[0].mxu0
        %v1528 = vadd.f32 %v1403, %v1527
        %v1529 = vpop.f32.mrb[0].mxu0
        %v1530 = vpop.f32.mrb[0].mxu0
        %v1531 = vadd.f32 %v1403, %v1530
        %v1532 = vpop.f32.mrb[0].mxu0
        %1533 = vmatprep.mubr.bf16.mxu0 0
        %1534 = vmatmul.mubr.bf16.gmra.mrb[0].mxu0 %v1380
        %v1535 = vpop.f32.mrb[0].mxu0
        %v1536 = vadd.f32 %v1403, %v1535
        %v1537 = vpop.f32.mrb[0].mxu0
        %v1538 = vpop.f32.mrb[0].mxu0
        %v1539 = vadd.f32 %v1403, %v1538
        %v1540 = vpop.f32.mrb[0].mxu0
        %1541 = vmatprep.mubr.bf16.mxu0 0
        %1542 = vmatmul.mubr.bf16.gmra.mrb[0].mxu0 %v1381
        %v1543 = vpop.f32.mrb[0].mxu0
        %v1544 = vadd.f32 %v1403, %v1543
        %v1545 = vpop.f32.mrb[0].mxu0
        %v1546 = vpop.f32.mrb[0].mxu0
        %v1547 = vadd.f32 %v1403, %v1546
        %v1548 = vpop.f32.mrb[0].mxu0
        %1549 = vdwg.mxu0
        %v1550 = vmax.f32 %v1488, 0.0
        %v1551 = vmax.f32 %v1491, 0.0
        %v1552 = vmax.f32 %v1496, 0.0
        %v1553 = vmax.f32 %v1499, 0.0
        %v1554 = vmax.f32 %v1504, 0.0
        %v1555 = vmax.f32 %v1507, 0.0
        %v1556 = vmax.f32 %v1512, 0.0
        %v1557 = vmax.f32 %v1515, 0.0
        %v1558 = vmax.f32 %v1520, 0.0
        %v1559 = vmax.f32 %v1523, 0.0
        %v1560 = vmax.f32 %v1528, 0.0
        %v1561 = vmax.f32 %v1531, 0.0
        %v1562 = vmax.f32 %v1536, 0.0
        %v1563 = vmax.f32 %v1539, 0.0
        %v1564 = vmax.f32 %v1544, 0.0
        %v1565 = vmax.f32 %v1547, 0.0
        %v1566 = vpack.c.bf16 %v1551, %v1550
        %v1567 = vpack.c.bf16 %v1553, %v1552
        %v1568 = vpack.c.bf16 %v1555, %v1554
        %v1569 = vpack.c.bf16 %v1557, %v1556
        %v1570 = vpack.c.bf16 %v1559, %v1558
        %v1571 = vpack.c.bf16 %v1561, %v1560
        %v1572 = vpack.c.bf16 %v1563, %v1562
        %v1573 = vpack.c.bf16 %v1565, %v1564
        %v1574 = vld [vmem:[#allocation12] sm:$0xf]
        %v1575 = vld [vmem:[#allocation12 + $0x4] sm:$0xf]
        %v1576 = vld [vmem:[#allocation12 + $0x8] sm:$0xf]
        %v1577 = vld [vmem:[#allocation12 + $0xc] sm:$0xf]
        %v1578 = vld [vmem:[#allocation12 + $0x10] sm:$0xf]
        %v1579 = vld [vmem:[#allocation12 + $0x14] sm:$0xf]
        %v1580 = vld [vmem:[#allocation12 + $0x18] sm:$0xf]
        %v1581 = vld [vmem:[#allocation12 + $0x1c] sm:$0xf]
        %v1582 = vld [vmem:[#allocation12 + $0x20] sm:$0xf]
        %v1583 = vld [vmem:[#allocation12 + $0x24] sm:$0xf]
        %v1584 = vld [vmem:[#allocation12 + $0x28] sm:$0xf]
        %v1585 = vld [vmem:[#allocation12 + $0x2c] sm:$0xf]
        %v1586 = vld [vmem:[#allocation12 + $0x30] sm:$0xf]
        %v1587 = vld [vmem:[#allocation12 + $0x34] sm:$0xf]
        %v1588 = vld [vmem:[#allocation12 + $0x38] sm:$0xf]
        %v1589 = vld [vmem:[#allocation12 + $0x3c] sm:$0xf]
        %v1590 = vld [vmem:[%s11] sm:$0x1]
        %v1592 = vlaneseq
        %v1593 = vshrl.u32 %v1592, 7
        %v1594 = vsub.s32 0, %v1593
        %v1595 = vrot.slane %v1590, %v1594
        %v1613 = vunpack.c.l.b16 %v1574
        %v1614 = vunpack.c.l.b16 %v1575
        %v1615 = vunpack.c.l.b16 %v1576
        %v1616 = vunpack.c.l.b16 %v1577
        %v1617 = vunpack.c.l.b16 %v1578
        %v1618 = vunpack.c.l.b16 %v1579
        %v1619 = vunpack.c.l.b16 %v1580
        %v1620 = vunpack.c.l.b16 %v1581
        %v1621 = vunpack.c.l.b16 %v1582
        %v1622 = vunpack.c.l.b16 %v1583
        %v1623 = vunpack.c.l.b16 %v1584
        %v1624 = vunpack.c.l.b16 %v1585
        %v1625 = vunpack.c.l.b16 %v1586
        %v1626 = vunpack.c.l.b16 %v1587
        %v1627 = vunpack.c.l.b16 %v1588
        %v1628 = vunpack.c.l.b16 %v1589
        %v1629 = vpack.c.b16 %v1614, %v1613
        %v1630 = vpack.c.b16 %v1616, %v1615
        %v1631 = vpack.c.b16 %v1618, %v1617
        %v1632 = vpack.c.b16 %v1620, %v1619
        %v1633 = vpack.c.b16 %v1622, %v1621
        %v1634 = vpack.c.b16 %v1624, %v1623
        %v1635 = vpack.c.b16 %v1626, %v1625
        %v1636 = vpack.c.b16 %v1628, %v1627
        %1645 = vmatprep.subr.bf16.mxu0 0
        %1646 = vmatpush1.bf16.msra.mxu0 %v1629
        %1647 = vmatprep.subr.bf16.mxu0 0
        %1648 = vmatpush1.bf16.msra.mxu0 %v1630
        %1649 = vmatprep.subr.bf16.mxu0 0
        %1650 = vmatpush1.bf16.msra.mxu0 %v1631
        %1651 = vmatprep.subr.bf16.mxu0 0
        %1652 = vmatpush1.bf16.msra.mxu0 %v1632
        %1653 = vmatprep.subr.bf16.mxu0 0
        %1654 = vmatpush1.bf16.msra.mxu0 %v1633
        %1655 = vmatprep.subr.bf16.mxu0 0
        %1656 = vmatpush1.bf16.msra.mxu0 %v1634
        %1657 = vmatprep.subr.bf16.mxu0 0
        %1658 = vmatpush1.bf16.msra.mxu0 %v1635
        %1659 = vmatprep.subr.bf16.mxu0 0
        %1660 = vmatpush1.bf16.msra.mxu0 %v1636
        %1661 = vmatprep.subr.bf16.mxu0 0
        %1662 = vmatpush1.bf16.msra.mxu0 0
        %1663 = vmatprep.subr.bf16.mxu0 0
        %1664 = vmatpush1.bf16.msra.mxu0 0
        %1665 = vmatprep.subr.bf16.mxu0 0
        %1666 = vmatpush1.bf16.msra.mxu0 0
        %1667 = vmatprep.subr.bf16.mxu0 0
        %1668 = vmatpush1.bf16.msra.mxu0 0
        %1669 = vmatprep.subr.bf16.mxu0 0
        %1670 = vmatpush1.bf16.msra.mxu0 0
        %1671 = vmatprep.subr.bf16.mxu0 0
        %1672 = vmatpush1.bf16.msra.mxu0 0
        %1673 = vmatprep.subr.bf16.mxu0 0
        %1674 = vmatpush1.bf16.msra.mxu0 0
        %1675 = vmatprep.subr.bf16.mxu0 0
        %1676 = vmatpush1.bf16.msra.mxu0 0
        %1677 = vmatprep.mubr.bf16.mxu0 0
        %1678 = vmatmul.mubr.bf16.gmra.mrb[0].mxu0 %v1566
        %v1679 = vpop.f32.mrb[0].mxu0
        %v1680 = vadd.f32 %v1595, %v1679
        %v1681 = vpop.f32.mrb[0].mxu0
        %v1682 = vpop.f32.mrb[0].mxu0
        %v1683 = vadd.f32 %v1595, %v1682
        %v1684 = vpop.f32.mrb[0].mxu0
        %1685 = vmatprep.mubr.bf16.mxu0 0
        %1686 = vmatmul.mubr.bf16.gmra.mrb[0].mxu0 %v1567
        %v1687 = vpop.f32.mrb[0].mxu0
        %v1688 = vadd.f32 %v1595, %v1687
        %v1689 = vpop.f32.mrb[0].mxu0
        %v1690 = vpop.f32.mrb[0].mxu0
        %v1691 = vadd.f32 %v1595, %v1690
        %v1692 = vpop.f32.mrb[0].mxu0
        %1693 = vmatprep.mubr.bf16.mxu0 0
        %1694 = vmatmul.mubr.bf16.gmra.mrb[0].mxu0 %v1568
        %v1695 = vpop.f32.mrb[0].mxu0
        %v1696 = vadd.f32 %v1595, %v1695
        %v1697 = vpop.f32.mrb[0].mxu0
        %v1698 = vpop.f32.mrb[0].mxu0
        %v1699 = vadd.f32 %v1595, %v1698
        %v1700 = vpop.f32.mrb[0].mxu0
        %1701 = vmatprep.mubr.bf16.mxu0 0
        %1702 = vmatmul.mubr.bf16.gmra.mrb[0].mxu0 %v1569
        %v1703 = vpop.f32.mrb[0].mxu0
        %v1704 = vadd.f32 %v1595, %v1703
        %v1705 = vpop.f32.mrb[0].mxu0
        %v1706 = vpop.f32.mrb[0].mxu0
        %v1707 = vadd.f32 %v1595, %v1706
        %v1708 = vpop.f32.mrb[0].mxu0
        %1709 = vmatprep.mubr.bf16.mxu0 0
        %1710 = vmatmul.mubr.bf16.gmra.mrb[0].mxu0 %v1570
        %v1711 = vpop.f32.mrb[0].mxu0
        %v1712 = vadd.f32 %v1595, %v1711
        %v1713 = vpop.f32.mrb[0].mxu0
        %v1714 = vpop.f32.mrb[0].mxu0
        %v1715 = vadd.f32 %v1595, %v1714
        %v1716 = vpop.f32.mrb[0].mxu0
        %1717 = vmatprep.mubr.bf16.mxu0 0
        %1718 = vmatmul.mubr.bf16.gmra.mrb[0].mxu0 %v1571
        %v1719 = vpop.f32.mrb[0].mxu0
        %v1720 = vadd.f32 %v1595, %v1719
        %v1721 = vpop.f32.mrb[0].mxu0
        %v1722 = vpop.f32.mrb[0].mxu0
        %v1723 = vadd.f32 %v1595, %v1722
        %v1724 = vpop.f32.mrb[0].mxu0
        %1725 = vmatprep.mubr.bf16.mxu0 0
        %1726 = vmatmul.mubr.bf16.gmra.mrb[0].mxu0 %v1572
        %v1727 = vpop.f32.mrb[0].mxu0
        %v1728 = vadd.f32 %v1595, %v1727
        %v1729 = vpop.f32.mrb[0].mxu0
        %v1730 = vpop.f32.mrb[0].mxu0
        %v1731 = vadd.f32 %v1595, %v1730
        %v1732 = vpop.f32.mrb[0].mxu0
        %1733 = vmatprep.mubr.bf16.mxu0 0
        %1734 = vmatmul.mubr.bf16.gmra.mrb[0].mxu0 %v1573
        %v1735 = vpop.f32.mrb[0].mxu0
        %v1736 = vadd.f32 %v1595, %v1735
        %v1737 = vpop.f32.mrb[0].mxu0
        %v1738 = vpop.f32.mrb[0].mxu0
        %v1739 = vadd.f32 %v1595, %v1738
        %v1740 = vpop.f32.mrb[0].mxu0
        %1741 = vdwg.mxu0
        %v1742 = vmax.f32 %v1680, 0.0
        %v1743 = vmax.f32 %v1683, 0.0
        %v1744 = vmax.f32 %v1688, 0.0
        %v1745 = vmax.f32 %v1691, 0.0
        %v1746 = vmax.f32 %v1696, 0.0
        %v1747 = vmax.f32 %v1699, 0.0
        %v1748 = vmax.f32 %v1704, 0.0
        %v1749 = vmax.f32 %v1707, 0.0
        %v1750 = vmax.f32 %v1712, 0.0
        %v1751 = vmax.f32 %v1715, 0.0
        %v1752 = vmax.f32 %v1720, 0.0
        %v1753 = vmax.f32 %v1723, 0.0
        %v1754 = vmax.f32 %v1728, 0.0
        %v1755 = vmax.f32 %v1731, 0.0
        %v1756 = vmax.f32 %v1736, 0.0
        %v1757 = vmax.f32 %v1739, 0.0
        %1758 = vst [vmem:[%s540] sm:$0xff] %v1742
        %1759 = vst [vmem:[%s540 + $0x18] sm:$0xff] %v1743
        %1760 = vst [vmem:[%s540 + $0x30] sm:$0xff] %v1744
        %1761 = vst [vmem:[%s540 + $0x48] sm:$0xff] %v1745
        %1762 = vst [vmem:[%s540 + $0x60] sm:$0xff] %v1746
        %1763 = vst [vmem:[%s540 + $0x78] sm:$0xff] %v1747
        %1764 = vst [vmem:[%s540 + $0x90] sm:$0xff] %v1748
        %1765 = vst [vmem:[%s540 + $0xa8] sm:$0xff] %v1749
        %1766 = vst [vmem:[%s540 + $0xc0] sm:$0xff] %v1750
        %1767 = vst [vmem:[%s540 + $0xd8] sm:$0xff] %v1751
        %1768 = vst [vmem:[%s540 + $0xf0] sm:$0xff] %v1752
        %1769 = vst [vmem:[%s540 + $0x108] sm:$0xff] %v1753
        %1770 = vst [vmem:[%s540 + $0x120] sm:$0xff] %v1754
        %1771 = vst [vmem:[%s540 + $0x138] sm:$0xff] %v1755
        %1772 = vst [vmem:[%s540 + $0x150] sm:$0xff] %v1756
        %1773 = vst [vmem:[%s540 + $0x168] sm:$0xff] %v1757
        %s1774 = sand.u32 %s301, 1
        %s1775 = scalar_lea.sflag [#allocation4], %s1774
        %s1776 = sand.u32 %s301, 1
        %s1777 = smul.addr %s1776, 384
        %s1778 = scalar_lea.vmem [#allocation13], %s1777
        // Predicated region
        $region97: #{tpu_custom_call.1} parent=67 // pred_check
          %p1779 = pneg %p311
        $region98: #{tpu_custom_call.1} parent=67 // pred_check_branch
          %1781 = sbr.rel (%p1779) target = $region100
        $region99: #{tpu_custom_call.1} parent=67 // pred_region
          %s1782 = smul.u32 16, %s31
          %s1784 = ssub.s32 6144, 6144
          %1785 = vsyncadd %s1775, %s1784
          %s1786 = smul.addr %s1782, 3
          %s1787 = smul.addr %s1786, 128
          %s1788 = scalar_lea.hbm %s12, %s1787
          %s1789 = sshll.u32 %s1778, 4
          %s1790 = int_to_ptr.vmem [resolvable:$true] %s1789
          %1795 = dma.vmem_to_hbm [thread:$0]  %s1790, 6144, %s1788, %s1775, 384, 384, 24
        $region100: #{tpu_custom_call.1} parent=67 // pred_fallthru
          _
      $region68: #{tpu_custom_call.1} parent=5 // pred_fallthru
        _
      %p1796 = scmp.le.s32.totalorder 2, %s26
      // Predicated region
      $region101: #{tpu_custom_call.1} parent=5 // pred_check
        %p1797 = pneg %p1796
      $region102: #{tpu_custom_call.1} parent=5 // pred_check_branch
        %1799 = sbr.rel (%p1797) target = $region104
      $region103: #{tpu_custom_call.1} parent=5 // pred_region
        %s1800 = ssub.s32 %s26, 2
        // Predicated region
        $region105: #{tpu_custom_call.1} parent=103 // pred_check
          %p1801 = pneg %p317
        $region106: #{tpu_custom_call.1} parent=103 // pred_check_branch
          %1803 = sbr.rel (%p1801) target = $region108
        $region107: #{tpu_custom_call.1} parent=103 // pred_region
          %s1804 = sand.u32 %s302, 1
          %s1805 = scalar_lea.sflag [#allocation4], %s1804
          %s1806 = sand.u32 %s302, 1
          %s1807 = smul.addr %s1806, 384
          %s1808 = scalar_lea.vmem [#allocation13], %s1807
          %1809 = dma.done %s1805, 6144
        $region108: #{tpu_custom_call.1} parent=103 // pred_fallthru
          _
      $region104: #{tpu_custom_call.1} parent=5 // pred_fallthru
        _
    $region6: #{tpu_custom_call.1} parent=1 // loop_footer
      %s30 = sadd.s32 1, %s26
    $region7: #{tpu_custom_call.1} parent=1 // loop_footer_branch
      %25 = sbr.rel target = $region3
    $region8: #{tpu_custom_call.1} parent=1 // loop_exit
      _
    %1810 = vsyncpa [#allocation3], 1
    %s1811 = scalar_lea.sflag [#allocation3], 1
    %1812 = vsyncpa %s1811, 1
    %1813 = vsyncpa [#allocation6], 1
    %1814 = vsyncpa [#allocation9], 1
    %1815 = vsyncpa [#allocation4], 1
    %s1816 = scalar_lea.sflag [#allocation4], 1
    %1817 = vsyncpa %s1816, 1

// kernel: tpu_custom_call.1
$region0: #{tpu_custom_call.1}
  #allocation0 [shape = 'u32[]', space=smem, size = 0x4, offset = 0x4, fixed_abs, tag = 'smem constant byte address 0x4 - core index']
  #allocation1 [shape = 'u32[144,128]{1,0:T(1,128)}', space=vmem, size = 0x12000, scoped, tag = 'internal scratch']
  %s0 = inlined_call_operand.hbm [shape: bf16[256,128], index: 0, kind: input, shape index: {}]
  %s1 = inlined_call_operand.hbm [shape: bf16[128,128], index: 1, kind: input, shape index: {}]
  %s2 = inlined_call_operand.vmem [shape: f32[1,128], index: 2, kind: input, shape index: {}]
  %s3 = inlined_call_operand.hbm [shape: bf16[128,128], index: 3, kind: input, shape index: {}]
  %s4 = inlined_call_operand.vmem [shape: f32[1,128], index: 4, kind: input, shape index: {}]
  %s5 = inlined_call_operand.hbm [shape: bf16[128,256], index: 5, kind: input, shape index: {}]
  %s6 = inlined_call_operand.vmem [shape: f32[1,256], index: 6, kind: input, shape index: {}]
  %s7 = inlined_call_operand.hbm [shape: f32[256,128], index: 7, kind: input, shape index: {}]
  %s8 = inlined_call_operand.hbm [shape: bf16[128,128], index: 8, kind: input, shape index: {}]
  %s9 = inlined_call_operand.vmem [shape: f32[1,128], index: 9, kind: input, shape index: {}]
  %s10 = inlined_call_operand.hbm [shape: bf16[128,128], index: 10, kind: input, shape index: {}]
  %s11 = inlined_call_operand.vmem [shape: f32[1,128], index: 11, kind: input, shape index: {}]
  %s12 = inlined_call_operand.hbm [shape: f32[256,384], index: 12, kind: output, shape index: {}]
  %s13 = sld [smem:[#allocation0]]
  $region109: #{tpu_custom_call.1} parent=0
    _
  %s15 = ssub.s32 1, %s13
  %s16 = scalar_select 0, %s15, %s13
  $region1: #{tpu_custom_call.1} parent=0
    #allocation2 [shape = 'u8[65536]{0}', space=vmem, size = 0x10000, scoped, tag = 'input window, operand 0']
    #allocation3 [shape = 's32[2]{0}', space=sflag, size = 0x8, scoped, tag = 'scoped memory for tpu_custom_call.1']
    #allocation4 [shape = 's32[2]{0}', space=sflag, size = 0x8, scoped, tag = 'scoped memory for tpu_custom_call.1']
    #allocation5 [shape = 'u8[32768]{0}', space=vmem, size = 0x8000, scoped, tag = 'input window, operand 1, single buffered']
    #allocation6 [shape = 's32[1]{0}', space=sflag, size = 0x4, scoped, tag = 'scoped memory for tpu_custom_call.1']
    #allocation7 [shape = 'u8[32768]{0}', space=vmem, size = 0x8000, scoped, tag = 'input window, operand 3, single buffered']
    #allocation8 [shape = 'u8[65536]{0}', space=vmem, size = 0x10000, scoped, tag = 'input window, operand 5, single buffered']
    #allocation9 [shape = 's32[1]{0}', space=sflag, size = 0x4, scoped, tag = 'scoped memory for tpu_custom_call.1']
    #allocation10 [shape = 'u8[131072]{0}', space=vmem, size = 0x20000, scoped, tag = 'input window, operand 7']
    #allocation11 [shape = 'u8[32768]{0}', space=vmem, size = 0x8000, scoped, tag = 'input window, operand 8, single buffered']
    #allocation12 [shape = 'u8[32768]{0}', space=vmem, size = 0x8000, scoped, tag = 'input window, operand 10, single buffered']
    #allocation13 [shape = 'u8[393216]{0}', space=vmem, size = 0x60000, scoped, tag = 'output window, operand 0']
    %17 = vsyncpa [#allocation3], 0
    %s18 = scalar_lea.sflag [#allocation3], 1
    %19 = vsyncpa %s18, 0
    %20 = vsyncpa [#allocation6], 0
    %21 = vsyncpa [#allocation9], 0
    %22 = vsyncpa [#allocation4], 0
    %s23 = scalar_lea.sflag [#allocation4], 1
    %24 = vsyncpa %s23, 0
    loop: start=0, step=1, limit=4
    $region2: #{tpu_custom_call.1} parent=1 // loop_pre_header
      _
    $region3: #{tpu_custom_call.1} parent=1 // loop_header
      %s26 = sphi 0, %s30
      %p27 = scmp.ge.s32.totalorder %s26, 4
      %s36 = sphi 0, %s38
      %s39 = sphi 0, %s36
      %s40 = sphi 0, %s39
      %s56 = sphi 0, %s40
      %s60 = sphi 0, %s60
      %s62 = sphi 0, %s60
      %s63 = sphi 0, %s62
      %s77 = sphi 0, %s63
      %s81 = sphi 0, %s81
      %s83 = sphi 0, %s81
      %s84 = sphi 0, %s83
      %s98 = sphi 0, %s84
      %s102 = sphi 0, %s102
      %s104 = sphi 0, %s102
      %s105 = sphi 0, %s104
      %s119 = sphi 0, %s105
      %s123 = sphi 0, %s123
      %s125 = sphi 0, %s123
      %s126 = sphi 0, %s125
      %s140 = sphi 0, %s126
      %s144 = sphi 0, %s144
      %s146 = sphi 0, %s144
      %s147 = sphi 0, %s146
      %s161 = sphi 0, %s147
      %s165 = sphi 0, %s165
      %s167 = sphi 0, %s165
      %s168 = sphi 0, %s167
      %s182 = sphi 0, %s168
      %s188 = sphi 0, %s190
      %s191 = sphi 0, %s188
      %s192 = sphi 0, %s191
      %s208 = sphi 0, %s192
      %s212 = sphi 0, %s212
      %s214 = sphi 0, %s212
      %s215 = sphi 0, %s214
      %s229 = sphi 0, %s215
      %s233 = sphi 0, %s233
      %s235 = sphi 0, %s233
      %s236 = sphi 0, %s235
      %s250 = sphi 0, %s236
      %s254 = sphi 0, %s254
      %s256 = sphi 0, %s254
      %s257 = sphi 0, %s256
      %s271 = sphi 0, %s257
      %s275 = sphi 0, %s275
      %s277 = sphi 0, %s275
      %s278 = sphi 0, %s277
      %s292 = sphi 0, %s278
      %s298 = sphi 0, %s300
      %s301 = sphi 0, %s298
      %s302 = sphi 0, %s301
      %s318 = sphi 0, %s302
    $region4: #{tpu_custom_call.1} parent=1 // loop_header_branch
      %29 = sbr.rel (%p27) target = $region8
    $region5: #{tpu_custom_call.1} parent=1 // loop_body
      %s31 = ssub.s32 %s26, 1
      %s32 = ssub.s32 %s26, 2
      %s33 = sadd.s32 %s26, 1
      %s34 = ssub.s32 %s26, %s33
      %p35 = scmp.eq.s32.totalorder %s34, 0
      %s37 = sadd.s32 %s36, 1
      %s38 = scalar_select %p35, %s36, %s37
      %p41 = pneg %p35
      %p42 = scmp.eq.s32.totalorder %s26, 1
      %p43 = por %p41, %p42
      %p44 = scmp.ne.s32.totalorder %s36, %s39
      %p45 = scmp.eq.s32.totalorder %s26, 0
      %p46 = por %p44, %p45
      %p47 = scmp.ne.s32.totalorder %s36, %s39
      %p48 = scmp.eq.s32.totalorder %s31, 1
      %p49 = por %p47, %p48
      %p50 = scmp.ne.s32.totalorder %s39, %s40
      %p51 = scmp.eq.s32.totalorder %s31, 0
      %p52 = por %p50, %p51
      %p53 = scmp.ne.s32.totalorder %s39, %s40
      %p54 = scmp.eq.s32.totalorder %s32, 1
      %p55 = por %p53, %p54
      %p57 = scmp.ne.s32.totalorder %s40, %s56
      %p58 = scmp.eq.s32.totalorder %s32, 0
      %p59 = por %p57, %p58
      %s61 = sadd.s32 %s60, 1
      %p64 = scmp.eq.s32.totalorder %s26, 1
      %p65 = scmp.ne.s32.totalorder %s60, %s62
      %p66 = scmp.eq.s32.totalorder %s26, 0
      %p67 = por %p65, %p66
      %p68 = scmp.ne.s32.totalorder %s60, %s62
      %p69 = scmp.eq.s32.totalorder %s31, 1
      %p70 = por %p68, %p69
      %p71 = scmp.ne.s32.totalorder %s62, %s63
      %p72 = scmp.eq.s32.totalorder %s31, 0
      %p73 = por %p71, %p72
      %p74 = scmp.ne.s32.totalorder %s62, %s63
      %p75 = scmp.eq.s32.totalorder %s32, 1
      %p76 = por %p74, %p75
      %p78 = scmp.ne.s32.totalorder %s63, %s77
      %p79 = scmp.eq.s32.totalorder %s32, 0
      %p80 = por %p78, %p79
      %s82 = sadd.s32 %s81, 1
      %p85 = scmp.eq.s32.totalorder %s26, 1
      %p86 = scmp.ne.s32.totalorder %s81, %s83
      %p87 = scmp.eq.s32.totalorder %s26, 0
      %p88 = por %p86, %p87
      %p89 = scmp.ne.s32.totalorder %s81, %s83
      %p90 = scmp.eq.s32.totalorder %s31, 1
      %p91 = por %p89, %p90
      %p92 = scmp.ne.s32.totalorder %s83, %s84
      %p93 = scmp.eq.s32.totalorder %s31, 0
      %p94 = por %p92, %p93
      %p95 = scmp.ne.s32.totalorder %s83, %s84
      %p96 = scmp.eq.s32.totalorder %s32, 1
      %p97 = por %p95, %p96
      %p99 = scmp.ne.s32.totalorder %s84, %s98
      %p100 = scmp.eq.s32.totalorder %s32, 0
      %p101 = por %p99, %p100
      %s103 = sadd.s32 %s102, 1
      %p106 = scmp.eq.s32.totalorder %s26, 1
      %p107 = scmp.ne.s32.totalorder %s102, %s104
      %p108 = scmp.eq.s32.totalorder %s26, 0
      %p109 = por %p107, %p108
      %p110 = scmp.ne.s32.totalorder %s102, %s104
      %p111 = scmp.eq.s32.totalorder %s31, 1
      %p112 = por %p110, %p111
      %p113 = scmp.ne.s32.totalorder %s104, %s105
      %p114 = scmp.eq.s32.totalorder %s31, 0
      %p115 = por %p113, %p114
      %p116 = scmp.ne.s32.totalorder %s104, %s105
      %p117 = scmp.eq.s32.totalorder %s32, 1
      %p118 = por %p116, %p117
      %p120 = scmp.ne.s32.totalorder %s105, %s119
      %p121 = scmp.eq.s32.totalorder %s32, 0
      %p122 = por %p120, %p121
      %s124 = sadd.s32 %s123, 1
      %p127 = scmp.eq.s32.totalorder %s26, 1
      %p128 = scmp.ne.s32.totalorder %s123, %s125
      %p129 = scmp.eq.s32.totalorder %s26, 0
      %p130 = por %p128, %p129
      %p131 = scmp.ne.s32.totalorder %s123, %s125
      %p132 = scmp.eq.s32.totalorder %s31, 1
      %p133 = por %p131, %p132
      %p134 = scmp.ne.s32.totalorder %s125, %s126
      %p135 = scmp.eq.s32.totalorder %s31, 0
      %p136 = por %p134, %p135
      %p137 = scmp.ne.s32.totalorder %s125, %s126
      %p138 = scmp.eq.s32.totalorder %s32, 1
      %p139 = por %p137, %p138
      %p141 = scmp.ne.s32.totalorder %s126, %s140
      %p142 = scmp.eq.s32.totalorder %s32, 0
      %p143 = por %p141, %p142
      %s145 = sadd.s32 %s144, 1
      %p148 = scmp.eq.s32.totalorder %s26, 1
      %p149 = scmp.ne.s32.totalorder %s144, %s146
      %p150 = scmp.eq.s32.totalorder %s26, 0
      %p151 = por %p149, %p150
      %p152 = scmp.ne.s32.totalorder %s144, %s146
      %p153 = scmp.eq.s32.totalorder %s31, 1
      %p154 = por %p152, %p153
      %p155 = scmp.ne.s32.totalorder %s146, %s147
      %p156 = scmp.eq.s32.totalorder %s31, 0
      %p157 = por %p155, %p156
      %p158 = scmp.ne.s32.totalorder %s146, %s147
      %p159 = scmp.eq.s32.totalorder %s32, 1
      %p160 = por %p158, %p159
      %p162 = scmp.ne.s32.totalorder %s147, %s161
      %p163 = scmp.eq.s32.totalorder %s32, 0
      %p164 = por %p162, %p163
      %s166 = sadd.s32 %s165, 1
      %p169 = scmp.eq.s32.totalorder %s26, 1
      %p170 = scmp.ne.s32.totalorder %s165, %s167
      %p171 = scmp.eq.s32.totalorder %s26, 0
      %p172 = por %p170, %p171
      %p173 = scmp.ne.s32.totalorder %s165, %s167
      %p174 = scmp.eq.s32.totalorder %s31, 1
      %p175 = por %p173, %p174
      %p176 = scmp.ne.s32.totalorder %s167, %s168
      %p177 = scmp.eq.s32.totalorder %s31, 0
      %p178 = por %p176, %p177
      %p179 = scmp.ne.s32.totalorder %s167, %s168
      %p180 = scmp.eq.s32.totalorder %s32, 1
      %p181 = por %p179, %p180
      %p183 = scmp.ne.s32.totalorder %s168, %s182
      %p184 = scmp.eq.s32.totalorder %s32, 0
      %p185 = por %p183, %p184
      %s186 = ssub.s32 %s26, %s33
      %p187 = scmp.eq.s32.totalorder %s186, 0
      %s189 = sadd.s32 %s188, 1
      %s190 = scalar_select %p187, %s188, %s189
      %p193 = pneg %p187
      %p194 = scmp.eq.s32.totalorder %s26, 1
      %p195 = por %p193, %p194
      %p196 = scmp.ne.s32.totalorder %s188, %s191
      %p197 = scmp.eq.s32.totalorder %s26, 0
      %p198 = por %p196, %p197
      %p199 = scmp.ne.s32.totalorder %s188, %s191
      %p200 = scmp.eq.s32.totalorder %s31, 1
      %p201 = por %p199, %p200
      %p202 = scmp.ne.s32.totalorder %s191, %s192
      %p203 = scmp.eq.s32.totalorder %s31, 0
      %p204 = por %p202, %p203
      %p205 = scmp.ne.s32.totalorder %s191, %s192
      %p206 = scmp.eq.s32.totalorder %s32, 1
      %p207 = por %p205, %p206
      %p209 = scmp.ne.s32.totalorder %s192, %s208
      %p210 = scmp.eq.s32.totalorder %s32, 0
      %p211 = por %p209, %p210
      %s213 = sadd.s32 %s212, 1
      %p216 = scmp.eq.s32.totalorder %s26, 1
      %p217 = scmp.ne.s32.totalorder %s212, %s214
      %p218 = scmp.eq.s32.totalorder %s26, 0
      %p219 = por %p217, %p218
      %p220 = scmp.ne.s32.totalorder %s212, %s214
      %p221 = scmp.eq.s32.totalorder %s31, 1
      %p222 = por %p220, %p221
      %p223 = scmp.ne.s32.totalorder %s214, %s215
      %p224 = scmp.eq.s32.totalorder %s31, 0
      %p225 = por %p223, %p224
      %p226 = scmp.ne.s32.totalorder %s214, %s215
      %p227 = scmp.eq.s32.totalorder %s32, 1
      %p228 = por %p226, %p227
      %p230 = scmp.ne.s32.totalorder %s215, %s229
      %p231 = scmp.eq.s32.totalorder %s32, 0
      %p232 = por %p230, %p231
      %s234 = sadd.s32 %s233, 1
      %p237 = scmp.eq.s32.totalorder %s26, 1
      %p238 = scmp.ne.s32.totalorder %s233, %s235
      %p239 = scmp.eq.s32.totalorder %s26, 0
      %p240 = por %p238, %p239
      %p241 = scmp.ne.s32.totalorder %s233, %s235
      %p242 = scmp.eq.s32.totalorder %s31, 1
      %p243 = por %p241, %p242
      %p244 = scmp.ne.s32.totalorder %s235, %s236
      %p245 = scmp.eq.s32.totalorder %s31, 0
      %p246 = por %p244, %p245
      %p247 = scmp.ne.s32.totalorder %s235, %s236
      %p248 = scmp.eq.s32.totalorder %s32, 1
      %p249 = por %p247, %p248
      %p251 = scmp.ne.s32.totalorder %s236, %s250
      %p252 = scmp.eq.s32.totalorder %s32, 0
      %p253 = por %p251, %p252
      %s255 = sadd.s32 %s254, 1
      %p258 = scmp.eq.s32.totalorder %s26, 1
      %p259 = scmp.ne.s32.totalorder %s254, %s256
      %p260 = scmp.eq.s32.totalorder %s26, 0
      %p261 = por %p259, %p260
      %p262 = scmp.ne.s32.totalorder %s254, %s256
      %p263 = scmp.eq.s32.totalorder %s31, 1
      %p264 = por %p262, %p263
      %p265 = scmp.ne.s32.totalorder %s256, %s257
      %p266 = scmp.eq.s32.totalorder %s31, 0
      %p267 = por %p265, %p266
      %p268 = scmp.ne.s32.totalorder %s256, %s257
      %p269 = scmp.eq.s32.totalorder %s32, 1
      %p270 = por %p268, %p269
      %p272 = scmp.ne.s32.totalorder %s257, %s271
      %p273 = scmp.eq.s32.totalorder %s32, 0
      %p274 = por %p272, %p273
      %s276 = sadd.s32 %s275, 1
      %p279 = scmp.eq.s32.totalorder %s26, 1
      %p280 = scmp.ne.s32.totalorder %s275, %s277
      %p281 = scmp.eq.s32.totalorder %s26, 0
      %p282 = por %p280, %p281
      %p283 = scmp.ne.s32.totalorder %s275, %s277
      %p284 = scmp.eq.s32.totalorder %s31, 1
      %p285 = por %p283, %p284
      %p286 = scmp.ne.s32.totalorder %s277, %s278
      %p287 = scmp.eq.s32.totalorder %s31, 0
      %p288 = por %p286, %p287
      %p289 = scmp.ne.s32.totalorder %s277, %s278
      %p290 = scmp.eq.s32.totalorder %s32, 1
      %p291 = por %p289, %p290
      %p293 = scmp.ne.s32.totalorder %s278, %s292
      %p294 = scmp.eq.s32.totalorder %s32, 0
      %p295 = por %p293, %p294
      %s296 = ssub.s32 %s26, %s33
      %p297 = scmp.eq.s32.totalorder %s296, 0
      %s299 = sadd.s32 %s298, 1
      %s300 = scalar_select %p297, %s298, %s299
      %p303 = pneg %p297
      %p304 = scmp.eq.s32.totalorder %s26, 1
      %p305 = por %p303, %p304
      %p306 = scmp.ne.s32.totalorder %s298, %s301
      %p307 = scmp.eq.s32.totalorder %s26, 0
      %p308 = por %p306, %p307
      %p309 = scmp.ne.s32.totalorder %s298, %s301
      %p310 = scmp.eq.s32.totalorder %s31, 1
      %p311 = por %p309, %p310
      %p312 = scmp.ne.s32.totalorder %s301, %s302
      %p313 = scmp.eq.s32.totalorder %s31, 0
      %p314 = por %p312, %p313
      %p315 = scmp.ne.s32.totalorder %s301, %s302
      %p316 = scmp.eq.s32.totalorder %s32, 1
      %p317 = por %p315, %p316
      %p319 = scmp.ne.s32.totalorder %s302, %s318
      %p320 = scmp.eq.s32.totalorder %s32, 0
      %p321 = por %p319, %p320
      %p322 = scmp.le.s32.totalorder 1, %s26
      %p323 = scmp.lt.s32.totalorder %s26, 3
      %p324 = pnand %p322, %p323
      %p325 = pneg %p324
      // Predicated region
      $region9: #{tpu_custom_call.1} parent=5 // pred_check
        _
      $region10: #{tpu_custom_call.1} parent=5 // pred_check_branch
        %327 = sbr.rel (%p324) target = $region12
      $region11: #{tpu_custom_call.1} parent=5 // pred_region
        %s328 = ssub.s32 %s26, 1
        // Predicated region
        $region13: #{tpu_custom_call.1} parent=11 // pred_check
          %p329 = pneg %p73
        $region14: #{tpu_custom_call.1} parent=11 // pred_check_branch
          %331 = sbr.rel (%p329) target = $region16
        $region15: #{tpu_custom_call.1} parent=11 // pred_region
          %s333 = ssub.s32 1024, 1024
          %334 = vsyncadd [#allocation6], %s333
          %s335 = sshll.u32 [#allocation5], 4
          %s336 = int_to_ptr.vmem [resolvable:$true] %s335
          %341 = dma.hbm_to_vmem [thread:$0]  %s1, 1024, %s336, [#allocation6], 64, 64, 4
        $region16: #{tpu_custom_call.1} parent=11 // pred_fallthru
          _
        // Predicated region
        $region17: #{tpu_custom_call.1} parent=11 // pred_check
          %p342 = pneg %p94
        $region18: #{tpu_custom_call.1} parent=11 // pred_check_branch
          %344 = sbr.rel (%p342) target = $region20
        $region19: #{tpu_custom_call.1} parent=11 // pred_region
          _
        $region20: #{tpu_custom_call.1} parent=11 // pred_fallthru
          _
        // Predicated region
        $region21: #{tpu_custom_call.1} parent=11 // pred_check
          %p345 = pneg %p115
        $region22: #{tpu_custom_call.1} parent=11 // pred_check_branch
          %347 = sbr.rel (%p345) target = $region24
        $region23: #{tpu_custom_call.1} parent=11 // pred_region
          %s349 = ssub.s32 1024, 1024
          %350 = vsyncadd [#allocation6], %s349
          %s351 = sshll.u32 [#allocation7], 4
          %s352 = int_to_ptr.vmem [resolvable:$true] %s351
          %357 = dma.hbm_to_vmem [thread:$0]  %s3, 1024, %s352, [#allocation6], 64, 64, 4
        $region24: #{tpu_custom_call.1} parent=11 // pred_fallthru
          _
        // Predicated region
        $region25: #{tpu_custom_call.1} parent=11 // pred_check
          %p358 = pneg %p136
        $region26: #{tpu_custom_call.1} parent=11 // pred_check_branch
          %360 = sbr.rel (%p358) target = $region28
        $region27: #{tpu_custom_call.1} parent=11 // pred_region
          _
        $region28: #{tpu_custom_call.1} parent=11 // pred_fallthru
          _
        // Predicated region
        $region29: #{tpu_custom_call.1} parent=11 // pred_check
          %p361 = pneg %p157
        $region30: #{tpu_custom_call.1} parent=11 // pred_check_branch
          %363 = sbr.rel (%p361) target = $region32
        $region31: #{tpu_custom_call.1} parent=11 // pred_region
          %s365 = ssub.s32 2048, 2048
          %366 = vsyncadd [#allocation9], %s365
          %s367 = sshll.u32 [#allocation8], 4
          %s368 = int_to_ptr.vmem [resolvable:$true] %s367
          %373 = dma.hbm_to_vmem [thread:$0]  %s5, 2048, %s368, [#allocation9], 128, 128, 8
        $region32: #{tpu_custom_call.1} parent=11 // pred_fallthru
          _
        // Predicated region
        $region33: #{tpu_custom_call.1} parent=11 // pred_check
          %p374 = pneg %p178
        $region34: #{tpu_custom_call.1} parent=11 // pred_check_branch
          %376 = sbr.rel (%p374) target = $region36
        $region35: #{tpu_custom_call.1} parent=11 // pred_region
          _
        $region36: #{tpu_custom_call.1} parent=11 // pred_fallthru
          _
        // Predicated region
        $region37: #{tpu_custom_call.1} parent=11 // pred_check
          %p377 = pneg %p225
        $region38: #{tpu_custom_call.1} parent=11 // pred_check_branch
          %379 = sbr.rel (%p377) target = $region40
        $region39: #{tpu_custom_call.1} parent=11 // pred_region
          %s381 = ssub.s32 1024, 1024
          %382 = vsyncadd [#allocation6], %s381
          %s383 = sshll.u32 [#allocation11], 4
          %s384 = int_to_ptr.vmem [resolvable:$true] %s383
          %389 = dma.hbm_to_vmem [thread:$0]  %s8, 1024, %s384, [#allocation6], 64, 64, 4
        $region40: #{tpu_custom_call.1} parent=11 // pred_fallthru
          _
        // Predicated region
        $region41: #{tpu_custom_call.1} parent=11 // pred_check
          %p390 = pneg %p246
        $region42: #{tpu_custom_call.1} parent=11 // pred_check_branch
          %392 = sbr.rel (%p390) target = $region44
        $region43: #{tpu_custom_call.1} parent=11 // pred_region
          _
        $region44: #{tpu_custom_call.1} parent=11 // pred_fallthru
          _
        // Predicated region
        $region45: #{tpu_custom_call.1} parent=11 // pred_check
          %p393 = pneg %p267
        $region46: #{tpu_custom_call.1} parent=11 // pred_check_branch
          %395 = sbr.rel (%p393) target = $region48
        $region47: #{tpu_custom_call.1} parent=11 // pred_region
          %s397 = ssub.s32 1024, 1024
          %398 = vsyncadd [#allocation9], %s397
          %s399 = sshll.u32 [#allocation12], 4
          %s400 = int_to_ptr.vmem [resolvable:$true] %s399
          %405 = dma.hbm_to_vmem [thread:$0]  %s10, 1024, %s400, [#allocation9], 64, 64, 4
        $region48: #{tpu_custom_call.1} parent=11 // pred_fallthru
          _
        // Predicated region
        $region49: #{tpu_custom_call.1} parent=11 // pred_check
          %p406 = pneg %p288
        $region50: #{tpu_custom_call.1} parent=11 // pred_check_branch
          %408 = sbr.rel (%p406) target = $region52
        $region51: #{tpu_custom_call.1} parent=11 // pred_region
          _
        $region52: #{tpu_custom_call.1} parent=11 // pred_fallthru
          _
      $region12: #{tpu_custom_call.1} parent=5 // pred_fallthru
        _
      %p409 = scmp.lt.s32.totalorder %s26, 2
      // Predicated region
      $region53: #{tpu_custom_call.1} parent=5 // pred_check
        %p410 = pneg %p409
      $region54: #{tpu_custom_call.1} parent=5 // pred_check_branch
        %412 = sbr.rel (%p410) target = $region56
      $region55: #{tpu_custom_call.1} parent=5 // pred_region
        // Predicated region
        $region57: #{tpu_custom_call.1} parent=55 // pred_check
          %p413 = pneg %p46
        $region58: #{tpu_custom_call.1} parent=55 // pred_check_branch
          %415 = sbr.rel (%p413) target = $region60
        $region59: #{tpu_custom_call.1} parent=55 // pred_region
          %s416 = sand.u32 %s26, 1
          %s417 = scalar_lea.sflag [#allocation3], %s416
          %s418 = sand.u32 %s36, 1
          %s419 = smul.addr %s418, 64
          %s420 = scalar_lea.vmem [#allocation2], %s419
          %s421 = smul.u32 16, %s26
          %s423 = ssub.s32 1024, 1024
          %424 = vsyncadd %s417, %s423
          %s425 = smul.addr %s421, 64
          %s426 = scalar_lea.hbm %s0, %s425
          %s427 = sshll.u32 %s420, 4
          %s428 = int_to_ptr.vmem [resolvable:$true] %s427
          %433 = dma.hbm_to_vmem [thread:$0]  %s426, 1024, %s428, %s417, 64, 64, 4
        $region60: #{tpu_custom_call.1} parent=55 // pred_fallthru
          _
        // Predicated region
        $region61: #{tpu_custom_call.1} parent=55 // pred_check
          %p434 = pneg %p198
        $region62: #{tpu_custom_call.1} parent=55 // pred_check_branch
          %436 = sbr.rel (%p434) target = $region64
        $region63: #{tpu_custom_call.1} parent=55 // pred_region
          %s437 = sand.u32 %s26, 1
          %s438 = scalar_lea.sflag [#allocation3], %s437
          %s439 = sand.u32 %s188, 1
          %s440 = smul.addr %s439, 128
          %s441 = scalar_lea.vmem [#allocation10], %s440
          %s442 = smul.u32 16, %s26
          %s444 = ssub.s32 2048, 2048
          %445 = vsyncadd %s438, %s444
          %s446 = smul.addr %s442, 128
          %s447 = scalar_lea.hbm %s7, %s446
          %s448 = sshll.u32 %s441, 4
          %s449 = int_to_ptr.vmem [resolvable:$true] %s448
          %454 = dma.hbm_to_vmem [thread:$0]  %s447, 2048, %s449, %s438, 128, 128, 8
        $region64: #{tpu_custom_call.1} parent=55 // pred_fallthru
          _
      $region56: #{tpu_custom_call.1} parent=5 // pred_fallthru
        _
      %p455 = scmp.le.s32.totalorder 1, %s26
      %p456 = scmp.lt.s32.totalorder %s26, 3
      %p457 = pnand %p455, %p456
      %p458 = pneg %p457
      // Predicated region
      $region65: #{tpu_custom_call.1} parent=5 // pred_check
        _
      $region66: #{tpu_custom_call.1} parent=5 // pred_check_branch
        %460 = sbr.rel (%p457) target = $region68
      $region67: #{tpu_custom_call.1} parent=5 // pred_region
        %s461 = ssub.s32 %s26, 1
        %s462 = sand.u32 %s31, 1
        %s463 = scalar_lea.sflag [#allocation3], %s462
        %s464 = sand.u32 %s39, 1
        %s465 = smul.addr %s464, 64
        %s466 = scalar_lea.vmem [#allocation2], %s465
        // Predicated region
        $region69: #{tpu_custom_call.1} parent=67 // pred_check
          %p467 = pneg %p52
        $region70: #{tpu_custom_call.1} parent=67 // pred_check_branch
          %469 = sbr.rel (%p467) target = $region72
        $region71: #{tpu_custom_call.1} parent=67 // pred_region
          %470 = dma.done %s463, 1024
        $region72: #{tpu_custom_call.1} parent=67 // pred_fallthru
          _
        // Predicated region
        $region73: #{tpu_custom_call.1} parent=67 // pred_check
          %p471 = pneg %p73
        $region74: #{tpu_custom_call.1} parent=67 // pred_check_branch
          %473 = sbr.rel (%p471) target = $region76
        $region75: #{tpu_custom_call.1} parent=67 // pred_region
          %474 = dma.done [#allocation6], 1024
        $region76: #{tpu_custom_call.1} parent=67 // pred_fallthru
          _
        // Predicated region
        $region77: #{tpu_custom_call.1} parent=67 // pred_check
          %p475 = pneg %p115
        $region78: #{tpu_custom_call.1} parent=67 // pred_check_branch
          %477 = sbr.rel (%p475) target = $region80
        $region79: #{tpu_custom_call.1} parent=67 // pred_region
          %478 = dma.done [#allocation6], 1024
        $region80: #{tpu_custom_call.1} parent=67 // pred_fallthru
          _
        // Predicated region
        $region81: #{tpu_custom_call.1} parent=67 // pred_check
          %p479 = pneg %p157
        $region82: #{tpu_custom_call.1} parent=67 // pred_check_branch
          %481 = sbr.rel (%p479) target = $region84
        $region83: #{tpu_custom_call.1} parent=67 // pred_region
          %482 = dma.done [#allocation9], 2048
        $region84: #{tpu_custom_call.1} parent=67 // pred_fallthru
          _
        %s483 = sand.u32 %s31, 1
        %s484 = scalar_lea.sflag [#allocation3], %s483
        %s485 = sand.u32 %s191, 1
        %s486 = smul.addr %s485, 128
        %s487 = scalar_lea.vmem [#allocation10], %s486
        // Predicated region
        $region85: #{tpu_custom_call.1} parent=67 // pred_check
          %p488 = pneg %p204
        $region86: #{tpu_custom_call.1} parent=67 // pred_check_branch
          %490 = sbr.rel (%p488) target = $region88
        $region87: #{tpu_custom_call.1} parent=67 // pred_region
          %491 = dma.done %s484, 2048
        $region88: #{tpu_custom_call.1} parent=67 // pred_fallthru
          _
        // Predicated region
        $region89: #{tpu_custom_call.1} parent=67 // pred_check
          %p492 = pneg %p225
        $region90: #{tpu_custom_call.1} parent=67 // pred_check_branch
          %494 = sbr.rel (%p492) target = $region92
        $region91: #{tpu_custom_call.1} parent=67 // pred_region
          %495 = dma.done [#allocation6], 1024
        $region92: #{tpu_custom_call.1} parent=67 // pred_fallthru
          _
        // Predicated region
        $region93: #{tpu_custom_call.1} parent=67 // pred_check
          %p496 = pneg %p267
        $region94: #{tpu_custom_call.1} parent=67 // pred_check_branch
          %498 = sbr.rel (%p496) target = $region96
        $region95: #{tpu_custom_call.1} parent=67 // pred_region
          %499 = dma.done [#allocation9], 1024
        $region96: #{tpu_custom_call.1} parent=67 // pred_fallthru
          _
        %s500 = sand.u32 %s31, 1
        %s501 = scalar_lea.sflag [#allocation3], %s500
        %s502 = sand.u32 %s39, 1
        %s503 = smul.addr %s502, 64
        %s504 = scalar_lea.vmem [#allocation2], %s503
        %p505 = pneg %p52
        %p506 = pneg %p49
        %p507 = pneg %p73
        %p508 = pneg %p70
        %p509 = pneg %p94
        %p510 = pneg %p91
        %p511 = pneg %p115
        %p512 = pneg %p112
        %p513 = pneg %p136
        %p514 = pneg %p133
        %p515 = pneg %p157
        %p516 = pneg %p154
        %p517 = pneg %p178
        %p518 = pneg %p175
        %s519 = sand.u32 %s31, 1
        %s520 = scalar_lea.sflag [#allocation3], %s519
        %s521 = sand.u32 %s191, 1
        %s522 = smul.addr %s521, 128
        %s523 = scalar_lea.vmem [#allocation10], %s522
        %p524 = pneg %p204
        %p525 = pneg %p201
        %p526 = pneg %p225
        %p527 = pneg %p222
        %p528 = pneg %p246
        %p529 = pneg %p243
        %p530 = pneg %p267
        %p531 = pneg %p264
        %p532 = pneg %p288
        %p533 = pneg %p285
        %p534 = pneg %p314
        %p535 = pneg %p311
        %s536 = sand.u32 %s301, 1
        %s537 = scalar_lea.sflag [#allocation4], %s536
        %s538 = sand.u32 %s301, 1
        %s539 = smul.addr %s538, 384
        %s540 = scalar_lea.vmem [#allocation13], %s539
        %s541 = smul.u32 16, %s31
        %s542 = smul.u32 16, %s31
        %s543 = smul.u32 16, %s31
        %v545 = vld [vmem:[%s466] sm:$0xf]
        %v546 = vld [vmem:[%s466 + $0x4] sm:$0xf]
        %v547 = vld [vmem:[%s466 + $0x8] sm:$0xf]
        %v548 = vld [vmem:[%s466 + $0xc] sm:$0xf]
        %v549 = vld [vmem:[%s466 + $0x10] sm:$0xf]
        %v550 = vld [vmem:[%s466 + $0x14] sm:$0xf]
        %v551 = vld [vmem:[%s466 + $0x18] sm:$0xf]
        %v552 = vld [vmem:[%s466 + $0x1c] sm:$0xf]
        %v553 = vld [vmem:[%s466 + $0x20] sm:$0xf]
        %v554 = vld [vmem:[%s466 + $0x24] sm:$0xf]
        %v555 = vld [vmem:[%s466 + $0x28] sm:$0xf]
        %v556 = vld [vmem:[%s466 + $0x2c] sm:$0xf]
        %v557 = vld [vmem:[%s466 + $0x30] sm:$0xf]
        %v558 = vld [vmem:[%s466 + $0x34] sm:$0xf]
        %v559 = vld [vmem:[%s466 + $0x38] sm:$0xf]
        %v560 = vld [vmem:[%s466 + $0x3c] sm:$0xf]
        %v561 = vld [vmem:[#allocation5] sm:$0xf]
        %v562 = vld [vmem:[#allocation5 + $0x4] sm:$0xf]
        %v563 = vld [vmem:[#allocation5 + $0x8] sm:$0xf]
        %v564 = vld [vmem:[#allocation5 + $0xc] sm:$0xf]
        %v565 = vld [vmem:[#allocation5 + $0x10] sm:$0xf]
        %v566 = vld [vmem:[#allocation5 + $0x14] sm:$0xf]
        %v567 = vld [vmem:[#allocation5 + $0x18] sm:$0xf]
        %v568 = vld [vmem:[#allocation5 + $0x1c] sm:$0xf]
        %v569 = vld [vmem:[#allocation5 + $0x20] sm:$0xf]
        %v570 = vld [vmem:[#allocation5 + $0x24] sm:$0xf]
        %v571 = vld [vmem:[#allocation5 + $0x28] sm:$0xf]
        %v572 = vld [vmem:[#allocation5 + $0x2c] sm:$0xf]
        %v573 = vld [vmem:[#allocation5 + $0x30] sm:$0xf]
        %v574 = vld [vmem:[#allocation5 + $0x34] sm:$0xf]
        %v575 = vld [vmem:[#allocation5 + $0x38] sm:$0xf]
        %v576 = vld [vmem:[#allocation5 + $0x3c] sm:$0xf]
        %v577 = vld [vmem:[%s2] sm:$0x1]
        %v579 = vlaneseq
        %v580 = vshrl.u32 %v579, 7
        %v581 = vsub.s32 0, %v580
        %v582 = vrot.slane %v577, %v581
        %v600 = vunpack.c.l.b16 %v545
        %v601 = vunpack.c.l.b16 %v546
        %v602 = vunpack.c.l.b16 %v547
        %v603 = vunpack.c.l.b16 %v548
        %v604 = vunpack.c.l.b16 %v549
        %v605 = vunpack.c.l.b16 %v550
        %v606 = vunpack.c.l.b16 %v551
        %v607 = vunpack.c.l.b16 %v552
        %v608 = vunpack.c.l.b16 %v553
        %v609 = vunpack.c.l.b16 %v554
        %v610 = vunpack.c.l.b16 %v555
        %v611 = vunpack.c.l.b16 %v556
        %v612 = vunpack.c.l.b16 %v557
        %v613 = vunpack.c.l.b16 %v558
        %v614 = vunpack.c.l.b16 %v559
        %v615 = vunpack.c.l.b16 %v560
        %v616 = vpack.c.b16 %v601, %v600
        %v617 = vpack.c.b16 %v603, %v602
        %v618 = vpack.c.b16 %v605, %v604
        %v619 = vpack.c.b16 %v607, %v606
        %v620 = vpack.c.b16 %v609, %v608
        %v621 = vpack.c.b16 %v611, %v610
        %v622 = vpack.c.b16 %v613, %v612
        %v623 = vpack.c.b16 %v615, %v614
        %v648 = vunpack.c.l.b16 %v561
        %v649 = vunpack.c.l.b16 %v562
        %v650 = vunpack.c.l.b16 %v563
        %v651 = vunpack.c.l.b16 %v564
        %v652 = vunpack.c.l.b16 %v565
        %v653 = vunpack.c.l.b16 %v566
        %v654 = vunpack.c.l.b16 %v567
        %v655 = vunpack.c.l.b16 %v568
        %v656 = vunpack.c.l.b16 %v569
        %v657 = vunpack.c.l.b16 %v570
        %v658 = vunpack.c.l.b16 %v571
        %v659 = vunpack.c.l.b16 %v572
        %v660 = vunpack.c.l.b16 %v573
        %v661 = vunpack.c.l.b16 %v574
        %v662 = vunpack.c.l.b16 %v575
        %v663 = vunpack.c.l.b16 %v576
        %v664 = vpack.c.b16 %v649, %v648
        %v665 = vpack.c.b16 %v651, %v650
        %v666 = vpack.c.b16 %v653, %v652
        %v667 = vpack.c.b16 %v655, %v654
        %v668 = vpack.c.b16 %v657, %v656
        %v669 = vpack.c.b16 %v659, %v658
        %v670 = vpack.c.b16 %v661, %v660
        %v671 = vpack.c.b16 %v663, %v662
        %680 = vmatprep.subr.bf16.mxu0 0
        %681 = vmatpush1.bf16.msra.mxu0 %v664
        %682 = vmatprep.subr.bf16.mxu0 0
        %683 = vmatpush1.bf16.msra.mxu0 %v665
        %684 = vmatprep.subr.bf16.mxu0 0
        %685 = vmatpush1.bf16.msra.mxu0 %v666
        %686 = vmatprep.subr.bf16.mxu0 0
        %687 = vmatpush1.bf16.msra.mxu0 %v667
        %688 = vmatprep.subr.bf16.mxu0 0
        %689 = vmatpush1.bf16.msra.mxu0 %v668
        %690 = vmatprep.subr.bf16.mxu0 0
        %691 = vmatpush1.bf16.msra.mxu0 %v669
        %692 = vmatprep.subr.bf16.mxu0 0
        %693 = vmatpush1.bf16.msra.mxu0 %v670
        %694 = vmatprep.subr.bf16.mxu0 0
        %695 = vmatpush1.bf16.msra.mxu0 %v671
        %696 = vmatprep.subr.bf16.mxu0 0
        %697 = vmatpush1.bf16.msra.mxu0 0
        %698 = vmatprep.subr.bf16.mxu0 0
        %699 = vmatpush1.bf16.msra.mxu0 0
        %700 = vmatprep.subr.bf16.mxu0 0
        %701 = vmatpush1.bf16.msra.mxu0 0
        %702 = vmatprep.subr.bf16.mxu0 0
        %703 = vmatpush1.bf16.msra.mxu0 0
        %704 = vmatprep.subr.bf16.mxu0 0
        %705 = vmatpush1.bf16.msra.mxu0 0
        %706 = vmatprep.subr.bf16.mxu0 0
        %707 = vmatpush1.bf16.msra.mxu0 0
        %708 = vmatprep.subr.bf16.mxu0 0
        %709 = vmatpush1.bf16.msra.mxu0 0
        %710 = vmatprep.subr.bf16.mxu0 0
        %711 = vmatpush1.bf16.msra.mxu0 0
        %712 = vmatprep.mubr.bf16.mxu0 0
        %713 = vmatmul.mubr.bf16.gmra.mrb[0].mxu0 %v616
        %v714 = vpop.f32.mrb[0].mxu0
        %v715 = vadd.f32 %v582, %v714
        %v716 = vpop.f32.mrb[0].mxu0
        %v717 = vpop.f32.mrb[0].mxu0
        %v718 = vadd.f32 %v582, %v717
        %v719 = vpop.f32.mrb[0].mxu0
        %720 = vmatprep.mubr.bf16.mxu0 0
        %721 = vmatmul.mubr.bf16.gmra.mrb[0].mxu0 %v617
        %v722 = vpop.f32.mrb[0].mxu0
        %v723 = vadd.f32 %v582, %v722
        %v724 = vpop.f32.mrb[0].mxu0
        %v725 = vpop.f32.mrb[0].mxu0
        %v726 = vadd.f32 %v582, %v725
        %v727 = vpop.f32.mrb[0].mxu0
        %728 = vmatprep.mubr.bf16.mxu0 0
        %729 = vmatmul.mubr.bf16.gmra.mrb[0].mxu0 %v618
        %v730 = vpop.f32.mrb[0].mxu0
        %v731 = vadd.f32 %v582, %v730
        %v732 = vpop.f32.mrb[0].mxu0
        %v733 = vpop.f32.mrb[0].mxu0
        %v734 = vadd.f32 %v582, %v733
        %v735 = vpop.f32.mrb[0].mxu0
        %736 = vmatprep.mubr.bf16.mxu0 0
        %737 = vmatmul.mubr.bf16.gmra.mrb[0].mxu0 %v619
        %v738 = vpop.f32.mrb[0].mxu0
        %v739 = vadd.f32 %v582, %v738
        %v740 = vpop.f32.mrb[0].mxu0
        %v741 = vpop.f32.mrb[0].mxu0
        %v742 = vadd.f32 %v582, %v741
        %v743 = vpop.f32.mrb[0].mxu0
        %744 = vmatprep.mubr.bf16.mxu0 0
        %745 = vmatmul.mubr.bf16.gmra.mrb[0].mxu0 %v620
        %v746 = vpop.f32.mrb[0].mxu0
        %v747 = vadd.f32 %v582, %v746
        %v748 = vpop.f32.mrb[0].mxu0
        %v749 = vpop.f32.mrb[0].mxu0
        %v750 = vadd.f32 %v582, %v749
        %v751 = vpop.f32.mrb[0].mxu0
        %752 = vmatprep.mubr.bf16.mxu0 0
        %753 = vmatmul.mubr.bf16.gmra.mrb[0].mxu0 %v621
        %v754 = vpop.f32.mrb[0].mxu0
        %v755 = vadd.f32 %v582, %v754
        %v756 = vpop.f32.mrb[0].mxu0
        %v757 = vpop.f32.mrb[0].mxu0
        %v758 = vadd.f32 %v582, %v757
        %v759 = vpop.f32.mrb[0].mxu0
        %760 = vmatprep.mubr.bf16.mxu0 0
        %761 = vmatmul.mubr.bf16.gmra.mrb[0].mxu0 %v622
        %v762 = vpop.f32.mrb[0].mxu0
        %v763 = vadd.f32 %v582, %v762
        %v764 = vpop.f32.mrb[0].mxu0
        %v765 = vpop.f32.mrb[0].mxu0
        %v766 = vadd.f32 %v582, %v765
        %v767 = vpop.f32.mrb[0].mxu0
        %768 = vmatprep.mubr.bf16.mxu0 0
        %769 = vmatmul.mubr.bf16.gmra.mrb[0].mxu0 %v623
        %v770 = vpop.f32.mrb[0].mxu0
        %v771 = vadd.f32 %v582, %v770
        %v772 = vpop.f32.mrb[0].mxu0
        %v773 = vpop.f32.mrb[0].mxu0
        %v774 = vadd.f32 %v582, %v773
        %v775 = vpop.f32.mrb[0].mxu0
        %776 = vdwg.mxu0
        %v777 = vmax.f32 %v715, 0.0
        %v778 = vmax.f32 %v718, 0.0
        %v779 = vmax.f32 %v723, 0.0
        %v780 = vmax.f32 %v726, 0.0
        %v781 = vmax.f32 %v731, 0.0
        %v782 = vmax.f32 %v734, 0.0
        %v783 = vmax.f32 %v739, 0.0
        %v784 = vmax.f32 %v742, 0.0
        %v785 = vmax.f32 %v747, 0.0
        %v786 = vmax.f32 %v750, 0.0
        %v787 = vmax.f32 %v755, 0.0
        %v788 = vmax.f32 %v758, 0.0
        %v789 = vmax.f32 %v763, 0.0
        %v790 = vmax.f32 %v766, 0.0
        %v791 = vmax.f32 %v771, 0.0
        %v792 = vmax.f32 %v774, 0.0
        %v793 = vpack.c.bf16 %v778, %v777
        %v794 = vpack.c.bf16 %v780, %v779
        %v795 = vpack.c.bf16 %v782, %v781
        %v796 = vpack.c.bf16 %v784, %v783
        %v797 = vpack.c.bf16 %v786, %v785
        %v798 = vpack.c.bf16 %v788, %v787
        %v799 = vpack.c.bf16 %v790, %v789
        %v800 = vpack.c.bf16 %v792, %v791
        %v801 = vld [vmem:[#allocation7] sm:$0xf]
        %v802 = vld [vmem:[#allocation7 + $0x4] sm:$0xf]
        %v803 = vld [vmem:[#allocation7 + $0x8] sm:$0xf]
        %v804 = vld [vmem:[#allocation7 + $0xc] sm:$0xf]
        %v805 = vld [vmem:[#allocation7 + $0x10] sm:$0xf]
        %v806 = vld [vmem:[#allocation7 + $0x14] sm:$0xf]
        %v807 = vld [vmem:[#allocation7 + $0x18] sm:$0xf]
        %v808 = vld [vmem:[#allocation7 + $0x1c] sm:$0xf]
        %v809 = vld [vmem:[#allocation7 + $0x20] sm:$0xf]
        %v810 = vld [vmem:[#allocation7 + $0x24] sm:$0xf]
        %v811 = vld [vmem:[#allocation7 + $0x28] sm:$0xf]
        %v812 = vld [vmem:[#allocation7 + $0x2c] sm:$0xf]
        %v813 = vld [vmem:[#allocation7 + $0x30] sm:$0xf]
        %v814 = vld [vmem:[#allocation7 + $0x34] sm:$0xf]
        %v815 = vld [vmem:[#allocation7 + $0x38] sm:$0xf]
        %v816 = vld [vmem:[#allocation7 + $0x3c] sm:$0xf]
        %v817 = vld [vmem:[%s4] sm:$0x1]
        %v819 = vlaneseq
        %v820 = vshrl.u32 %v819, 7
        %v821 = vsub.s32 0, %v820
        %v822 = vrot.slane %v817, %v821
        %v840 = vunpack.c.l.b16 %v801
        %v841 = vunpack.c.l.b16 %v802
        %v842 = vunpack.c.l.b16 %v803
        %v843 = vunpack.c.l.b16 %v804
        %v844 = vunpack.c.l.b16 %v805
        %v845 = vunpack.c.l.b16 %v806
        %v846 = vunpack.c.l.b16 %v807
        %v847 = vunpack.c.l.b16 %v808
        %v848 = vunpack.c.l.b16 %v809
        %v849 = vunpack.c.l.b16 %v810
        %v850 = vunpack.c.l.b16 %v811
        %v851 = vunpack.c.l.b16 %v812
        %v852 = vunpack.c.l.b16 %v813
        %v853 = vunpack.c.l.b16 %v814
        %v854 = vunpack.c.l.b16 %v815
        %v855 = vunpack.c.l.b16 %v816
        %v856 = vpack.c.b16 %v841, %v840
        %v857 = vpack.c.b16 %v843, %v842
        %v858 = vpack.c.b16 %v845, %v844
        %v859 = vpack.c.b16 %v847, %v846
        %v860 = vpack.c.b16 %v849, %v848
        %v861 = vpack.c.b16 %v851, %v850
        %v862 = vpack.c.b16 %v853, %v852
        %v863 = vpack.c.b16 %v855, %v854
        %872 = vmatprep.subr.bf16.mxu0 0
        %873 = vmatpush1.bf16.msra.mxu0 %v856
        %874 = vmatprep.subr.bf16.mxu0 0
        %875 = vmatpush1.bf16.msra.mxu0 %v857
        %876 = vmatprep.subr.bf16.mxu0 0
        %877 = vmatpush1.bf16.msra.mxu0 %v858
        %878 = vmatprep.subr.bf16.mxu0 0
        %879 = vmatpush1.bf16.msra.mxu0 %v859
        %880 = vmatprep.subr.bf16.mxu0 0
        %881 = vmatpush1.bf16.msra.mxu0 %v860
        %882 = vmatprep.subr.bf16.mxu0 0
        %883 = vmatpush1.bf16.msra.mxu0 %v861
        %884 = vmatprep.subr.bf16.mxu0 0
        %885 = vmatpush1.bf16.msra.mxu0 %v862
        %886 = vmatprep.subr.bf16.mxu0 0
        %887 = vmatpush1.bf16.msra.mxu0 %v863
        %888 = vmatprep.subr.bf16.mxu0 0
        %889 = vmatpush1.bf16.msra.mxu0 0
        %890 = vmatprep.subr.bf16.mxu0 0
        %891 = vmatpush1.bf16.msra.mxu0 0
        %892 = vmatprep.subr.bf16.mxu0 0
        %893 = vmatpush1.bf16.msra.mxu0 0
        %894 = vmatprep.subr.bf16.mxu0 0
        %895 = vmatpush1.bf16.msra.mxu0 0
        %896 = vmatprep.subr.bf16.mxu0 0
        %897 = vmatpush1.bf16.msra.mxu0 0
        %898 = vmatprep.subr.bf16.mxu0 0
        %899 = vmatpush1.bf16.msra.mxu0 0
        %900 = vmatprep.subr.bf16.mxu0 0
        %901 = vmatpush1.bf16.msra.mxu0 0
        %902 = vmatprep.subr.bf16.mxu0 0
        %903 = vmatpush1.bf16.msra.mxu0 0
        %904 = vmatprep.mubr.bf16.mxu0 0
        %905 = vmatmul.mubr.bf16.gmra.mrb[0].mxu0 %v793
        %v906 = vpop.f32.mrb[0].mxu0
        %v907 = vadd.f32 %v822, %v906
        %v908 = vpop.f32.mrb[0].mxu0
        %v909 = vpop.f32.mrb[0].mxu0
        %v910 = vadd.f32 %v822, %v909
        %v911 = vpop.f32.mrb[0].mxu0
        %912 = vmatprep.mubr.bf16.mxu0 0
        %913 = vmatmul.mubr.bf16.gmra.mrb[0].mxu0 %v794
        %v914 = vpop.f32.mrb[0].mxu0
        %v915 = vadd.f32 %v822, %v914
        %v916 = vpop.f32.mrb[0].mxu0
        %v917 = vpop.f32.mrb[0].mxu0
        %v918 = vadd.f32 %v822, %v917
        %v919 = vpop.f32.mrb[0].mxu0
        %920 = vmatprep.mubr.bf16.mxu0 0
        %921 = vmatmul.mubr.bf16.gmra.mrb[0].mxu0 %v795
        %v922 = vpop.f32.mrb[0].mxu0
        %v923 = vadd.f32 %v822, %v922
        %v924 = vpop.f32.mrb[0].mxu0
        %v925 = vpop.f32.mrb[0].mxu0
        %v926 = vadd.f32 %v822, %v925
        %v927 = vpop.f32.mrb[0].mxu0
        %928 = vmatprep.mubr.bf16.mxu0 0
        %929 = vmatmul.mubr.bf16.gmra.mrb[0].mxu0 %v796
        %v930 = vpop.f32.mrb[0].mxu0
        %v931 = vadd.f32 %v822, %v930
        %v932 = vpop.f32.mrb[0].mxu0
        %v933 = vpop.f32.mrb[0].mxu0
        %v934 = vadd.f32 %v822, %v933
        %v935 = vpop.f32.mrb[0].mxu0
        %936 = vmatprep.mubr.bf16.mxu0 0
        %937 = vmatmul.mubr.bf16.gmra.mrb[0].mxu0 %v797
        %v938 = vpop.f32.mrb[0].mxu0
        %v939 = vadd.f32 %v822, %v938
        %v940 = vpop.f32.mrb[0].mxu0
        %v941 = vpop.f32.mrb[0].mxu0
        %v942 = vadd.f32 %v822, %v941
        %v943 = vpop.f32.mrb[0].mxu0
        %944 = vmatprep.mubr.bf16.mxu0 0
        %945 = vmatmul.mubr.bf16.gmra.mrb[0].mxu0 %v798
        %v946 = vpop.f32.mrb[0].mxu0
        %v947 = vadd.f32 %v822, %v946
        %v948 = vpop.f32.mrb[0].mxu0
        %v949 = vpop.f32.mrb[0].mxu0
        %v950 = vadd.f32 %v822, %v949
        %v951 = vpop.f32.mrb[0].mxu0
        %952 = vmatprep.mubr.bf16.mxu0 0
        %953 = vmatmul.mubr.bf16.gmra.mrb[0].mxu0 %v799
        %v954 = vpop.f32.mrb[0].mxu0
        %v955 = vadd.f32 %v822, %v954
        %v956 = vpop.f32.mrb[0].mxu0
        %v957 = vpop.f32.mrb[0].mxu0
        %v958 = vadd.f32 %v822, %v957
        %v959 = vpop.f32.mrb[0].mxu0
        %960 = vmatprep.mubr.bf16.mxu0 0
        %961 = vmatmul.mubr.bf16.gmra.mrb[0].mxu0 %v800
        %v962 = vpop.f32.mrb[0].mxu0
        %v963 = vadd.f32 %v822, %v962
        %v964 = vpop.f32.mrb[0].mxu0
        %v965 = vpop.f32.mrb[0].mxu0
        %v966 = vadd.f32 %v822, %v965
        %v967 = vpop.f32.mrb[0].mxu0
        %968 = vdwg.mxu0
        %v969 = vmax.f32 %v907, 0.0
        %v970 = vmax.f32 %v910, 0.0
        %v971 = vmax.f32 %v915, 0.0
        %v972 = vmax.f32 %v918, 0.0
        %v973 = vmax.f32 %v923, 0.0
        %v974 = vmax.f32 %v926, 0.0
        %v975 = vmax.f32 %v931, 0.0
        %v976 = vmax.f32 %v934, 0.0
        %v977 = vmax.f32 %v939, 0.0
        %v978 = vmax.f32 %v942, 0.0
        %v979 = vmax.f32 %v947, 0.0
        %v980 = vmax.f32 %v950, 0.0
        %v981 = vmax.f32 %v955, 0.0
        %v982 = vmax.f32 %v958, 0.0
        %v983 = vmax.f32 %v963, 0.0
        %v984 = vmax.f32 %v966, 0.0
        %v985 = vpack.c.bf16 %v970, %v969
        %v986 = vpack.c.bf16 %v972, %v971
        %v987 = vpack.c.bf16 %v974, %v973
        %v988 = vpack.c.bf16 %v976, %v975
        %v989 = vpack.c.bf16 %v978, %v977
        %v990 = vpack.c.bf16 %v980, %v979
        %v991 = vpack.c.bf16 %v982, %v981
        %v992 = vpack.c.bf16 %v984, %v983
        %v993 = vld [vmem:[#allocation8] sm:$0xff]
        %v994 = vld [vmem:[#allocation8 + $0x8] sm:$0xff]
        %v995 = vld [vmem:[#allocation8 + $0x10] sm:$0xff]
        %v996 = vld [vmem:[#allocation8 + $0x18] sm:$0xff]
        %v997 = vld [vmem:[#allocation8 + $0x20] sm:$0xff]
        %v998 = vld [vmem:[#allocation8 + $0x28] sm:$0xff]
        %v999 = vld [vmem:[#allocation8 + $0x30] sm:$0xff]
        %v1000 = vld [vmem:[#allocation8 + $0x38] sm:$0xff]
        %v1001 = vld [vmem:[#allocation8 + $0x40] sm:$0xff]
        %v1002 = vld [vmem:[#allocation8 + $0x48] sm:$0xff]
        %v1003 = vld [vmem:[#allocation8 + $0x50] sm:$0xff]
        %v1004 = vld [vmem:[#allocation8 + $0x58] sm:$0xff]
        %v1005 = vld [vmem:[#allocation8 + $0x60] sm:$0xff]
        %v1006 = vld [vmem:[#allocation8 + $0x68] sm:$0xff]
        %v1007 = vld [vmem:[#allocation8 + $0x70] sm:$0xff]
        %v1008 = vld [vmem:[#allocation8 + $0x78] sm:$0xff]
        %v1009 = vld [vmem:[%s6] sm:$0x3]
        %v1011 = vlaneseq
        %v1012 = vshrl.u32 %v1011, 7
        %v1013 = vsub.s32 0, %v1012
        %v1014 = vrot.slane %v1009, %v1013
        %v1015 = vlaneseq
        %v1016 = vshrl.u32 %v1015, 7
        %v1017 = vsub.s32 1, %v1016
        %v1018 = vrot.slane %v1009, %v1017
        %v1037 = vunpack.c.l.b16 %v993
        %v1038 = vunpack.c.h.b16 %v993
        %v1039 = vunpack.c.l.b16 %v994
        %v1040 = vunpack.c.h.b16 %v994
        %v1041 = vunpack.c.l.b16 %v995
        %v1042 = vunpack.c.h.b16 %v995
        %v1043 = vunpack.c.l.b16 %v996
        %v1044 = vunpack.c.h.b16 %v996
        %v1045 = vunpack.c.l.b16 %v997
        %v1046 = vunpack.c.h.b16 %v997
        %v1047 = vunpack.c.l.b16 %v998
        %v1048 = vunpack.c.h.b16 %v998
        %v1049 = vunpack.c.l.b16 %v999
        %v1050 = vunpack.c.h.b16 %v999
        %v1051 = vunpack.c.l.b16 %v1000
        %v1052 = vunpack.c.h.b16 %v1000
        %v1053 = vunpack.c.l.b16 %v1001
        %v1054 = vunpack.c.h.b16 %v1001
        %v1055 = vunpack.c.l.b16 %v1002
        %v1056 = vunpack.c.h.b16 %v1002
        %v1057 = vunpack.c.l.b16 %v1003
        %v1058 = vunpack.c.h.b16 %v1003
        %v1059 = vunpack.c.l.b16 %v1004
        %v1060 = vunpack.c.h.b16 %v1004
        %v1061 = vunpack.c.l.b16 %v1005
        %v1062 = vunpack.c.h.b16 %v1005
        %v1063 = vunpack.c.l.b16 %v1006
        %v1064 = vunpack.c.h.b16 %v1006
        %v1065 = vunpack.c.l.b16 %v1007
        %v1066 = vunpack.c.h.b16 %v1007
        %v1067 = vunpack.c.l.b16 %v1008
        %v1068 = vunpack.c.h.b16 %v1008
        %v1069 = vpack.c.b16 %v1039, %v1037
        %v1070 = vpack.c.b16 %v1040, %v1038
        %v1071 = vpack.c.b16 %v1043, %v1041
        %v1072 = vpack.c.b16 %v1044, %v1042
        %v1073 = vpack.c.b16 %v1047, %v1045
        %v1074 = vpack.c.b16 %v1048, %v1046
        %v1075 = vpack.c.b16 %v1051, %v1049
        %v1076 = vpack.c.b16 %v1052, %v1050
        %v1077 = vpack.c.b16 %v1055, %v1053
        %v1078 = vpack.c.b16 %v1056, %v1054
        %v1079 = vpack.c.b16 %v1059, %v1057
        %v1080 = vpack.c.b16 %v1060, %v1058
        %v1081 = vpack.c.b16 %v1063, %v1061
        %v1082 = vpack.c.b16 %v1064, %v1062
        %v1083 = vpack.c.b16 %v1067, %v1065
        %v1084 = vpack.c.b16 %v1068, %v1066
        %1101 = vmatprep.subr.bf16.mxu0 %v1070
        %1102 = vmatpush1.bf16.msra.mxu0 %v1069
        %1103 = vmatprep.subr.bf16.mxu0 %v1072
        %1104 = vmatpush1.bf16.msra.mxu0 %v1071
        %1105 = vmatprep.subr.bf16.mxu0 %v1074
        %1106 = vmatpush1.bf16.msra.mxu0 %v1073
        %1107 = vmatprep.subr.bf16.mxu0 %v1076
        %1108 = vmatpush1.bf16.msra.mxu0 %v1075
        %1109 = vmatprep.subr.bf16.mxu0 %v1078
        %1110 = vmatpush1.bf16.msra.mxu0 %v1077
        %1111 = vmatprep.subr.bf16.mxu0 %v1080
        %1112 = vmatpush1.bf16.msra.mxu0 %v1079
        %1113 = vmatprep.subr.bf16.mxu0 %v1082
        %1114 = vmatpush1.bf16.msra.mxu0 %v1081
        %1115 = vmatprep.subr.bf16.mxu0 %v1084
        %1116 = vmatpush1.bf16.msra.mxu0 %v1083
        %1117 = vmatprep.subr.bf16.mxu0 0
        %1118 = vmatpush1.bf16.msra.mxu0 0
        %1119 = vmatprep.subr.bf16.mxu0 0
        %1120 = vmatpush1.bf16.msra.mxu0 0
        %1121 = vmatprep.subr.bf16.mxu0 0
        %1122 = vmatpush1.bf16.msra.mxu0 0
        %1123 = vmatprep.subr.bf16.mxu0 0
        %1124 = vmatpush1.bf16.msra.mxu0 0
        %1125 = vmatprep.subr.bf16.mxu0 0
        %1126 = vmatpush1.bf16.msra.mxu0 0
        %1127 = vmatprep.subr.bf16.mxu0 0
        %1128 = vmatpush1.bf16.msra.mxu0 0
        %1129 = vmatprep.subr.bf16.mxu0 0
        %1130 = vmatpush1.bf16.msra.mxu0 0
        %1131 = vmatprep.subr.bf16.mxu0 0
        %1132 = vmatpush1.bf16.msra.mxu0 0
        %1133 = vmatprep.mubr.bf16.mxu0 0
        %1134 = vmatmul.mubr.bf16.gmra.mrb[0].mxu0 %v985
        %v1135 = vpop.f32.mrb[0].mxu0
        %v1136 = vadd.f32 %v1014, %v1135
        %v1137 = vpop.f32.mrb[0].mxu0
        %v1138 = vadd.f32 %v1018, %v1137
        %v1139 = vpop.f32.mrb[0].mxu0
        %v1140 = vadd.f32 %v1014, %v1139
        %v1141 = vpop.f32.mrb[0].mxu0
        %v1142 = vadd.f32 %v1018, %v1141
        %1143 = vmatprep.mubr.bf16.mxu0 0
        %1144 = vmatmul.mubr.bf16.gmra.mrb[0].mxu0 %v986
        %v1145 = vpop.f32.mrb[0].mxu0
        %v1146 = vadd.f32 %v1014, %v1145
        %v1147 = vpop.f32.mrb[0].mxu0
        %v1148 = vadd.f32 %v1018, %v1147
        %v1149 = vpop.f32.mrb[0].mxu0
        %v1150 = vadd.f32 %v1014, %v1149
        %v1151 = vpop.f32.mrb[0].mxu0
        %v1152 = vadd.f32 %v1018, %v1151
        %1153 = vmatprep.mubr.bf16.mxu0 0
        %1154 = vmatmul.mubr.bf16.gmra.mrb[0].mxu0 %v987
        %v1155 = vpop.f32.mrb[0].mxu0
        %v1156 = vadd.f32 %v1014, %v1155
        %v1157 = vpop.f32.mrb[0].mxu0
        %v1158 = vadd.f32 %v1018, %v1157
        %v1159 = vpop.f32.mrb[0].mxu0
        %v1160 = vadd.f32 %v1014, %v1159
        %v1161 = vpop.f32.mrb[0].mxu0
        %v1162 = vadd.f32 %v1018, %v1161
        %1163 = vmatprep.mubr.bf16.mxu0 0
        %1164 = vmatmul.mubr.bf16.gmra.mrb[0].mxu0 %v988
        %v1165 = vpop.f32.mrb[0].mxu0
        %v1166 = vadd.f32 %v1014, %v1165
        %v1167 = vpop.f32.mrb[0].mxu0
        %v1168 = vadd.f32 %v1018, %v1167
        %v1169 = vpop.f32.mrb[0].mxu0
        %v1170 = vadd.f32 %v1014, %v1169
        %v1171 = vpop.f32.mrb[0].mxu0
        %v1172 = vadd.f32 %v1018, %v1171
        %1173 = vmatprep.mubr.bf16.mxu0 0
        %1174 = vmatmul.mubr.bf16.gmra.mrb[0].mxu0 %v989
        %v1175 = vpop.f32.mrb[0].mxu0
        %v1176 = vadd.f32 %v1014, %v1175
        %v1177 = vpop.f32.mrb[0].mxu0
        %v1178 = vadd.f32 %v1018, %v1177
        %v1179 = vpop.f32.mrb[0].mxu0
        %v1180 = vadd.f32 %v1014, %v1179
        %v1181 = vpop.f32.mrb[0].mxu0
        %v1182 = vadd.f32 %v1018, %v1181
        %1183 = vmatprep.mubr.bf16.mxu0 0
        %1184 = vmatmul.mubr.bf16.gmra.mrb[0].mxu0 %v990
        %v1185 = vpop.f32.mrb[0].mxu0
        %v1186 = vadd.f32 %v1014, %v1185
        %v1187 = vpop.f32.mrb[0].mxu0
        %v1188 = vadd.f32 %v1018, %v1187
        %v1189 = vpop.f32.mrb[0].mxu0
        %v1190 = vadd.f32 %v1014, %v1189
        %v1191 = vpop.f32.mrb[0].mxu0
        %v1192 = vadd.f32 %v1018, %v1191
        %1193 = vmatprep.mubr.bf16.mxu0 0
        %1194 = vmatmul.mubr.bf16.gmra.mrb[0].mxu0 %v991
        %v1195 = vpop.f32.mrb[0].mxu0
        %v1196 = vadd.f32 %v1014, %v1195
        %v1197 = vpop.f32.mrb[0].mxu0
        %v1198 = vadd.f32 %v1018, %v1197
        %v1199 = vpop.f32.mrb[0].mxu0
        %v1200 = vadd.f32 %v1014, %v1199
        %v1201 = vpop.f32.mrb[0].mxu0
        %v1202 = vadd.f32 %v1018, %v1201
        %1203 = vmatprep.mubr.bf16.mxu0 0
        %1204 = vmatmul.mubr.bf16.gmra.mrb[0].mxu0 %v992
        %v1205 = vpop.f32.mrb[0].mxu0
        %v1206 = vadd.f32 %v1014, %v1205
        %v1207 = vpop.f32.mrb[0].mxu0
        %v1208 = vadd.f32 %v1018, %v1207
        %v1209 = vpop.f32.mrb[0].mxu0
        %v1210 = vadd.f32 %v1014, %v1209
        %v1211 = vpop.f32.mrb[0].mxu0
        %v1212 = vadd.f32 %v1018, %v1211
        %1213 = vdwg.mxu0
        %v1214 = vmax.f32 %v1136, 0.0
        %v1215 = vmax.f32 %v1138, 0.0
        %v1216 = vmax.f32 %v1140, 0.0
        %v1217 = vmax.f32 %v1142, 0.0
        %v1218 = vmax.f32 %v1146, 0.0
        %v1219 = vmax.f32 %v1148, 0.0
        %v1220 = vmax.f32 %v1150, 0.0
        %v1221 = vmax.f32 %v1152, 0.0
        %v1222 = vmax.f32 %v1156, 0.0
        %v1223 = vmax.f32 %v1158, 0.0
        %v1224 = vmax.f32 %v1160, 0.0
        %v1225 = vmax.f32 %v1162, 0.0
        %v1226 = vmax.f32 %v1166, 0.0
        %v1227 = vmax.f32 %v1168, 0.0
        %v1228 = vmax.f32 %v1170, 0.0
        %v1229 = vmax.f32 %v1172, 0.0
        %v1230 = vmax.f32 %v1176, 0.0
        %v1231 = vmax.f32 %v1178, 0.0
        %v1232 = vmax.f32 %v1180, 0.0
        %v1233 = vmax.f32 %v1182, 0.0
        %v1234 = vmax.f32 %v1186, 0.0
        %v1235 = vmax.f32 %v1188, 0.0
        %v1236 = vmax.f32 %v1190, 0.0
        %v1237 = vmax.f32 %v1192, 0.0
        %v1238 = vmax.f32 %v1196, 0.0
        %v1239 = vmax.f32 %v1198, 0.0
        %v1240 = vmax.f32 %v1200, 0.0
        %v1241 = vmax.f32 %v1202, 0.0
        %v1242 = vmax.f32 %v1206, 0.0
        %v1243 = vmax.f32 %v1208, 0.0
        %v1244 = vmax.f32 %v1210, 0.0
        %v1245 = vmax.f32 %v1212, 0.0
        %v1246 = vld [vmem:[%s487] sm:$0xff]
        %v1247 = vld [vmem:[%s487 + $0x8] sm:$0xff]
        %v1248 = vld [vmem:[%s487 + $0x10] sm:$0xff]
        %v1249 = vld [vmem:[%s487 + $0x18] sm:$0xff]
        %v1250 = vld [vmem:[%s487 + $0x20] sm:$0xff]
        %v1251 = vld [vmem:[%s487 + $0x28] sm:$0xff]
        %v1252 = vld [vmem:[%s487 + $0x30] sm:$0xff]
        %v1253 = vld [vmem:[%s487 + $0x38] sm:$0xff]
        %v1254 = vld [vmem:[%s487 + $0x40] sm:$0xff]
        %v1255 = vld [vmem:[%s487 + $0x48] sm:$0xff]
        %v1256 = vld [vmem:[%s487 + $0x50] sm:$0xff]
        %v1257 = vld [vmem:[%s487 + $0x58] sm:$0xff]
        %v1258 = vld [vmem:[%s487 + $0x60] sm:$0xff]
        %v1259 = vld [vmem:[%s487 + $0x68] sm:$0xff]
        %v1260 = vld [vmem:[%s487 + $0x70] sm:$0xff]
        %v1261 = vld [vmem:[%s487 + $0x78] sm:$0xff]
        %1262 = vst [vmem:[%s540 + $0x8] sm:$0xff] %v1214
        %1263 = vst [vmem:[%s540 + $0x10] sm:$0xff] %v1215
        %1264 = vst [vmem:[%s540 + $0x20] sm:$0xff] %v1216
        %1265 = vst [vmem:[%s540 + $0x28] sm:$0xff] %v1217
        %1266 = vst [vmem:[%s540 + $0x38] sm:$0xff] %v1218
        %1267 = vst [vmem:[%s540 + $0x40] sm:$0xff] %v1219
        %1268 = vst [vmem:[%s540 + $0x50] sm:$0xff] %v1220
        %1269 = vst [vmem:[%s540 + $0x58] sm:$0xff] %v1221
        %1270 = vst [vmem:[%s540 + $0x68] sm:$0xff] %v1222
        %1271 = vst [vmem:[%s540 + $0x70] sm:$0xff] %v1223
        %1272 = vst [vmem:[%s540 + $0x80] sm:$0xff] %v1224
        %1273 = vst [vmem:[%s540 + $0x88] sm:$0xff] %v1225
        %1274 = vst [vmem:[%s540 + $0x98] sm:$0xff] %v1226
        %1275 = vst [vmem:[%s540 + $0xa0] sm:$0xff] %v1227
        %1276 = vst [vmem:[%s540 + $0xb0] sm:$0xff] %v1228
        %1277 = vst [vmem:[%s540 + $0xb8] sm:$0xff] %v1229
        %1278 = vst [vmem:[%s540 + $0xc8] sm:$0xff] %v1230
        %1279 = vst [vmem:[%s540 + $0xd0] sm:$0xff] %v1231
        %1280 = vst [vmem:[%s540 + $0xe0] sm:$0xff] %v1232
        %1281 = vst [vmem:[%s540 + $0xe8] sm:$0xff] %v1233
        %1282 = vst [vmem:[%s540 + $0xf8] sm:$0xff] %v1234
        %1283 = vst [vmem:[%s540 + $0x100] sm:$0xff] %v1235
        %1284 = vst [vmem:[%s540 + $0x110] sm:$0xff] %v1236
        %1285 = vst [vmem:[%s540 + $0x118] sm:$0xff] %v1237
        %1286 = vst [vmem:[%s540 + $0x128] sm:$0xff] %v1238
        %1287 = vst [vmem:[%s540 + $0x130] sm:$0xff] %v1239
        %1288 = vst [vmem:[%s540 + $0x140] sm:$0xff] %v1240
        %1289 = vst [vmem:[%s540 + $0x148] sm:$0xff] %v1241
        %1290 = vst [vmem:[%s540 + $0x158] sm:$0xff] %v1242
        %1291 = vst [vmem:[%s540 + $0x160] sm:$0xff] %v1243
        %1292 = vst [vmem:[%s540 + $0x170] sm:$0xff] %v1244
        %1293 = vst [vmem:[%s540 + $0x178] sm:$0xff] %v1245
        %v1294 = vmul.f32 %v1215, 0.5
        %v1295 = vmul.f32 %v1217, 0.5
        %v1296 = vmul.f32 %v1219, 0.5
        %v1297 = vmul.f32 %v1221, 0.5
        %v1298 = vmul.f32 %v1223, 0.5
        %v1299 = vmul.f32 %v1225, 0.5
        %v1300 = vmul.f32 %v1227, 0.5
        %v1301 = vmul.f32 %v1229, 0.5
        %v1302 = vmul.f32 %v1231, 0.5
        %v1303 = vmul.f32 %v1233, 0.5
        %v1304 = vmul.f32 %v1235, 0.5
        %v1305 = vmul.f32 %v1237, 0.5
        %v1306 = vmul.f32 %v1239, 0.5
        %v1307 = vmul.f32 %v1241, 0.5
        %v1308 = vmul.f32 %v1243, 0.5
        %v1309 = vmul.f32 %v1245, 0.5
        %v1310 = vmul.f32 %v1294, 1.442695
        %v1311 = vpow.pop %v1310
        %v1312 = vmul.f32 %v1295, 1.442695
        %v1313 = vpow.pop %v1312
        %v1314 = vmul.f32 %v1296, 1.442695
        %v1315 = vpow.pop %v1314
        %v1316 = vmul.f32 %v1297, 1.442695
        %v1317 = vpow.pop %v1316
        %v1318 = vmul.f32 %v1298, 1.442695
        %v1319 = vpow.pop %v1318
        %v1320 = vmul.f32 %v1299, 1.442695
        %v1321 = vpow.pop %v1320
        %v1322 = vmul.f32 %v1300, 1.442695
        %v1323 = vpow.pop %v1322
        %v1324 = vmul.f32 %v1301, 1.442695
        %v1325 = vpow.pop %v1324
        %v1326 = vmul.f32 %v1302, 1.442695
        %v1327 = vpow.pop %v1326
        %v1328 = vmul.f32 %v1303, 1.442695
        %v1329 = vpow.pop %v1328
        %v1330 = vmul.f32 %v1304, 1.442695
        %v1331 = vpow.pop %v1330
        %v1332 = vmul.f32 %v1305, 1.442695
        %v1333 = vpow.pop %v1332
        %v1334 = vmul.f32 %v1306, 1.442695
        %v1335 = vpow.pop %v1334
        %v1336 = vmul.f32 %v1307, 1.442695
        %v1337 = vpow.pop %v1336
        %v1338 = vmul.f32 %v1308, 1.442695
        %v1339 = vpow.pop %v1338
        %v1340 = vmul.f32 %v1309, 1.442695
        %v1341 = vpow.pop %v1340
        %v1342 = vmul.f32 %v1246, %v1311
        %v1343 = vmul.f32 %v1247, %v1313
        %v1344 = vmul.f32 %v1248, %v1315
        %v1345 = vmul.f32 %v1249, %v1317
        %v1346 = vmul.f32 %v1250, %v1319
        %v1347 = vmul.f32 %v1251, %v1321
        %v1348 = vmul.f32 %v1252, %v1323
        %v1349 = vmul.f32 %v1253, %v1325
        %v1350 = vmul.f32 %v1254, %v1327
        %v1351 = vmul.f32 %v1255, %v1329
        %v1352 = vmul.f32 %v1256, %v1331
        %v1353 = vmul.f32 %v1257, %v1333
        %v1354 = vmul.f32 %v1258, %v1335
        %v1355 = vmul.f32 %v1259, %v1337
        %v1356 = vmul.f32 %v1260, %v1339
        %v1357 = vmul.f32 %v1261, %v1341
        %v1358 = vadd.f32 %v1214, %v1342
        %v1359 = vadd.f32 %v1216, %v1343
        %v1360 = vadd.f32 %v1218, %v1344
        %v1361 = vadd.f32 %v1220, %v1345
        %v1362 = vadd.f32 %v1222, %v1346
        %v1363 = vadd.f32 %v1224, %v1347
        %v1364 = vadd.f32 %v1226, %v1348
        %v1365 = vadd.f32 %v1228, %v1349
        %v1366 = vadd.f32 %v1230, %v1350
        %v1367 = vadd.f32 %v1232, %v1351
        %v1368 = vadd.f32 %v1234, %v1352
        %v1369 = vadd.f32 %v1236, %v1353
        %v1370 = vadd.f32 %v1238, %v1354
        %v1371 = vadd.f32 %v1240, %v1355
        %v1372 = vadd.f32 %v1242, %v1356
        %v1373 = vadd.f32 %v1244, %v1357
        %v1374 = vpack.c.bf16 %v1359, %v1358
        %v1375 = vpack.c.bf16 %v1361, %v1360
        %v1376 = vpack.c.bf16 %v1363, %v1362
        %v1377 = vpack.c.bf16 %v1365, %v1364
        %v1378 = vpack.c.bf16 %v1367, %v1366
        %v1379 = vpack.c.bf16 %v1369, %v1368
        %v1380 = vpack.c.bf16 %v1371, %v1370
        %v1381 = vpack.c.bf16 %v1373, %v1372
        %v1382 = vld [vmem:[#allocation11] sm:$0xf]
        %v1383 = vld [vmem:[#allocation11 + $0x4] sm:$0xf]
        %v1384 = vld [vmem:[#allocation11 + $0x8] sm:$0xf]
        %v1385 = vld [vmem:[#allocation11 + $0xc] sm:$0xf]
        %v1386 = vld [vmem:[#allocation11 + $0x10] sm:$0xf]
        %v1387 = vld [vmem:[#allocation11 + $0x14] sm:$0xf]
        %v1388 = vld [vmem:[#allocation11 + $0x18] sm:$0xf]
        %v1389 = vld [vmem:[#allocation11 + $0x1c] sm:$0xf]
        %v1390 = vld [vmem:[#allocation11 + $0x20] sm:$0xf]
        %v1391 = vld [vmem:[#allocation11 + $0x24] sm:$0xf]
        %v1392 = vld [vmem:[#allocation11 + $0x28] sm:$0xf]
        %v1393 = vld [vmem:[#allocation11 + $0x2c] sm:$0xf]
        %v1394 = vld [vmem:[#allocation11 + $0x30] sm:$0xf]
        %v1395 = vld [vmem:[#allocation11 + $0x34] sm:$0xf]
        %v1396 = vld [vmem:[#allocation11 + $0x38] sm:$0xf]
        %v1397 = vld [vmem:[#allocation11 + $0x3c] sm:$0xf]
        %v1398 = vld [vmem:[%s9] sm:$0x1]
        %v1400 = vlaneseq
        %v1401 = vshrl.u32 %v1400, 7
        %v1402 = vsub.s32 0, %v1401
        %v1403 = vrot.slane %v1398, %v1402
        %v1421 = vunpack.c.l.b16 %v1382
        %v1422 = vunpack.c.l.b16 %v1383
        %v1423 = vunpack.c.l.b16 %v1384
        %v1424 = vunpack.c.l.b16 %v1385
        %v1425 = vunpack.c.l.b16 %v1386
        %v1426 = vunpack.c.l.b16 %v1387
        %v1427 = vunpack.c.l.b16 %v1388
        %v1428 = vunpack.c.l.b16 %v1389
        %v1429 = vunpack.c.l.b16 %v1390
        %v1430 = vunpack.c.l.b16 %v1391
        %v1431 = vunpack.c.l.b16 %v1392
        %v1432 = vunpack.c.l.b16 %v1393
        %v1433 = vunpack.c.l.b16 %v1394
        %v1434 = vunpack.c.l.b16 %v1395
        %v1435 = vunpack.c.l.b16 %v1396
        %v1436 = vunpack.c.l.b16 %v1397
        %v1437 = vpack.c.b16 %v1422, %v1421
        %v1438 = vpack.c.b16 %v1424, %v1423
        %v1439 = vpack.c.b16 %v1426, %v1425
        %v1440 = vpack.c.b16 %v1428, %v1427
        %v1441 = vpack.c.b16 %v1430, %v1429
        %v1442 = vpack.c.b16 %v1432, %v1431
        %v1443 = vpack.c.b16 %v1434, %v1433
        %v1444 = vpack.c.b16 %v1436, %v1435
        %1453 = vmatprep.subr.bf16.mxu0 0
        %1454 = vmatpush1.bf16.msra.mxu0 %v1437
        %1455 = vmatprep.subr.bf16.mxu0 0
        %1456 = vmatpush1.bf16.msra.mxu0 %v1438
        %1457 = vmatprep.subr.bf16.mxu0 0
        %1458 = vmatpush1.bf16.msra.mxu0 %v1439
        %1459 = vmatprep.subr.bf16.mxu0 0
        %1460 = vmatpush1.bf16.msra.mxu0 %v1440
        %1461 = vmatprep.subr.bf16.mxu0 0
        %1462 = vmatpush1.bf16.msra.mxu0 %v1441
        %1463 = vmatprep.subr.bf16.mxu0 0
        %1464 = vmatpush1.bf16.msra.mxu0 %v1442
        %1465 = vmatprep.subr.bf16.mxu0 0
        %1466 = vmatpush1.bf16.msra.mxu0 %v1443
        %1467 = vmatprep.subr.bf16.mxu0 0
        %1468 = vmatpush1.bf16.msra.mxu0 %v1444
        %1469 = vmatprep.subr.bf16.mxu0 0
        %1470 = vmatpush1.bf16.msra.mxu0 0
        %1471 = vmatprep.subr.bf16.mxu0 0
        %1472 = vmatpush1.bf16.msra.mxu0 0
        %1473 = vmatprep.subr.bf16.mxu0 0
        %1474 = vmatpush1.bf16.msra.mxu0 0
        %1475 = vmatprep.subr.bf16.mxu0 0
        %1476 = vmatpush1.bf16.msra.mxu0 0
        %1477 = vmatprep.subr.bf16.mxu0 0
        %1478 = vmatpush1.bf16.msra.mxu0 0
        %1479 = vmatprep.subr.bf16.mxu0 0
        %1480 = vmatpush1.bf16.msra.mxu0 0
        %1481 = vmatprep.subr.bf16.mxu0 0
        %1482 = vmatpush1.bf16.msra.mxu0 0
        %1483 = vmatprep.subr.bf16.mxu0 0
        %1484 = vmatpush1.bf16.msra.mxu0 0
        %1485 = vmatprep.mubr.bf16.mxu0 0
        %1486 = vmatmul.mubr.bf16.gmra.mrb[0].mxu0 %v1374
        %v1487 = vpop.f32.mrb[0].mxu0
        %v1488 = vadd.f32 %v1403, %v1487
        %v1489 = vpop.f32.mrb[0].mxu0
        %v1490 = vpop.f32.mrb[0].mxu0
        %v1491 = vadd.f32 %v1403, %v1490
        %v1492 = vpop.f32.mrb[0].mxu0
        %1493 = vmatprep.mubr.bf16.mxu0 0
        %1494 = vmatmul.mubr.bf16.gmra.mrb[0].mxu0 %v1375
        %v1495 = vpop.f32.mrb[0].mxu0
        %v1496 = vadd.f32 %v1403, %v1495
        %v1497 = vpop.f32.mrb[0].mxu0
        %v1498 = vpop.f32.mrb[0].mxu0
        %v1499 = vadd.f32 %v1403, %v1498
        %v1500 = vpop.f32.mrb[0].mxu0
        %1501 = vmatprep.mubr.bf16.mxu0 0
        %1502 = vmatmul.mubr.bf16.gmra.mrb[0].mxu0 %v1376
        %v1503 = vpop.f32.mrb[0].mxu0
        %v1504 = vadd.f32 %v1403, %v1503
        %v1505 = vpop.f32.mrb[0].mxu0
        %v1506 = vpop.f32.mrb[0].mxu0
        %v1507 = vadd.f32 %v1403, %v1506
        %v1508 = vpop.f32.mrb[0].mxu0
        %1509 = vmatprep.mubr.bf16.mxu0 0
        %1510 = vmatmul.mubr.bf16.gmra.mrb[0].mxu0 %v1377
        %v1511 = vpop.f32.mrb[0].mxu0
        %v1512 = vadd.f32 %v1403, %v1511
        %v1513 = vpop.f32.mrb[0].mxu0
        %v1514 = vpop.f32.mrb[0].mxu0
        %v1515 = vadd.f32 %v1403, %v1514
        %v1516 = vpop.f32.mrb[0].mxu0
        %1517 = vmatprep.mubr.bf16.mxu0 0
        %1518 = vmatmul.mubr.bf16.gmra.mrb[0].mxu0 %v1378
        %v1519 = vpop.f32.mrb[0].mxu0
        %v1520 = vadd.f32 %v1403, %v1519
        %v1521 = vpop.f32.mrb[0].mxu0
        %v1522 = vpop.f32.mrb[0].mxu0
        %v1523 = vadd.f32 %v1403, %v1522
        %v1524 = vpop.f32.mrb[0].mxu0
        %1525 = vmatprep.mubr.bf16.mxu0 0
        %1526 = vmatmul.mubr.bf16.gmra.mrb[0].mxu0 %v1379
        %v1527 = vpop.f32.mrb[0].mxu0
        %v1528 = vadd.f32 %v1403, %v1527
        %v1529 = vpop.f32.mrb[0].mxu0
        %v1530 = vpop.f32.mrb[0].mxu0
        %v1531 = vadd.f32 %v1403, %v1530
        %v1532 = vpop.f32.mrb[0].mxu0
        %1533 = vmatprep.mubr.bf16.mxu0 0
        %1534 = vmatmul.mubr.bf16.gmra.mrb[0].mxu0 %v1380
        %v1535 = vpop.f32.mrb[0].mxu0
        %v1536 = vadd.f32 %v1403, %v1535
        %v1537 = vpop.f32.mrb[0].mxu0
        %v1538 = vpop.f32.mrb[0].mxu0
        %v1539 = vadd.f32 %v1403, %v1538
        %v1540 = vpop.f32.mrb[0].mxu0
        %1541 = vmatprep.mubr.bf16.mxu0 0
        %1542 = vmatmul.mubr.bf16.gmra.mrb[0].mxu0 %v1381
        %v1543 = vpop.f32.mrb[0].mxu0
        %v1544 = vadd.f32 %v1403, %v1543
        %v1545 = vpop.f32.mrb[0].mxu0
        %v1546 = vpop.f32.mrb[0].mxu0
        %v1547 = vadd.f32 %v1403, %v1546
        %v1548 = vpop.f32.mrb[0].mxu0
        %1549 = vdwg.mxu0
        %v1550 = vmax.f32 %v1488, 0.0
        %v1551 = vmax.f32 %v1491, 0.0
        %v1552 = vmax.f32 %v1496, 0.0
        %v1553 = vmax.f32 %v1499, 0.0
        %v1554 = vmax.f32 %v1504, 0.0
        %v1555 = vmax.f32 %v1507, 0.0
        %v1556 = vmax.f32 %v1512, 0.0
        %v1557 = vmax.f32 %v1515, 0.0
        %v1558 = vmax.f32 %v1520, 0.0
        %v1559 = vmax.f32 %v1523, 0.0
        %v1560 = vmax.f32 %v1528, 0.0
        %v1561 = vmax.f32 %v1531, 0.0
        %v1562 = vmax.f32 %v1536, 0.0
        %v1563 = vmax.f32 %v1539, 0.0
        %v1564 = vmax.f32 %v1544, 0.0
        %v1565 = vmax.f32 %v1547, 0.0
        %v1566 = vpack.c.bf16 %v1551, %v1550
        %v1567 = vpack.c.bf16 %v1553, %v1552
        %v1568 = vpack.c.bf16 %v1555, %v1554
        %v1569 = vpack.c.bf16 %v1557, %v1556
        %v1570 = vpack.c.bf16 %v1559, %v1558
        %v1571 = vpack.c.bf16 %v1561, %v1560
        %v1572 = vpack.c.bf16 %v1563, %v1562
        %v1573 = vpack.c.bf16 %v1565, %v1564
        %v1574 = vld [vmem:[#allocation12] sm:$0xf]
        %v1575 = vld [vmem:[#allocation12 + $0x4] sm:$0xf]
        %v1576 = vld [vmem:[#allocation12 + $0x8] sm:$0xf]
        %v1577 = vld [vmem:[#allocation12 + $0xc] sm:$0xf]
        %v1578 = vld [vmem:[#allocation12 + $0x10] sm:$0xf]
        %v1579 = vld [vmem:[#allocation12 + $0x14] sm:$0xf]
        %v1580 = vld [vmem:[#allocation12 + $0x18] sm:$0xf]
        %v1581 = vld [vmem:[#allocation12 + $0x1c] sm:$0xf]
        %v1582 = vld [vmem:[#allocation12 + $0x20] sm:$0xf]
        %v1583 = vld [vmem:[#allocation12 + $0x24] sm:$0xf]
        %v1584 = vld [vmem:[#allocation12 + $0x28] sm:$0xf]
        %v1585 = vld [vmem:[#allocation12 + $0x2c] sm:$0xf]
        %v1586 = vld [vmem:[#allocation12 + $0x30] sm:$0xf]
        %v1587 = vld [vmem:[#allocation12 + $0x34] sm:$0xf]
        %v1588 = vld [vmem:[#allocation12 + $0x38] sm:$0xf]
        %v1589 = vld [vmem:[#allocation12 + $0x3c] sm:$0xf]
        %v1590 = vld [vmem:[%s11] sm:$0x1]
        %v1592 = vlaneseq
        %v1593 = vshrl.u32 %v1592, 7
        %v1594 = vsub.s32 0, %v1593
        %v1595 = vrot.slane %v1590, %v1594
        %v1613 = vunpack.c.l.b16 %v1574
        %v1614 = vunpack.c.l.b16 %v1575
        %v1615 = vunpack.c.l.b16 %v1576
        %v1616 = vunpack.c.l.b16 %v1577
        %v1617 = vunpack.c.l.b16 %v1578
        %v1618 = vunpack.c.l.b16 %v1579
        %v1619 = vunpack.c.l.b16 %v1580
        %v1620 = vunpack.c.l.b16 %v1581
        %v1621 = vunpack.c.l.b16 %v1582
        %v1622 = vunpack.c.l.b16 %v1583
        %v1623 = vunpack.c.l.b16 %v1584
        %v1624 = vunpack.c.l.b16 %v1585
        %v1625 = vunpack.c.l.b16 %v1586
        %v1626 = vunpack.c.l.b16 %v1587
        %v1627 = vunpack.c.l.b16 %v1588
        %v1628 = vunpack.c.l.b16 %v1589
        %v1629 = vpack.c.b16 %v1614, %v1613
        %v1630 = vpack.c.b16 %v1616, %v1615
        %v1631 = vpack.c.b16 %v1618, %v1617
        %v1632 = vpack.c.b16 %v1620, %v1619
        %v1633 = vpack.c.b16 %v1622, %v1621
        %v1634 = vpack.c.b16 %v1624, %v1623
        %v1635 = vpack.c.b16 %v1626, %v1625
        %v1636 = vpack.c.b16 %v1628, %v1627
        %1645 = vmatprep.subr.bf16.mxu0 0
        %1646 = vmatpush1.bf16.msra.mxu0 %v1629
        %1647 = vmatprep.subr.bf16.mxu0 0
        %1648 = vmatpush1.bf16.msra.mxu0 %v1630
        %1649 = vmatprep.subr.bf16.mxu0 0
        %1650 = vmatpush1.bf16.msra.mxu0 %v1631
        %1651 = vmatprep.subr.bf16.mxu0 0
        %1652 = vmatpush1.bf16.msra.mxu0 %v1632
        %1653 = vmatprep.subr.bf16.mxu0 0
        %1654 = vmatpush1.bf16.msra.mxu0 %v1633
        %1655 = vmatprep.subr.bf16.mxu0 0
        %1656 = vmatpush1.bf16.msra.mxu0 %v1634
        %1657 = vmatprep.subr.bf16.mxu0 0
        %1658 = vmatpush1.bf16.msra.mxu0 %v1635
        %1659 = vmatprep.subr.bf16.mxu0 0
        %1660 = vmatpush1.bf16.msra.mxu0 %v1636
        %1661 = vmatprep.subr.bf16.mxu0 0
        %1662 = vmatpush1.bf16.msra.mxu0 0
        %1663 = vmatprep.subr.bf16.mxu0 0
        %1664 = vmatpush1.bf16.msra.mxu0 0
        %1665 = vmatprep.subr.bf16.mxu0 0
        %1666 = vmatpush1.bf16.msra.mxu0 0
        %1667 = vmatprep.subr.bf16.mxu0 0
        %1668 = vmatpush1.bf16.msra.mxu0 0
        %1669 = vmatprep.subr.bf16.mxu0 0
        %1670 = vmatpush1.bf16.msra.mxu0 0
        %1671 = vmatprep.subr.bf16.mxu0 0
        %1672 = vmatpush1.bf16.msra.mxu0 0
        %1673 = vmatprep.subr.bf16.mxu0 0
        %1674 = vmatpush1.bf16.msra.mxu0 0
        %1675 = vmatprep.subr.bf16.mxu0 0
        %1676 = vmatpush1.bf16.msra.mxu0 0
        %1677 = vmatprep.mubr.bf16.mxu0 0
        %1678 = vmatmul.mubr.bf16.gmra.mrb[0].mxu0 %v1566
        %v1679 = vpop.f32.mrb[0].mxu0
        %v1680 = vadd.f32 %v1595, %v1679
        %v1681 = vpop.f32.mrb[0].mxu0
        %v1682 = vpop.f32.mrb[0].mxu0
        %v1683 = vadd.f32 %v1595, %v1682
        %v1684 = vpop.f32.mrb[0].mxu0
        %1685 = vmatprep.mubr.bf16.mxu0 0
        %1686 = vmatmul.mubr.bf16.gmra.mrb[0].mxu0 %v1567
        %v1687 = vpop.f32.mrb[0].mxu0
        %v1688 = vadd.f32 %v1595, %v1687
        %v1689 = vpop.f32.mrb[0].mxu0
        %v1690 = vpop.f32.mrb[0].mxu0
        %v1691 = vadd.f32 %v1595, %v1690
        %v1692 = vpop.f32.mrb[0].mxu0
        %1693 = vmatprep.mubr.bf16.mxu0 0
        %1694 = vmatmul.mubr.bf16.gmra.mrb[0].mxu0 %v1568
        %v1695 = vpop.f32.mrb[0].mxu0
        %v1696 = vadd.f32 %v1595, %v1695
        %v1697 = vpop.f32.mrb[0].mxu0
        %v1698 = vpop.f32.mrb[0].mxu0
        %v1699 = vadd.f32 %v1595, %v1698
        %v1700 = vpop.f32.mrb[0].mxu0
        %1701 = vmatprep.mubr.bf16.mxu0 0
        %1702 = vmatmul.mubr.bf16.gmra.mrb[0].mxu0 %v1569
        %v1703 = vpop.f32.mrb[0].mxu0
        %v1704 = vadd.f32 %v1595, %v1703
        %v1705 = vpop.f32.mrb[0].mxu0
        %v1706 = vpop.f32.mrb[0].mxu0
        %v1707 = vadd.f32 %v1595, %v1706
        %v1708 = vpop.f32.mrb[0].mxu0
        %1709 = vmatprep.mubr.bf16.mxu0 0
        %1710 = vmatmul.mubr.bf16.gmra.mrb[0].mxu0 %v1570
        %v1711 = vpop.f32.mrb[0].mxu0
        %v1712 = vadd.f32 %v1595, %v1711
        %v1713 = vpop.f32.mrb[0].mxu0
        %v1714 = vpop.f32.mrb[0].mxu0
        %v1715 = vadd.f32 %v1595, %v1714
        %v1716 = vpop.f32.mrb[0].mxu0
        %1717 = vmatprep.mubr.bf16.mxu0 0
        %1718 = vmatmul.mubr.bf16.gmra.mrb[0].mxu0 %v1571
        %v1719 = vpop.f32.mrb[0].mxu0
        %v1720 = vadd.f32 %v1595, %v1719
        %v1721 = vpop.f32.mrb[0].mxu0
        %v1722 = vpop.f32.mrb[0].mxu0
        %v1723 = vadd.f32 %v1595, %v1722
        %v1724 = vpop.f32.mrb[0].mxu0
        %1725 = vmatprep.mubr.bf16.mxu0 0
        %1726 = vmatmul.mubr.bf16.gmra.mrb[0].mxu0 %v1572
        %v1727 = vpop.f32.mrb[0].mxu0
        %v1728 = vadd.f32 %v1595, %v1727
        %v1729 = vpop.f32.mrb[0].mxu0
        %v1730 = vpop.f32.mrb[0].mxu0
        %v1731 = vadd.f32 %v1595, %v1730
        %v1732 = vpop.f32.mrb[0].mxu0
        %1733 = vmatprep.mubr.bf16.mxu0 0
        %1734 = vmatmul.mubr.bf16.gmra.mrb[0].mxu0 %v1573
        %v1735 = vpop.f32.mrb[0].mxu0
        %v1736 = vadd.f32 %v1595, %v1735
        %v1737 = vpop.f32.mrb[0].mxu0
        %v1738 = vpop.f32.mrb[0].mxu0
        %v1739 = vadd.f32 %v1595, %v1738
        %v1740 = vpop.f32.mrb[0].mxu0
        %1741 = vdwg.mxu0
        %v1742 = vmax.f32 %v1680, 0.0
        %v1743 = vmax.f32 %v1683, 0.0
        %v1744 = vmax.f32 %v1688, 0.0
        %v1745 = vmax.f32 %v1691, 0.0
        %v1746 = vmax.f32 %v1696, 0.0
        %v1747 = vmax.f32 %v1699, 0.0
        %v1748 = vmax.f32 %v1704, 0.0
        %v1749 = vmax.f32 %v1707, 0.0
        %v1750 = vmax.f32 %v1712, 0.0
        %v1751 = vmax.f32 %v1715, 0.0
        %v1752 = vmax.f32 %v1720, 0.0
        %v1753 = vmax.f32 %v1723, 0.0
        %v1754 = vmax.f32 %v1728, 0.0
        %v1755 = vmax.f32 %v1731, 0.0
        %v1756 = vmax.f32 %v1736, 0.0
        %v1757 = vmax.f32 %v1739, 0.0
        %1758 = vst [vmem:[%s540] sm:$0xff] %v1742
        %1759 = vst [vmem:[%s540 + $0x18] sm:$0xff] %v1743
        %1760 = vst [vmem:[%s540 + $0x30] sm:$0xff] %v1744
        %1761 = vst [vmem:[%s540 + $0x48] sm:$0xff] %v1745
        %1762 = vst [vmem:[%s540 + $0x60] sm:$0xff] %v1746
        %1763 = vst [vmem:[%s540 + $0x78] sm:$0xff] %v1747
        %1764 = vst [vmem:[%s540 + $0x90] sm:$0xff] %v1748
        %1765 = vst [vmem:[%s540 + $0xa8] sm:$0xff] %v1749
        %1766 = vst [vmem:[%s540 + $0xc0] sm:$0xff] %v1750
        %1767 = vst [vmem:[%s540 + $0xd8] sm:$0xff] %v1751
        %1768 = vst [vmem:[%s540 + $0xf0] sm:$0xff] %v1752
        %1769 = vst [vmem:[%s540 + $0x108] sm:$0xff] %v1753
        %1770 = vst [vmem:[%s540 + $0x120] sm:$0xff] %v1754
        %1771 = vst [vmem:[%s540 + $0x138] sm:$0xff] %v1755
        %1772 = vst [vmem:[%s540 + $0x150] sm:$0xff] %v1756
        %1773 = vst [vmem:[%s540 + $0x168] sm:$0xff] %v1757
        %s1774 = sand.u32 %s301, 1
        %s1775 = scalar_lea.sflag [#allocation4], %s1774
        %s1776 = sand.u32 %s301, 1
        %s1777 = smul.addr %s1776, 384
        %s1778 = scalar_lea.vmem [#allocation13], %s1777
        // Predicated region
        $region97: #{tpu_custom_call.1} parent=67 // pred_check
          %p1779 = pneg %p311
        $region98: #{tpu_custom_call.1} parent=67 // pred_check_branch
          %1781 = sbr.rel (%p1779) target = $region100
        $region99: #{tpu_custom_call.1} parent=67 // pred_region
          %s1782 = smul.u32 16, %s31
          %s1784 = ssub.s32 6144, 6144
          %1785 = vsyncadd %s1775, %s1784
          %s1786 = smul.addr %s1782, 3
          %s1787 = smul.addr %s1786, 128
          %s1788 = scalar_lea.hbm %s12, %s1787
          %s1789 = sshll.u32 %s1778, 4
          %s1790 = int_to_ptr.vmem [resolvable:$true] %s1789
          %1795 = dma.vmem_to_hbm [thread:$0]  %s1790, 6144, %s1788, %s1775, 384, 384, 24
        $region100: #{tpu_custom_call.1} parent=67 // pred_fallthru
          _
      $region68: #{tpu_custom_call.1} parent=5 // pred_fallthru
        _
      %p1796 = scmp.le.s32.totalorder 2, %s26
      // Predicated region
      $region101: #{tpu_custom_call.1} parent=5 // pred_check
        %p1797 = pneg %p1796
      $region102: #{tpu_custom_call.1} parent=5 // pred_check_branch
        %1799 = sbr.rel (%p1797) target = $region104
      $region103: #{tpu_custom_call.1} parent=5 // pred_region
        %s1800 = ssub.s32 %s26, 2
        // Predicated region
        $region105: #{tpu_custom_call.1} parent=103 // pred_check
          %p1801 = pneg %p317
        $region106: #{tpu_custom_call.1} parent=103 // pred_check_branch
          %1803 = sbr.rel (%p1801) target = $region108
        $region107: #{tpu_custom_call.1} parent=103 // pred_region
          %s1804 = sand.u32 %s302, 1
          %s1805 = scalar_lea.sflag [#allocation4], %s1804
          %s1806 = sand.u32 %s302, 1
          %s1807 = smul.addr %s1806, 384
          %s1808 = scalar_lea.vmem [#allocation13], %s1807
          %1809 = dma.done %s1805, 6144
        $region108: #{tpu_custom_call.1} parent=103 // pred_fallthru
          _
      $region104: #{tpu_custom_call.1} parent=5 // pred_fallthru
        _
    $region6: #{tpu_custom_call.1} parent=1 // loop_footer
      %s30 = sadd.s32 1, %s26
    $region7: #{tpu_custom_call.1} parent=1 // loop_footer_branch
      %25 = sbr.rel target = $region3
    $region8: #{tpu_custom_call.1} parent=1 // loop_exit
      _
    %1810 = vsyncpa [#allocation3], 1
    %s1811 = scalar_lea.sflag [#allocation3], 1
    %1812 = vsyncpa %s1811, 1
    %1813 = vsyncpa [#allocation6], 1
    %1814 = vsyncpa [#allocation9], 1
    %1815 = vsyncpa [#allocation4], 1
    %s1816 = scalar_lea.sflag [#allocation4], 1
    %1817 = vsyncpa %s1816, 1

</llo_original>
